<compile_context>
chip_gen: v7x
topology: tpu7x:2x2x1
jax: 0.10.0
libtpu: 0.0.40
codegen_flags: <defaults>
</compile_context>

<pallas_src>
from functools import partial

import jax
import jax.numpy as jnp
from jax import lax
from jax.experimental import pallas as pl
from jax.experimental.pallas import tpu as pltpu

LN_EPS = 1e-5  # PyTorch nn.LayerNorm default


# ------------------------------ Pallas kernel -------------------------------

def _layer_norm(x, g, b):
    mu = jnp.mean(x, axis=-1, keepdims=True)
    var = jnp.mean((x - mu) ** 2, axis=-1, keepdims=True)
    return (x - mu) * lax.rsqrt(var + LN_EPS) * g + b


def tf_unit_kernel(x_ref, pe_ref,
                   wqkv_ref, wo_ref, w1_ref, w2_ref, vecs_ref, b1_ref,
                   o_ref, *, heads, dim_head):
    depth = wqkv_ref.shape[0]
    Bb, N, D = x_ref.shape
    R = Bb * N
    H = heads * dim_head

    # Positional-encoding add (dropout == identity at inference); flatten batch into rows
    # so all row-wise matmuls see a taller LHS (better MXU row utilization).
    x = (x_ref[...].astype(jnp.float32)
         + pe_ref[...].astype(jnp.float32)[None, :, :]).reshape(R, D)

    def layer_step(l, x):
        vl = vecs_ref[l]                                   # (6, D) packed f32 vectors
        ln1_g, ln1_b = vl[0:1], vl[1:2]
        bo = vl[2:3]
        ln2_g, ln2_b = vl[3:4], vl[4:5]
        b2 = vl[5:6]

        # ---- PreNorm + multi-head self-attention ----
        xn = _layer_norm(x, ln1_g, ln1_b).astype(jnp.bfloat16)                 # (R, D)
        # One wide matmul for q,k,v of all heads. The 1/sqrt(dim_head) scale is
        # pre-baked into the q columns of wqkv (see init_params).
        qkv = jnp.dot(xn, wqkv_ref[l], preferred_element_type=jnp.float32)     # (R, 3H)
        q = qkv[:, 0 * H:1 * H].astype(jnp.bfloat16)
        k = qkv[:, 1 * H:2 * H].astype(jnp.bfloat16)
        v = qkv[:, 2 * H:3 * H].astype(jnp.bfloat16)

        ctx_parts = []
        for h in range(heads):                             # static, small head count
            sl = slice(h * dim_head, (h + 1) * dim_head)
            q_h = q[:, sl].reshape(Bb, N, dim_head)
            k_h = k[:, sl].reshape(Bb, N, dim_head)
            v_h = v[:, sl].reshape(Bb, N, dim_head)
            s = jnp.einsum('bne,bme->bnm', q_h, k_h,
                           preferred_element_type=jnp.float32)                 # (Bb, N, N) f32
            m = jnp.max(s, axis=-1, keepdims=True)
            e = jnp.exp(s - m)
            p = e * pl.reciprocal(jnp.sum(e, axis=-1, keepdims=True), approx=True)
            ctx_h = jnp.einsum('bnm,bme->bne', p.astype(jnp.bfloat16), v_h,
                               preferred_element_type=jnp.float32)             # (Bb, N, dh)
            ctx_parts.append(ctx_h.astype(jnp.bfloat16))

        # Repack heads onto the lane axis; head-sum is folded into the single
        # (R, H) @ (H, D) projection contraction (MXU f32 accumulator does the reduce).
        ctx = jnp.concatenate(ctx_parts, axis=-1).reshape(R, H)                # (R, H) bf16
        attn = jnp.dot(ctx, wo_ref[l], preferred_element_type=jnp.float32) + bo
        x = x + attn                                                           # residual (f32)

        # ---- PreNorm + FeedForward ----
        xn2 = _layer_norm(x, ln2_g, ln2_b).astype(jnp.bfloat16)
        h1 = jnp.dot(xn2, w1_ref[l], preferred_element_type=jnp.float32) + b1_ref[l]
        # tanh-GELU routes the transcendental to the EUP slot (review item);
        # ~1e-3 deviation from PyTorch's exact erf nn.GELU().
        h1 = jax.nn.gelu(h1, approximate=True).astype(jnp.bfloat16)
        h2 = jnp.dot(h1, w2_ref[l], preferred_element_type=jnp.float32) + b2
        return x + h2                                                          # residual (f32)

    if depth <= 4:
        # Small depth: static unroll keeps everything visible to the scheduler.
        for l in range(depth):
            x = layer_step(l, x)
    else:
        # Larger depth: fori_loop bounds vreg live ranges (dynamic ref[l] indexing).
        x = lax.fori_loop(0, depth, layer_step, x)

    # D=32 here -> masked 32/128-lane stores; at real scale keep D % 128 == 0 (or fold dims)
    # so the output store is lane-dense.
    o_ref[...] = x.reshape(Bb, N, D).astype(o_ref.dtype)


# ------------------------------ JAX wrapper ----------------------------------

def _pick_block_b(B, N):
    # Aim for a few hundred rows per grid step (amortize ~0.35us/step and fill MXU rows),
    # but keep >=2 grid steps on larger batches so v7x's two TensorCores both get work.
    bb = min(B, max(1, 256 // max(N, 1)))
    if bb == B and B % 2 == 0 and (B // 2) * N >= 128:
        bb = B // 2
    while B % bb:
        bb -= 1
    return bb


def tf_unit_forward(x, pe, params, *, heads, dim_head, block_b=None):
    B, N, D = x.shape
    if block_b is None:
        block_b = _pick_block_b(B, N)
    assert B % block_b == 0
    grid = (B // block_b,)

    weight_args = (params["wqkv"], params["wo"], params["w1"], params["w2"],
                   params["vecs"], params["b1"])

    def resident_spec(arr):
        zeros = (0,) * arr.ndim
        return pl.BlockSpec(arr.shape, lambda g, _z=zeros: _z)

    # Explicit scoped-VMEM budget: resident weights (+ double-buffer headroom),
    # activation block, and slack for in-kernel temporaries. Capped at 64 MiB
    # (safe on every generation incl. v7x).
    weight_bytes = sum(int(w.size) * w.dtype.itemsize for w in weight_args)
    act_bytes = block_b * N * D * 4
    vmem_limit = int(min(max(2 * weight_bytes + 32 * act_bytes + (8 << 20), 16 << 20),
                         64 << 20))

    kernel = partial(tf_unit_kernel, heads=heads, dim_head=dim_head)
    return pl.pallas_call(
        kernel,
        out_shape=jax.ShapeDtypeStruct((B, N, D), x.dtype),
        grid=grid,
        in_specs=[pl.BlockSpec((block_b, N, D), lambda g: (g, 0, 0)),   # x (batch block)
                  pl.BlockSpec((N, D), lambda g: (0, 0))]               # positional encoding
                 + [resident_spec(w) for w in weight_args],             # stacked per-layer weights
        out_specs=pl.BlockSpec((block_b, N, D), lambda g: (g, 0, 0)),
        compiler_params=pltpu.CompilerParams(
            dimension_semantics=("parallel",),
            vmem_limit_bytes=vmem_limit),
    )(x, pe, *weight_args)


# ---------------------------- parameter helpers -------------------------------

def sinusoidal_pe(max_len, d_model):
    pos = jnp.arange(max_len, dtype=jnp.float32)[:, None]
    div = jnp.exp(jnp.arange(0, d_model, 2, dtype=jnp.float32)
                  * (-jnp.log(10000.0) / d_model))
    pe = jnp.zeros((max_len, d_model), jnp.float32)
    pe = pe.at[:, 0::2].set(jnp.sin(pos * div))
    pe = pe.at[:, 1::2].set(jnp.cos(pos * div))
    return pe


def init_params(key, depth, dim, heads, dim_head, mlp_dim):
    H = heads * dim_head
    ks = jax.random.split(key, 4)

    def nrm(k, shape):
        return jax.random.normal(k, shape, jnp.float32) * 0.05

    # q,k,v for all heads fused on the output-column axis: (depth, dim, 3*H).
    wqkv = nrm(ks[0], (depth, dim, 3 * H))
    # Bake the attention scale 1/sqrt(dim_head) into the q output columns (free at runtime).
    wqkv = wqkv.at[:, :, :H].multiply(dim_head ** -0.5)

    # Packed small f32 vectors: [ln1_g, ln1_b, bo, ln2_g, ln2_b, b2] -> (depth, 6, dim).
    vecs = jnp.concatenate(
        [jnp.ones((depth, 1, dim), jnp.float32),    # ln1_g
         jnp.zeros((depth, 1, dim), jnp.float32),   # ln1_b
         jnp.zeros((depth, 1, dim), jnp.float32),   # bo
         jnp.ones((depth, 1, dim), jnp.float32),    # ln2_g
         jnp.zeros((depth, 1, dim), jnp.float32),   # ln2_b
         jnp.zeros((depth, 1, dim), jnp.float32)],  # b2
        axis=1)

    return dict(
        wqkv=wqkv.astype(jnp.bfloat16),                           # (depth, dim, 3*H)
        wo=nrm(ks[1], (depth, H, dim)).astype(jnp.bfloat16),      # (depth, H, dim)
        w1=nrm(ks[2], (depth, dim, mlp_dim)).astype(jnp.bfloat16),
        w2=nrm(ks[3], (depth, mlp_dim, dim)).astype(jnp.bfloat16),
        vecs=vecs,                                                # (depth, 6, dim) f32
        b1=jnp.zeros((depth, 1, mlp_dim), jnp.float32),
    )


# ---------------------------------- main --------------------------------------

if __name__ == "__main__":
    # TFUnit(hidden_dim=32, num_patches=8, depth=2, heads=4, mlp_dim=64,
    #        dim_head=8, dropout=0.0), batch=2
    B, N, D = 2, 8, 32
    depth, heads, dim_head, mlp_dim = 2, 4, 8, 64

    key = jax.random.PRNGKey(0)
    kx, kp = jax.random.split(key)
    x = jax.random.normal(kx, (B, N, D), jnp.float32)

    pe = sinusoidal_pe(N, D)
    params = init_params(kp, depth, D, heads, dim_head, mlp_dim)

    out = tf_unit_forward(x, pe, params, heads=heads, dim_head=dim_head)
    out = jax.block_until_ready(out)
    assert out.shape == (B, N, D)
    assert bool(jnp.all(jnp.isfinite(out)))
    print("KERNEL_OK")
</pallas_src>

<mosaic_0001>
module attributes {stable_mosaic.version = 11 : i64} {
  func.func @tf_unit_kernel(%arg0: i32, %arg1: memref<2x8x32xf32, #tpu.memory_space<vmem>>, %arg2: memref<8x32xf32, #tpu.memory_space<vmem>>, %arg3: memref<2x32x96xbf16, #tpu.memory_space<vmem>>, %arg4: memref<2x32x32xbf16, #tpu.memory_space<vmem>>, %arg5: memref<2x32x64xbf16, #tpu.memory_space<vmem>>, %arg6: memref<2x64x32xbf16, #tpu.memory_space<vmem>>, %arg7: memref<2x6x32xf32, #tpu.memory_space<vmem>>, %arg8: memref<2x1x64xf32, #tpu.memory_space<vmem>>, %arg9: memref<2x8x32xf32, #tpu.memory_space<vmem>>) attributes {dimension_semantics = [#tpu.dimension_semantics<parallel>], iteration_bounds = array<i64: 1>, scalar_prefetch = 0 : i64, scratch_operands = 0 : i64, tpu.core_type = #tpu.core_type<tc>, window_params = [{transform_indices = @transform_0, window_bounds = array<i64: 2, 8, 32>}, {pipeline_mode = #tpu.pipeline_mode<synchronous>, transform_indices = @transform_1, window_bounds = array<i64: 8, 32>}, {pipeline_mode = #tpu.pipeline_mode<synchronous>, transform_indices = @transform_2, window_bounds = array<i64: 2, 32, 96>}, {pipeline_mode = #tpu.pipeline_mode<synchronous>, transform_indices = @transform_3, window_bounds = array<i64: 2, 32, 32>}, {pipeline_mode = #tpu.pipeline_mode<synchronous>, transform_indices = @transform_4, window_bounds = array<i64: 2, 32, 64>}, {pipeline_mode = #tpu.pipeline_mode<synchronous>, transform_indices = @transform_5, window_bounds = array<i64: 2, 64, 32>}, {pipeline_mode = #tpu.pipeline_mode<synchronous>, transform_indices = @transform_6, window_bounds = array<i64: 2, 6, 32>}, {pipeline_mode = #tpu.pipeline_mode<synchronous>, transform_indices = @transform_7, window_bounds = array<i64: 2, 1, 64>}, {transform_indices = @transform_8, window_bounds = array<i64: 2, 8, 32>}]} {
    %c0 = arith.constant 0 : index
    %c0_0 = arith.constant 0 : index
    %c0_1 = arith.constant 0 : index
    %0 = vector.load %arg1[%c0, %c0_0, %c0_1] : memref<2x8x32xf32, #tpu.memory_space<vmem>>, vector<2x8x32xf32>
    %c0_2 = arith.constant 0 : index
    %c0_3 = arith.constant 0 : index
    %1 = vector.load %arg2[%c0_2, %c0_3] : memref<8x32xf32, #tpu.memory_space<vmem>>, vector<8x32xf32>
    %2 = vector.shape_cast %1 : vector<8x32xf32> to vector<1x8x32xf32>
    %3 = vector.broadcast %2 : vector<1x8x32xf32> to vector<2x8x32xf32>
    %4 = arith.addf %0, %3 : vector<2x8x32xf32>
    %5 = vector.shape_cast %4 : vector<2x8x32xf32> to vector<16x32xf32>
    %c0_4 = arith.constant 0 : index
    %c0_5 = arith.constant 0 : index
    %c0_6 = arith.constant 0 : index
    %6 = vector.load %arg7[%c0_4, %c0_5, %c0_6] : memref<2x6x32xf32, #tpu.memory_space<vmem>>, vector<1x6x32xf32>
    %7 = vector.shape_cast %6 : vector<1x6x32xf32> to vector<6x32xf32>
    %8 = vector.extract_strided_slice %7 {offsets = [0, 0], sizes = [1, 32], strides = [1, 1]} : vector<6x32xf32> to vector<1x32xf32>
    %9 = vector.extract_strided_slice %7 {offsets = [1, 0], sizes = [1, 32], strides = [1, 1]} : vector<6x32xf32> to vector<1x32xf32>
    %10 = vector.extract_strided_slice %7 {offsets = [2, 0], sizes = [1, 32], strides = [1, 1]} : vector<6x32xf32> to vector<1x32xf32>
    %11 = vector.extract_strided_slice %7 {offsets = [3, 0], sizes = [1, 32], strides = [1, 1]} : vector<6x32xf32> to vector<1x32xf32>
    %12 = vector.extract_strided_slice %7 {offsets = [4, 0], sizes = [1, 32], strides = [1, 1]} : vector<6x32xf32> to vector<1x32xf32>
    %13 = vector.extract_strided_slice %7 {offsets = [5, 0], sizes = [1, 32], strides = [1, 1]} : vector<6x32xf32> to vector<1x32xf32>
    %cst = arith.constant dense<0.000000e+00> : vector<16xf32>
    %14 = vector.multi_reduction <add>, %5, %cst [1] : vector<16x32xf32> to vector<16xf32>
    %15 = vector.shape_cast %14 : vector<16xf32> to vector<16x1xf32>
    %cst_7 = arith.constant 3.200000e+01 : f32
    %16 = vector.broadcast %cst_7 : f32 to vector<16x1xf32>
    %17 = arith.divf %15, %16 : vector<16x1xf32>
    %18 = vector.broadcast %17 : vector<16x1xf32> to vector<16x32xf32>
    %19 = arith.subf %5, %18 : vector<16x32xf32>
    %20 = arith.mulf %19, %19 : vector<16x32xf32>
    %cst_8 = arith.constant dense<0.000000e+00> : vector<16xf32>
    %21 = vector.multi_reduction <add>, %20, %cst_8 [1] : vector<16x32xf32> to vector<16xf32>
    %22 = vector.shape_cast %21 : vector<16xf32> to vector<16x1xf32>
    %cst_9 = arith.constant 3.200000e+01 : f32
    %23 = vector.broadcast %cst_9 : f32 to vector<16x1xf32>
    %24 = arith.divf %22, %23 : vector<16x1xf32>
    %25 = vector.broadcast %17 : vector<16x1xf32> to vector<16x32xf32>
    %26 = arith.subf %5, %25 : vector<16x32xf32>
    %cst_10 = arith.constant 9.99999974E-6 : f32
    %27 = vector.broadcast %cst_10 : f32 to vector<16x1xf32>
    %28 = arith.addf %24, %27 : vector<16x1xf32>
    %29 = math.rsqrt %28 : vector<16x1xf32>
    %30 = vector.broadcast %29 : vector<16x1xf32> to vector<16x32xf32>
    %31 = arith.mulf %26, %30 : vector<16x32xf32>
    %32 = vector.broadcast %8 : vector<1x32xf32> to vector<16x32xf32>
    %33 = arith.mulf %31, %32 : vector<16x32xf32>
    %34 = vector.broadcast %9 : vector<1x32xf32> to vector<16x32xf32>
    %35 = arith.addf %33, %34 : vector<16x32xf32>
    %36 = arith.truncf %35 : vector<16x32xf32> to vector<16x32xbf16>
    %c0_11 = arith.constant 0 : index
    %c0_12 = arith.constant 0 : index
    %c0_13 = arith.constant 0 : index
    %37 = vector.load %arg3[%c0_11, %c0_12, %c0_13] : memref<2x32x96xbf16, #tpu.memory_space<vmem>>, vector<1x32x96xbf16>
    %38 = vector.shape_cast %37 : vector<1x32x96xbf16> to vector<32x96xbf16>
    %cst_14 = arith.constant dense<0.000000e+00> : vector<16x96xf32>
    %39 = tpu.matmul %36, %38, %cst_14 {dimension_numbers = #tpu.dot_dimension_numbers<[1], [0], [0], [1], [0, 0, 1, 1], [], []>} : vector<16x32xbf16>, vector<32x96xbf16>, vector<16x96xf32> -> vector<16x96xf32>
    %40 = vector.extract_strided_slice %39 {offsets = [0, 0], sizes = [16, 32], strides = [1, 1]} : vector<16x96xf32> to vector<16x32xf32>
    %41 = arith.truncf %40 : vector<16x32xf32> to vector<16x32xbf16>
    %42 = vector.extract_strided_slice %39 {offsets = [0, 32], sizes = [16, 32], strides = [1, 1]} : vector<16x96xf32> to vector<16x32xf32>
    %43 = arith.truncf %42 : vector<16x32xf32> to vector<16x32xbf16>
    %44 = vector.extract_strided_slice %39 {offsets = [0, 64], sizes = [16, 32], strides = [1, 1]} : vector<16x96xf32> to vector<16x32xf32>
    %45 = arith.truncf %44 : vector<16x32xf32> to vector<16x32xbf16>
    %46 = vector.extract_strided_slice %41 {offsets = [0, 0], sizes = [16, 8], strides = [1, 1]} : vector<16x32xbf16> to vector<16x8xbf16>
    %47 = vector.shape_cast %46 : vector<16x8xbf16> to vector<2x8x8xbf16>
    %48 = vector.extract_strided_slice %43 {offsets = [0, 0], sizes = [16, 8], strides = [1, 1]} : vector<16x32xbf16> to vector<16x8xbf16>
    %49 = vector.shape_cast %48 : vector<16x8xbf16> to vector<2x8x8xbf16>
    %50 = vector.extract_strided_slice %45 {offsets = [0, 0], sizes = [16, 8], strides = [1, 1]} : vector<16x32xbf16> to vector<16x8xbf16>
    %51 = vector.shape_cast %50 : vector<16x8xbf16> to vector<2x8x8xbf16>
    "tpu.trace_start"() <{level = 10 : i32, message = "bne,bme->bnm"}> : () -> ()
    %cst_15 = arith.constant dense<0.000000e+00> : vector<2x8x8xf32>
    %52 = tpu.matmul %47, %49, %cst_15 {dimension_numbers = #tpu.dot_dimension_numbers<[2], [2], [1], [1], [0, 0, 0, 1, 1, 1], [0], [0]>} : vector<2x8x8xbf16>, vector<2x8x8xbf16>, vector<2x8x8xf32> -> vector<2x8x8xf32>
    "tpu.trace_stop"() : () -> ()
    %cst_16 = arith.constant dense<0xFF800000> : vector<2x8xf32>
    %53 = vector.multi_reduction <maximumf>, %52, %cst_16 [2] : vector<2x8x8xf32> to vector<2x8xf32>
    %54 = vector.shape_cast %53 : vector<2x8xf32> to vector<2x8x1xf32>
    %55 = vector.broadcast %54 : vector<2x8x1xf32> to vector<2x8x8xf32>
    %56 = arith.subf %52, %55 : vector<2x8x8xf32>
    %57 = math.exp %56 : vector<2x8x8xf32>
    %cst_17 = arith.constant dense<0.000000e+00> : vector<2x8xf32>
    %58 = vector.multi_reduction <add>, %57, %cst_17 [2] : vector<2x8x8xf32> to vector<2x8xf32>
    %59 = vector.shape_cast %58 : vector<2x8xf32> to vector<2x8x1xf32>
    %60 = tpu.reciprocal %59 {approx = true} : vector<2x8x1xf32> -> vector<2x8x1xf32>
    %61 = vector.broadcast %60 : vector<2x8x1xf32> to vector<2x8x8xf32>
    %62 = arith.mulf %57, %61 : vector<2x8x8xf32>
    %63 = arith.truncf %62 : vector<2x8x8xf32> to vector<2x8x8xbf16>
    "tpu.trace_start"() <{level = 10 : i32, message = "bnm,bme->bne"}> : () -> ()
    %cst_18 = arith.constant dense<0.000000e+00> : vector<2x8x8xf32>
    %64 = tpu.matmul %63, %51, %cst_18 {dimension_numbers = #tpu.dot_dimension_numbers<[2], [1], [1], [2], [0, 0, 0, 1, 1, 2], [0], [0]>} : vector<2x8x8xbf16>, vector<2x8x8xbf16>, vector<2x8x8xf32> -> vector<2x8x8xf32>
    "tpu.trace_stop"() : () -> ()
    %65 = arith.truncf %64 : vector<2x8x8xf32> to vector<2x8x8xbf16>
    %66 = vector.extract_strided_slice %41 {offsets = [0, 8], sizes = [16, 8], strides = [1, 1]} : vector<16x32xbf16> to vector<16x8xbf16>
    %67 = vector.shape_cast %66 : vector<16x8xbf16> to vector<2x8x8xbf16>
    %68 = vector.extract_strided_slice %43 {offsets = [0, 8], sizes = [16, 8], strides = [1, 1]} : vector<16x32xbf16> to vector<16x8xbf16>
    %69 = vector.shape_cast %68 : vector<16x8xbf16> to vector<2x8x8xbf16>
    %70 = vector.extract_strided_slice %45 {offsets = [0, 8], sizes = [16, 8], strides = [1, 1]} : vector<16x32xbf16> to vector<16x8xbf16>
    %71 = vector.shape_cast %70 : vector<16x8xbf16> to vector<2x8x8xbf16>
    "tpu.trace_start"() <{level = 10 : i32, message = "bne,bme->bnm"}> : () -> ()
    %cst_19 = arith.constant dense<0.000000e+00> : vector<2x8x8xf32>
    %72 = tpu.matmul %67, %69, %cst_19 {dimension_numbers = #tpu.dot_dimension_numbers<[2], [2], [1], [1], [0, 0, 0, 1, 1, 1], [0], [0]>} : vector<2x8x8xbf16>, vector<2x8x8xbf16>, vector<2x8x8xf32> -> vector<2x8x8xf32>
    "tpu.trace_stop"() : () -> ()
    %cst_20 = arith.constant dense<0xFF800000> : vector<2x8xf32>
    %73 = vector.multi_reduction <maximumf>, %72, %cst_20 [2] : vector<2x8x8xf32> to vector<2x8xf32>
    %74 = vector.shape_cast %73 : vector<2x8xf32> to vector<2x8x1xf32>
    %75 = vector.broadcast %74 : vector<2x8x1xf32> to vector<2x8x8xf32>
    %76 = arith.subf %72, %75 : vector<2x8x8xf32>
    %77 = math.exp %76 : vector<2x8x8xf32>
    %cst_21 = arith.constant dense<0.000000e+00> : vector<2x8xf32>
    %78 = vector.multi_reduction <add>, %77, %cst_21 [2] : vector<2x8x8xf32> to vector<2x8xf32>
    %79 = vector.shape_cast %78 : vector<2x8xf32> to vector<2x8x1xf32>
    %80 = tpu.reciprocal %79 {approx = true} : vector<2x8x1xf32> -> vector<2x8x1xf32>
    %81 = vector.broadcast %80 : vector<2x8x1xf32> to vector<2x8x8xf32>
    %82 = arith.mulf %77, %81 : vector<2x8x8xf32>
    %83 = arith.truncf %82 : vector<2x8x8xf32> to vector<2x8x8xbf16>
    "tpu.trace_start"() <{level = 10 : i32, message = "bnm,bme->bne"}> : () -> ()
    %cst_22 = arith.constant dense<0.000000e+00> : vector<2x8x8xf32>
    %84 = tpu.matmul %83, %71, %cst_22 {dimension_numbers = #tpu.dot_dimension_numbers<[2], [1], [1], [2], [0, 0, 0, 1, 1, 2], [0], [0]>} : vector<2x8x8xbf16>, vector<2x8x8xbf16>, vector<2x8x8xf32> -> vector<2x8x8xf32>
    "tpu.trace_stop"() : () -> ()
    %85 = arith.truncf %84 : vector<2x8x8xf32> to vector<2x8x8xbf16>
    %86 = vector.extract_strided_slice %41 {offsets = [0, 16], sizes = [16, 8], strides = [1, 1]} : vector<16x32xbf16> to vector<16x8xbf16>
    %87 = vector.shape_cast %86 : vector<16x8xbf16> to vector<2x8x8xbf16>
    %88 = vector.extract_strided_slice %43 {offsets = [0, 16], sizes = [16, 8], strides = [1, 1]} : vector<16x32xbf16> to vector<16x8xbf16>
    %89 = vector.shape_cast %88 : vector<16x8xbf16> to vector<2x8x8xbf16>
    %90 = vector.extract_strided_slice %45 {offsets = [0, 16], sizes = [16, 8], strides = [1, 1]} : vector<16x32xbf16> to vector<16x8xbf16>
    %91 = vector.shape_cast %90 : vector<16x8xbf16> to vector<2x8x8xbf16>
    "tpu.trace_start"() <{level = 10 : i32, message = "bne,bme->bnm"}> : () -> ()
    %cst_23 = arith.constant dense<0.000000e+00> : vector<2x8x8xf32>
    %92 = tpu.matmul %87, %89, %cst_23 {dimension_numbers = #tpu.dot_dimension_numbers<[2], [2], [1], [1], [0, 0, 0, 1, 1, 1], [0], [0]>} : vector<2x8x8xbf16>, vector<2x8x8xbf16>, vector<2x8x8xf32> -> vector<2x8x8xf32>
    "tpu.trace_stop"() : () -> ()
    %cst_24 = arith.constant dense<0xFF800000> : vector<2x8xf32>
    %93 = vector.multi_reduction <maximumf>, %92, %cst_24 [2] : vector<2x8x8xf32> to vector<2x8xf32>
    %94 = vector.shape_cast %93 : vector<2x8xf32> to vector<2x8x1xf32>
    %95 = vector.broadcast %94 : vector<2x8x1xf32> to vector<2x8x8xf32>
    %96 = arith.subf %92, %95 : vector<2x8x8xf32>
    %97 = math.exp %96 : vector<2x8x8xf32>
    %cst_25 = arith.constant dense<0.000000e+00> : vector<2x8xf32>
    %98 = vector.multi_reduction <add>, %97, %cst_25 [2] : vector<2x8x8xf32> to vector<2x8xf32>
    %99 = vector.shape_cast %98 : vector<2x8xf32> to vector<2x8x1xf32>
    %100 = tpu.reciprocal %99 {approx = true} : vector<2x8x1xf32> -> vector<2x8x1xf32>
    %101 = vector.broadcast %100 : vector<2x8x1xf32> to vector<2x8x8xf32>
    %102 = arith.mulf %97, %101 : vector<2x8x8xf32>
    %103 = arith.truncf %102 : vector<2x8x8xf32> to vector<2x8x8xbf16>
    "tpu.trace_start"() <{level = 10 : i32, message = "bnm,bme->bne"}> : () -> ()
    %cst_26 = arith.constant dense<0.000000e+00> : vector<2x8x8xf32>
    %104 = tpu.matmul %103, %91, %cst_26 {dimension_numbers = #tpu.dot_dimension_numbers<[2], [1], [1], [2], [0, 0, 0, 1, 1, 2], [0], [0]>} : vector<2x8x8xbf16>, vector<2x8x8xbf16>, vector<2x8x8xf32> -> vector<2x8x8xf32>
    "tpu.trace_stop"() : () -> ()
    %105 = arith.truncf %104 : vector<2x8x8xf32> to vector<2x8x8xbf16>
    %106 = vector.extract_strided_slice %41 {offsets = [0, 24], sizes = [16, 8], strides = [1, 1]} : vector<16x32xbf16> to vector<16x8xbf16>
    %107 = vector.shape_cast %106 : vector<16x8xbf16> to vector<2x8x8xbf16>
    %108 = vector.extract_strided_slice %43 {offsets = [0, 24], sizes = [16, 8], strides = [1, 1]} : vector<16x32xbf16> to vector<16x8xbf16>
    %109 = vector.shape_cast %108 : vector<16x8xbf16> to vector<2x8x8xbf16>
    %110 = vector.extract_strided_slice %45 {offsets = [0, 24], sizes = [16, 8], strides = [1, 1]} : vector<16x32xbf16> to vector<16x8xbf16>
    %111 = vector.shape_cast %110 : vector<16x8xbf16> to vector<2x8x8xbf16>
    "tpu.trace_start"() <{level = 10 : i32, message = "bne,bme->bnm"}> : () -> ()
    %cst_27 = arith.constant dense<0.000000e+00> : vector<2x8x8xf32>
    %112 = tpu.matmul %107, %109, %cst_27 {dimension_numbers = #tpu.dot_dimension_numbers<[2], [2], [1], [1], [0, 0, 0, 1, 1, 1], [0], [0]>} : vector<2x8x8xbf16>, vector<2x8x8xbf16>, vector<2x8x8xf32> -> vector<2x8x8xf32>
    "tpu.trace_stop"() : () -> ()
    %cst_28 = arith.constant dense<0xFF800000> : vector<2x8xf32>
    %113 = vector.multi_reduction <maximumf>, %112, %cst_28 [2] : vector<2x8x8xf32> to vector<2x8xf32>
    %114 = vector.shape_cast %113 : vector<2x8xf32> to vector<2x8x1xf32>
    %115 = vector.broadcast %114 : vector<2x8x1xf32> to vector<2x8x8xf32>
    %116 = arith.subf %112, %115 : vector<2x8x8xf32>
    %117 = math.exp %116 : vector<2x8x8xf32>
    %cst_29 = arith.constant dense<0.000000e+00> : vector<2x8xf32>
    %118 = vector.multi_reduction <add>, %117, %cst_29 [2] : vector<2x8x8xf32> to vector<2x8xf32>
    %119 = vector.shape_cast %118 : vector<2x8xf32> to vector<2x8x1xf32>
    %120 = tpu.reciprocal %119 {approx = true} : vector<2x8x1xf32> -> vector<2x8x1xf32>
    %121 = vector.broadcast %120 : vector<2x8x1xf32> to vector<2x8x8xf32>
    %122 = arith.mulf %117, %121 : vector<2x8x8xf32>
    %123 = arith.truncf %122 : vector<2x8x8xf32> to vector<2x8x8xbf16>
    "tpu.trace_start"() <{level = 10 : i32, message = "bnm,bme->bne"}> : () -> ()
    %cst_30 = arith.constant dense<0.000000e+00> : vector<2x8x8xf32>
    %124 = tpu.matmul %123, %111, %cst_30 {dimension_numbers = #tpu.dot_dimension_numbers<[2], [1], [1], [2], [0, 0, 0, 1, 1, 2], [0], [0]>} : vector<2x8x8xbf16>, vector<2x8x8xbf16>, vector<2x8x8xf32> -> vector<2x8x8xf32>
    "tpu.trace_stop"() : () -> ()
    %125 = arith.truncf %124 : vector<2x8x8xf32> to vector<2x8x8xbf16>
    %126 = tpu.concatenate %65, %85, %105, %125 in 2 : vector<2x8x8xbf16>, vector<2x8x8xbf16>, vector<2x8x8xbf16>, vector<2x8x8xbf16> -> vector<2x8x32xbf16>
    %127 = vector.shape_cast %126 : vector<2x8x32xbf16> to vector<16x32xbf16>
    %c0_31 = arith.constant 0 : index
    %c0_32 = arith.constant 0 : index
    %c0_33 = arith.constant 0 : index
    %128 = vector.load %arg4[%c0_31, %c0_32, %c0_33] : memref<2x32x32xbf16, #tpu.memory_space<vmem>>, vector<1x32x32xbf16>
    %129 = vector.shape_cast %128 : vector<1x32x32xbf16> to vector<32x32xbf16>
    %cst_34 = arith.constant dense<0.000000e+00> : vector<16x32xf32>
    %130 = tpu.matmul %127, %129, %cst_34 {dimension_numbers = #tpu.dot_dimension_numbers<[1], [0], [0], [1], [0, 0, 1, 1], [], []>} : vector<16x32xbf16>, vector<32x32xbf16>, vector<16x32xf32> -> vector<16x32xf32>
    %131 = vector.broadcast %10 : vector<1x32xf32> to vector<16x32xf32>
    %132 = arith.addf %130, %131 : vector<16x32xf32>
    %133 = arith.addf %5, %132 : vector<16x32xf32>
    %cst_35 = arith.constant dense<0.000000e+00> : vector<16xf32>
    %134 = vector.multi_reduction <add>, %133, %cst_35 [1] : vector<16x32xf32> to vector<16xf32>
    %135 = vector.shape_cast %134 : vector<16xf32> to vector<16x1xf32>
    %cst_36 = arith.constant 3.200000e+01 : f32
    %136 = vector.broadcast %cst_36 : f32 to vector<16x1xf32>
    %137 = arith.divf %135, %136 : vector<16x1xf32>
    %138 = vector.broadcast %137 : vector<16x1xf32> to vector<16x32xf32>
    %139 = arith.subf %133, %138 : vector<16x32xf32>
    %140 = arith.mulf %139, %139 : vector<16x32xf32>
    %cst_37 = arith.constant dense<0.000000e+00> : vector<16xf32>
    %141 = vector.multi_reduction <add>, %140, %cst_37 [1] : vector<16x32xf32> to vector<16xf32>
    %142 = vector.shape_cast %141 : vector<16xf32> to vector<16x1xf32>
    %cst_38 = arith.constant 3.200000e+01 : f32
    %143 = vector.broadcast %cst_38 : f32 to vector<16x1xf32>
    %144 = arith.divf %142, %143 : vector<16x1xf32>
    %145 = vector.broadcast %137 : vector<16x1xf32> to vector<16x32xf32>
    %146 = arith.subf %133, %145 : vector<16x32xf32>
    %cst_39 = arith.constant 9.99999974E-6 : f32
    %147 = vector.broadcast %cst_39 : f32 to vector<16x1xf32>
    %148 = arith.addf %144, %147 : vector<16x1xf32>
    %149 = math.rsqrt %148 : vector<16x1xf32>
    %150 = vector.broadcast %149 : vector<16x1xf32> to vector<16x32xf32>
    %151 = arith.mulf %146, %150 : vector<16x32xf32>
    %152 = vector.broadcast %11 : vector<1x32xf32> to vector<16x32xf32>
    %153 = arith.mulf %151, %152 : vector<16x32xf32>
    %154 = vector.broadcast %12 : vector<1x32xf32> to vector<16x32xf32>
    %155 = arith.addf %153, %154 : vector<16x32xf32>
    %156 = arith.truncf %155 : vector<16x32xf32> to vector<16x32xbf16>
    %c0_40 = arith.constant 0 : index
    %c0_41 = arith.constant 0 : index
    %c0_42 = arith.constant 0 : index
    %157 = vector.load %arg5[%c0_40, %c0_41, %c0_42] : memref<2x32x64xbf16, #tpu.memory_space<vmem>>, vector<1x32x64xbf16>
    %158 = vector.shape_cast %157 : vector<1x32x64xbf16> to vector<32x64xbf16>
    %cst_43 = arith.constant dense<0.000000e+00> : vector<16x64xf32>
    %159 = tpu.matmul %156, %158, %cst_43 {dimension_numbers = #tpu.dot_dimension_numbers<[1], [0], [0], [1], [0, 0, 1, 1], [], []>} : vector<16x32xbf16>, vector<32x64xbf16>, vector<16x64xf32> -> vector<16x64xf32>
    %c0_44 = arith.constant 0 : index
    %c0_45 = arith.constant 0 : index
    %c0_46 = arith.constant 0 : index
    %160 = vector.load %arg8[%c0_44, %c0_45, %c0_46] : memref<2x1x64xf32, #tpu.memory_space<vmem>>, vector<1x1x64xf32>
    %161 = vector.shape_cast %160 : vector<1x1x64xf32> to vector<1x64xf32>
    %162 = vector.broadcast %161 : vector<1x64xf32> to vector<16x64xf32>
    %163 = arith.addf %159, %162 : vector<16x64xf32>
    %164 = arith.mulf %163, %163 : vector<16x64xf32>
    %165 = arith.mulf %163, %164 : vector<16x64xf32>
    %cst_47 = arith.constant 4.471500e-02 : f32
    %166 = vector.broadcast %cst_47 : f32 to vector<16x64xf32>
    %167 = arith.mulf %166, %165 : vector<16x64xf32>
    %168 = arith.addf %163, %167 : vector<16x64xf32>
    %cst_48 = arith.constant 0.797884583 : f32
    %169 = vector.broadcast %cst_48 : f32 to vector<16x64xf32>
    %170 = arith.mulf %169, %168 : vector<16x64xf32>
    %171 = math.tanh %170 : vector<16x64xf32>
    %cst_49 = arith.constant 1.000000e+00 : f32
    %172 = vector.broadcast %cst_49 : f32 to vector<16x64xf32>
    %173 = arith.addf %172, %171 : vector<16x64xf32>
    %cst_50 = arith.constant 5.000000e-01 : f32
    %174 = vector.broadcast %cst_50 : f32 to vector<16x64xf32>
    %175 = arith.mulf %174, %173 : vector<16x64xf32>
    %176 = arith.mulf %163, %175 : vector<16x64xf32>
    %177 = arith.truncf %176 : vector<16x64xf32> to vector<16x64xbf16>
    %c0_51 = arith.constant 0 : index
    %c0_52 = arith.constant 0 : index
    %c0_53 = arith.constant 0 : index
    %178 = vector.load %arg6[%c0_51, %c0_52, %c0_53] : memref<2x64x32xbf16, #tpu.memory_space<vmem>>, vector<1x64x32xbf16>
    %179 = vector.shape_cast %178 : vector<1x64x32xbf16> to vector<64x32xbf16>
    %cst_54 = arith.constant dense<0.000000e+00> : vector<16x32xf32>
    %180 = tpu.matmul %177, %179, %cst_54 {dimension_numbers = #tpu.dot_dimension_numbers<[1], [0], [0], [1], [0, 0, 1, 1], [], []>} : vector<16x64xbf16>, vector<64x32xbf16>, vector<16x32xf32> -> vector<16x32xf32>
    %181 = vector.broadcast %13 : vector<1x32xf32> to vector<16x32xf32>
    %182 = arith.addf %180, %181 : vector<16x32xf32>
    %183 = arith.addf %133, %182 : vector<16x32xf32>
    %c1 = arith.constant 1 : index
    %c0_55 = arith.constant 0 : index
    %c0_56 = arith.constant 0 : index
    %184 = vector.load %arg7[%c1, %c0_55, %c0_56] : memref<2x6x32xf32, #tpu.memory_space<vmem>>, vector<1x6x32xf32>
    %185 = vector.shape_cast %184 : vector<1x6x32xf32> to vector<6x32xf32>
    %186 = vector.extract_strided_slice %185 {offsets = [0, 0], sizes = [1, 32], strides = [1, 1]} : vector<6x32xf32> to vector<1x32xf32>
    %187 = vector.extract_strided_slice %185 {offsets = [1, 0], sizes = [1, 32], strides = [1, 1]} : vector<6x32xf32> to vector<1x32xf32>
    %188 = vector.extract_strided_slice %185 {offsets = [2, 0], sizes = [1, 32], strides = [1, 1]} : vector<6x32xf32> to vector<1x32xf32>
    %189 = vector.extract_strided_slice %185 {offsets = [3, 0], sizes = [1, 32], strides = [1, 1]} : vector<6x32xf32> to vector<1x32xf32>
    %190 = vector.extract_strided_slice %185 {offsets = [4, 0], sizes = [1, 32], strides = [1, 1]} : vector<6x32xf32> to vector<1x32xf32>
    %191 = vector.extract_strided_slice %185 {offsets = [5, 0], sizes = [1, 32], strides = [1, 1]} : vector<6x32xf32> to vector<1x32xf32>
    %cst_57 = arith.constant dense<0.000000e+00> : vector<16xf32>
    %192 = vector.multi_reduction <add>, %183, %cst_57 [1] : vector<16x32xf32> to vector<16xf32>
    %193 = vector.shape_cast %192 : vector<16xf32> to vector<16x1xf32>
    %cst_58 = arith.constant 3.200000e+01 : f32
    %194 = vector.broadcast %cst_58 : f32 to vector<16x1xf32>
    %195 = arith.divf %193, %194 : vector<16x1xf32>
    %196 = vector.broadcast %195 : vector<16x1xf32> to vector<16x32xf32>
    %197 = arith.subf %183, %196 : vector<16x32xf32>
    %198 = arith.mulf %197, %197 : vector<16x32xf32>
    %cst_59 = arith.constant dense<0.000000e+00> : vector<16xf32>
    %199 = vector.multi_reduction <add>, %198, %cst_59 [1] : vector<16x32xf32> to vector<16xf32>
    %200 = vector.shape_cast %199 : vector<16xf32> to vector<16x1xf32>
    %cst_60 = arith.constant 3.200000e+01 : f32
    %201 = vector.broadcast %cst_60 : f32 to vector<16x1xf32>
    %202 = arith.divf %200, %201 : vector<16x1xf32>
    %203 = vector.broadcast %195 : vector<16x1xf32> to vector<16x32xf32>
    %204 = arith.subf %183, %203 : vector<16x32xf32>
    %cst_61 = arith.constant 9.99999974E-6 : f32
    %205 = vector.broadcast %cst_61 : f32 to vector<16x1xf32>
    %206 = arith.addf %202, %205 : vector<16x1xf32>
    %207 = math.rsqrt %206 : vector<16x1xf32>
    %208 = vector.broadcast %207 : vector<16x1xf32> to vector<16x32xf32>
    %209 = arith.mulf %204, %208 : vector<16x32xf32>
    %210 = vector.broadcast %186 : vector<1x32xf32> to vector<16x32xf32>
    %211 = arith.mulf %209, %210 : vector<16x32xf32>
    %212 = vector.broadcast %187 : vector<1x32xf32> to vector<16x32xf32>
    %213 = arith.addf %211, %212 : vector<16x32xf32>
    %214 = arith.truncf %213 : vector<16x32xf32> to vector<16x32xbf16>
    %c1_62 = arith.constant 1 : index
    %c0_63 = arith.constant 0 : index
    %c0_64 = arith.constant 0 : index
    %215 = vector.load %arg3[%c1_62, %c0_63, %c0_64] : memref<2x32x96xbf16, #tpu.memory_space<vmem>>, vector<1x32x96xbf16>
    %216 = vector.shape_cast %215 : vector<1x32x96xbf16> to vector<32x96xbf16>
    %cst_65 = arith.constant dense<0.000000e+00> : vector<16x96xf32>
    %217 = tpu.matmul %214, %216, %cst_65 {dimension_numbers = #tpu.dot_dimension_numbers<[1], [0], [0], [1], [0, 0, 1, 1], [], []>} : vector<16x32xbf16>, vector<32x96xbf16>, vector<16x96xf32> -> vector<16x96xf32>
    %218 = vector.extract_strided_slice %217 {offsets = [0, 0], sizes = [16, 32], strides = [1, 1]} : vector<16x96xf32> to vector<16x32xf32>
    %219 = arith.truncf %218 : vector<16x32xf32> to vector<16x32xbf16>
    %220 = vector.extract_strided_slice %217 {offsets = [0, 32], sizes = [16, 32], strides = [1, 1]} : vector<16x96xf32> to vector<16x32xf32>
    %221 = arith.truncf %220 : vector<16x32xf32> to vector<16x32xbf16>
    %222 = vector.extract_strided_slice %217 {offsets = [0, 64], sizes = [16, 32], strides = [1, 1]} : vector<16x96xf32> to vector<16x32xf32>
    %223 = arith.truncf %222 : vector<16x32xf32> to vector<16x32xbf16>
    %224 = vector.extract_strided_slice %219 {offsets = [0, 0], sizes = [16, 8], strides = [1, 1]} : vector<16x32xbf16> to vector<16x8xbf16>
    %225 = vector.shape_cast %224 : vector<16x8xbf16> to vector<2x8x8xbf16>
    %226 = vector.extract_strided_slice %221 {offsets = [0, 0], sizes = [16, 8], strides = [1, 1]} : vector<16x32xbf16> to vector<16x8xbf16>
    %227 = vector.shape_cast %226 : vector<16x8xbf16> to vector<2x8x8xbf16>
    %228 = vector.extract_strided_slice %223 {offsets = [0, 0], sizes = [16, 8], strides = [1, 1]} : vector<16x32xbf16> to vector<16x8xbf16>
    %229 = vector.shape_cast %228 : vector<16x8xbf16> to vector<2x8x8xbf16>
    "tpu.trace_start"() <{level = 10 : i32, message = "bne,bme->bnm"}> : () -> ()
    %cst_66 = arith.constant dense<0.000000e+00> : vector<2x8x8xf32>
    %230 = tpu.matmul %225, %227, %cst_66 {dimension_numbers = #tpu.dot_dimension_numbers<[2], [2], [1], [1], [0, 0, 0, 1, 1, 1], [0], [0]>} : vector<2x8x8xbf16>, vector<2x8x8xbf16>, vector<2x8x8xf32> -> vector<2x8x8xf32>
    "tpu.trace_stop"() : () -> ()
    %cst_67 = arith.constant dense<0xFF800000> : vector<2x8xf32>
    %231 = vector.multi_reduction <maximumf>, %230, %cst_67 [2] : vector<2x8x8xf32> to vector<2x8xf32>
    %232 = vector.shape_cast %231 : vector<2x8xf32> to vector<2x8x1xf32>
    %233 = vector.broadcast %232 : vector<2x8x1xf32> to vector<2x8x8xf32>
    %234 = arith.subf %230, %233 : vector<2x8x8xf32>
    %235 = math.exp %234 : vector<2x8x8xf32>
    %cst_68 = arith.constant dense<0.000000e+00> : vector<2x8xf32>
    %236 = vector.multi_reduction <add>, %235, %cst_68 [2] : vector<2x8x8xf32> to vector<2x8xf32>
    %237 = vector.shape_cast %236 : vector<2x8xf32> to vector<2x8x1xf32>
    %238 = tpu.reciprocal %237 {approx = true} : vector<2x8x1xf32> -> vector<2x8x1xf32>
    %239 = vector.broadcast %238 : vector<2x8x1xf32> to vector<2x8x8xf32>
    %240 = arith.mulf %235, %239 : vector<2x8x8xf32>
    %241 = arith.truncf %240 : vector<2x8x8xf32> to vector<2x8x8xbf16>
    "tpu.trace_start"() <{level = 10 : i32, message = "bnm,bme->bne"}> : () -> ()
    %cst_69 = arith.constant dense<0.000000e+00> : vector<2x8x8xf32>
    %242 = tpu.matmul %241, %229, %cst_69 {dimension_numbers = #tpu.dot_dimension_numbers<[2], [1], [1], [2], [0, 0, 0, 1, 1, 2], [0], [0]>} : vector<2x8x8xbf16>, vector<2x8x8xbf16>, vector<2x8x8xf32> -> vector<2x8x8xf32>
    "tpu.trace_stop"() : () -> ()
    %243 = arith.truncf %242 : vector<2x8x8xf32> to vector<2x8x8xbf16>
    %244 = vector.extract_strided_slice %219 {offsets = [0, 8], sizes = [16, 8], strides = [1, 1]} : vector<16x32xbf16> to vector<16x8xbf16>
    %245 = vector.shape_cast %244 : vector<16x8xbf16> to vector<2x8x8xbf16>
    %246 = vector.extract_strided_slice %221 {offsets = [0, 8], sizes = [16, 8], strides = [1, 1]} : vector<16x32xbf16> to vector<16x8xbf16>
    %247 = vector.shape_cast %246 : vector<16x8xbf16> to vector<2x8x8xbf16>
    %248 = vector.extract_strided_slice %223 {offsets = [0, 8], sizes = [16, 8], strides = [1, 1]} : vector<16x32xbf16> to vector<16x8xbf16>
    %249 = vector.shape_cast %248 : vector<16x8xbf16> to vector<2x8x8xbf16>
    "tpu.trace_start"() <{level = 10 : i32, message = "bne,bme->bnm"}> : () -> ()
    %cst_70 = arith.constant dense<0.000000e+00> : vector<2x8x8xf32>
    %250 = tpu.matmul %245, %247, %cst_70 {dimension_numbers = #tpu.dot_dimension_numbers<[2], [2], [1], [1], [0, 0, 0, 1, 1, 1], [0], [0]>} : vector<2x8x8xbf16>, vector<2x8x8xbf16>, vector<2x8x8xf32> -> vector<2x8x8xf32>
    "tpu.trace_stop"() : () -> ()
    %cst_71 = arith.constant dense<0xFF800000> : vector<2x8xf32>
    %251 = vector.multi_reduction <maximumf>, %250, %cst_71 [2] : vector<2x8x8xf32> to vector<2x8xf32>
    %252 = vector.shape_cast %251 : vector<2x8xf32> to vector<2x8x1xf32>
    %253 = vector.broadcast %252 : vector<2x8x1xf32> to vector<2x8x8xf32>
    %254 = arith.subf %250, %253 : vector<2x8x8xf32>
    %255 = math.exp %254 : vector<2x8x8xf32>
    %cst_72 = arith.constant dense<0.000000e+00> : vector<2x8xf32>
    %256 = vector.multi_reduction <add>, %255, %cst_72 [2] : vector<2x8x8xf32> to vector<2x8xf32>
    %257 = vector.shape_cast %256 : vector<2x8xf32> to vector<2x8x1xf32>
    %258 = tpu.reciprocal %257 {approx = true} : vector<2x8x1xf32> -> vector<2x8x1xf32>
    %259 = vector.broadcast %258 : vector<2x8x1xf32> to vector<2x8x8xf32>
    %260 = arith.mulf %255, %259 : vector<2x8x8xf32>
    %261 = arith.truncf %260 : vector<2x8x8xf32> to vector<2x8x8xbf16>
    "tpu.trace_start"() <{level = 10 : i32, message = "bnm,bme->bne"}> : () -> ()
    %cst_73 = arith.constant dense<0.000000e+00> : vector<2x8x8xf32>
    %262 = tpu.matmul %261, %249, %cst_73 {dimension_numbers = #tpu.dot_dimension_numbers<[2], [1], [1], [2], [0, 0, 0, 1, 1, 2], [0], [0]>} : vector<2x8x8xbf16>, vector<2x8x8xbf16>, vector<2x8x8xf32> -> vector<2x8x8xf32>
    "tpu.trace_stop"() : () -> ()
    %263 = arith.truncf %262 : vector<2x8x8xf32> to vector<2x8x8xbf16>
    %264 = vector.extract_strided_slice %219 {offsets = [0, 16], sizes = [16, 8], strides = [1, 1]} : vector<16x32xbf16> to vector<16x8xbf16>
    %265 = vector.shape_cast %264 : vector<16x8xbf16> to vector<2x8x8xbf16>
    %266 = vector.extract_strided_slice %221 {offsets = [0, 16], sizes = [16, 8], strides = [1, 1]} : vector<16x32xbf16> to vector<16x8xbf16>
    %267 = vector.shape_cast %266 : vector<16x8xbf16> to vector<2x8x8xbf16>
    %268 = vector.extract_strided_slice %223 {offsets = [0, 16], sizes = [16, 8], strides = [1, 1]} : vector<16x32xbf16> to vector<16x8xbf16>
    %269 = vector.shape_cast %268 : vector<16x8xbf16> to vector<2x8x8xbf16>
    "tpu.trace_start"() <{level = 10 : i32, message = "bne,bme->bnm"}> : () -> ()
    %cst_74 = arith.constant dense<0.000000e+00> : vector<2x8x8xf32>
    %270 = tpu.matmul %265, %267, %cst_74 {dimension_numbers = #tpu.dot_dimension_numbers<[2], [2], [1], [1], [0, 0, 0, 1, 1, 1], [0], [0]>} : vector<2x8x8xbf16>, vector<2x8x8xbf16>, vector<2x8x8xf32> -> vector<2x8x8xf32>
    "tpu.trace_stop"() : () -> ()
    %cst_75 = arith.constant dense<0xFF800000> : vector<2x8xf32>
    %271 = vector.multi_reduction <maximumf>, %270, %cst_75 [2] : vector<2x8x8xf32> to vector<2x8xf32>
    %272 = vector.shape_cast %271 : vector<2x8xf32> to vector<2x8x1xf32>
    %273 = vector.broadcast %272 : vector<2x8x1xf32> to vector<2x8x8xf32>
    %274 = arith.subf %270, %273 : vector<2x8x8xf32>
    %275 = math.exp %274 : vector<2x8x8xf32>
    %cst_76 = arith.constant dense<0.000000e+00> : vector<2x8xf32>
    %276 = vector.multi_reduction <add>, %275, %cst_76 [2] : vector<2x8x8xf32> to vector<2x8xf32>
    %277 = vector.shape_cast %276 : vector<2x8xf32> to vector<2x8x1xf32>
    %278 = tpu.reciprocal %277 {approx = true} : vector<2x8x1xf32> -> vector<2x8x1xf32>
    %279 = vector.broadcast %278 : vector<2x8x1xf32> to vector<2x8x8xf32>
    %280 = arith.mulf %275, %279 : vector<2x8x8xf32>
    %281 = arith.truncf %280 : vector<2x8x8xf32> to vector<2x8x8xbf16>
    "tpu.trace_start"() <{level = 10 : i32, message = "bnm,bme->bne"}> : () -> ()
    %cst_77 = arith.constant dense<0.000000e+00> : vector<2x8x8xf32>
    %282 = tpu.matmul %281, %269, %cst_77 {dimension_numbers = #tpu.dot_dimension_numbers<[2], [1], [1], [2], [0, 0, 0, 1, 1, 2], [0], [0]>} : vector<2x8x8xbf16>, vector<2x8x8xbf16>, vector<2x8x8xf32> -> vector<2x8x8xf32>
    "tpu.trace_stop"() : () -> ()
    %283 = arith.truncf %282 : vector<2x8x8xf32> to vector<2x8x8xbf16>
    %284 = vector.extract_strided_slice %219 {offsets = [0, 24], sizes = [16, 8], strides = [1, 1]} : vector<16x32xbf16> to vector<16x8xbf16>
    %285 = vector.shape_cast %284 : vector<16x8xbf16> to vector<2x8x8xbf16>
    %286 = vector.extract_strided_slice %221 {offsets = [0, 24], sizes = [16, 8], strides = [1, 1]} : vector<16x32xbf16> to vector<16x8xbf16>
    %287 = vector.shape_cast %286 : vector<16x8xbf16> to vector<2x8x8xbf16>
    %288 = vector.extract_strided_slice %223 {offsets = [0, 24], sizes = [16, 8], strides = [1, 1]} : vector<16x32xbf16> to vector<16x8xbf16>
    %289 = vector.shape_cast %288 : vector<16x8xbf16> to vector<2x8x8xbf16>
    "tpu.trace_start"() <{level = 10 : i32, message = "bne,bme->bnm"}> : () -> ()
    %cst_78 = arith.constant dense<0.000000e+00> : vector<2x8x8xf32>
    %290 = tpu.matmul %285, %287, %cst_78 {dimension_numbers = #tpu.dot_dimension_numbers<[2], [2], [1], [1], [0, 0, 0, 1, 1, 1], [0], [0]>} : vector<2x8x8xbf16>, vector<2x8x8xbf16>, vector<2x8x8xf32> -> vector<2x8x8xf32>
    "tpu.trace_stop"() : () -> ()
    %cst_79 = arith.constant dense<0xFF800000> : vector<2x8xf32>
    %291 = vector.multi_reduction <maximumf>, %290, %cst_79 [2] : vector<2x8x8xf32> to vector<2x8xf32>
    %292 = vector.shape_cast %291 : vector<2x8xf32> to vector<2x8x1xf32>
    %293 = vector.broadcast %292 : vector<2x8x1xf32> to vector<2x8x8xf32>
    %294 = arith.subf %290, %293 : vector<2x8x8xf32>
    %295 = math.exp %294 : vector<2x8x8xf32>
    %cst_80 = arith.constant dense<0.000000e+00> : vector<2x8xf32>
    %296 = vector.multi_reduction <add>, %295, %cst_80 [2] : vector<2x8x8xf32> to vector<2x8xf32>
    %297 = vector.shape_cast %296 : vector<2x8xf32> to vector<2x8x1xf32>
    %298 = tpu.reciprocal %297 {approx = true} : vector<2x8x1xf32> -> vector<2x8x1xf32>
    %299 = vector.broadcast %298 : vector<2x8x1xf32> to vector<2x8x8xf32>
    %300 = arith.mulf %295, %299 : vector<2x8x8xf32>
    %301 = arith.truncf %300 : vector<2x8x8xf32> to vector<2x8x8xbf16>
    "tpu.trace_start"() <{level = 10 : i32, message = "bnm,bme->bne"}> : () -> ()
    %cst_81 = arith.constant dense<0.000000e+00> : vector<2x8x8xf32>
    %302 = tpu.matmul %301, %289, %cst_81 {dimension_numbers = #tpu.dot_dimension_numbers<[2], [1], [1], [2], [0, 0, 0, 1, 1, 2], [0], [0]>} : vector<2x8x8xbf16>, vector<2x8x8xbf16>, vector<2x8x8xf32> -> vector<2x8x8xf32>
    "tpu.trace_stop"() : () -> ()
    %303 = arith.truncf %302 : vector<2x8x8xf32> to vector<2x8x8xbf16>
    %304 = tpu.concatenate %243, %263, %283, %303 in 2 : vector<2x8x8xbf16>, vector<2x8x8xbf16>, vector<2x8x8xbf16>, vector<2x8x8xbf16> -> vector<2x8x32xbf16>
    %305 = vector.shape_cast %304 : vector<2x8x32xbf16> to vector<16x32xbf16>
    %c1_82 = arith.constant 1 : index
    %c0_83 = arith.constant 0 : index
    %c0_84 = arith.constant 0 : index
    %306 = vector.load %arg4[%c1_82, %c0_83, %c0_84] : memref<2x32x32xbf16, #tpu.memory_space<vmem>>, vector<1x32x32xbf16>
    %307 = vector.shape_cast %306 : vector<1x32x32xbf16> to vector<32x32xbf16>
    %cst_85 = arith.constant dense<0.000000e+00> : vector<16x32xf32>
    %308 = tpu.matmul %305, %307, %cst_85 {dimension_numbers = #tpu.dot_dimension_numbers<[1], [0], [0], [1], [0, 0, 1, 1], [], []>} : vector<16x32xbf16>, vector<32x32xbf16>, vector<16x32xf32> -> vector<16x32xf32>
    %309 = vector.broadcast %188 : vector<1x32xf32> to vector<16x32xf32>
    %310 = arith.addf %308, %309 : vector<16x32xf32>
    %311 = arith.addf %183, %310 : vector<16x32xf32>
    %cst_86 = arith.constant dense<0.000000e+00> : vector<16xf32>
    %312 = vector.multi_reduction <add>, %311, %cst_86 [1] : vector<16x32xf32> to vector<16xf32>
    %313 = vector.shape_cast %312 : vector<16xf32> to vector<16x1xf32>
    %cst_87 = arith.constant 3.200000e+01 : f32
    %314 = vector.broadcast %cst_87 : f32 to vector<16x1xf32>
    %315 = arith.divf %313, %314 : vector<16x1xf32>
    %316 = vector.broadcast %315 : vector<16x1xf32> to vector<16x32xf32>
    %317 = arith.subf %311, %316 : vector<16x32xf32>
    %318 = arith.mulf %317, %317 : vector<16x32xf32>
    %cst_88 = arith.constant dense<0.000000e+00> : vector<16xf32>
    %319 = vector.multi_reduction <add>, %318, %cst_88 [1] : vector<16x32xf32> to vector<16xf32>
    %320 = vector.shape_cast %319 : vector<16xf32> to vector<16x1xf32>
    %cst_89 = arith.constant 3.200000e+01 : f32
    %321 = vector.broadcast %cst_89 : f32 to vector<16x1xf32>
    %322 = arith.divf %320, %321 : vector<16x1xf32>
    %323 = vector.broadcast %315 : vector<16x1xf32> to vector<16x32xf32>
    %324 = arith.subf %311, %323 : vector<16x32xf32>
    %cst_90 = arith.constant 9.99999974E-6 : f32
    %325 = vector.broadcast %cst_90 : f32 to vector<16x1xf32>
    %326 = arith.addf %322, %325 : vector<16x1xf32>
    %327 = math.rsqrt %326 : vector<16x1xf32>
    %328 = vector.broadcast %327 : vector<16x1xf32> to vector<16x32xf32>
    %329 = arith.mulf %324, %328 : vector<16x32xf32>
    %330 = vector.broadcast %189 : vector<1x32xf32> to vector<16x32xf32>
    %331 = arith.mulf %329, %330 : vector<16x32xf32>
    %332 = vector.broadcast %190 : vector<1x32xf32> to vector<16x32xf32>
    %333 = arith.addf %331, %332 : vector<16x32xf32>
    %334 = arith.truncf %333 : vector<16x32xf32> to vector<16x32xbf16>
    %c1_91 = arith.constant 1 : index
    %c0_92 = arith.constant 0 : index
    %c0_93 = arith.constant 0 : index
    %335 = vector.load %arg5[%c1_91, %c0_92, %c0_93] : memref<2x32x64xbf16, #tpu.memory_space<vmem>>, vector<1x32x64xbf16>
    %336 = vector.shape_cast %335 : vector<1x32x64xbf16> to vector<32x64xbf16>
    %cst_94 = arith.constant dense<0.000000e+00> : vector<16x64xf32>
    %337 = tpu.matmul %334, %336, %cst_94 {dimension_numbers = #tpu.dot_dimension_numbers<[1], [0], [0], [1], [0, 0, 1, 1], [], []>} : vector<16x32xbf16>, vector<32x64xbf16>, vector<16x64xf32> -> vector<16x64xf32>
    %c1_95 = arith.constant 1 : index
    %c0_96 = arith.constant 0 : index
    %c0_97 = arith.constant 0 : index
    %338 = vector.load %arg8[%c1_95, %c0_96, %c0_97] : memref<2x1x64xf32, #tpu.memory_space<vmem>>, vector<1x1x64xf32>
    %339 = vector.shape_cast %338 : vector<1x1x64xf32> to vector<1x64xf32>
    %340 = vector.broadcast %339 : vector<1x64xf32> to vector<16x64xf32>
    %341 = arith.addf %337, %340 : vector<16x64xf32>
    %342 = arith.mulf %341, %341 : vector<16x64xf32>
    %343 = arith.mulf %341, %342 : vector<16x64xf32>
    %cst_98 = arith.constant 4.471500e-02 : f32
    %344 = vector.broadcast %cst_98 : f32 to vector<16x64xf32>
    %345 = arith.mulf %344, %343 : vector<16x64xf32>
    %346 = arith.addf %341, %345 : vector<16x64xf32>
    %cst_99 = arith.constant 0.797884583 : f32
    %347 = vector.broadcast %cst_99 : f32 to vector<16x64xf32>
    %348 = arith.mulf %347, %346 : vector<16x64xf32>
    %349 = math.tanh %348 : vector<16x64xf32>
    %cst_100 = arith.constant 1.000000e+00 : f32
    %350 = vector.broadcast %cst_100 : f32 to vector<16x64xf32>
    %351 = arith.addf %350, %349 : vector<16x64xf32>
    %cst_101 = arith.constant 5.000000e-01 : f32
    %352 = vector.broadcast %cst_101 : f32 to vector<16x64xf32>
    %353 = arith.mulf %352, %351 : vector<16x64xf32>
    %354 = arith.mulf %341, %353 : vector<16x64xf32>
    %355 = arith.truncf %354 : vector<16x64xf32> to vector<16x64xbf16>
    %c1_102 = arith.constant 1 : index
    %c0_103 = arith.constant 0 : index
    %c0_104 = arith.constant 0 : index
    %356 = vector.load %arg6[%c1_102, %c0_103, %c0_104] : memref<2x64x32xbf16, #tpu.memory_space<vmem>>, vector<1x64x32xbf16>
    %357 = vector.shape_cast %356 : vector<1x64x32xbf16> to vector<64x32xbf16>
    %cst_105 = arith.constant dense<0.000000e+00> : vector<16x32xf32>
    %358 = tpu.matmul %355, %357, %cst_105 {dimension_numbers = #tpu.dot_dimension_numbers<[1], [0], [0], [1], [0, 0, 1, 1], [], []>} : vector<16x64xbf16>, vector<64x32xbf16>, vector<16x32xf32> -> vector<16x32xf32>
    %359 = vector.broadcast %191 : vector<1x32xf32> to vector<16x32xf32>
    %360 = arith.addf %358, %359 : vector<16x32xf32>
    %361 = arith.addf %311, %360 : vector<16x32xf32>
    %362 = vector.shape_cast %361 : vector<16x32xf32> to vector<2x8x32xf32>
    %c0_106 = arith.constant 0 : index
    %c0_107 = arith.constant 0 : index
    %c0_108 = arith.constant 0 : index
    %363 = vector.load %arg9[%c0_106, %c0_107, %c0_108] : memref<2x8x32xf32, #tpu.memory_space<vmem>>, vector<2x8x32xf32>
    tpu.vector_store %arg9[%c0_106, %c0_107, %c0_108], %362 {strides = array<i32>} : memref<2x8x32xf32, #tpu.memory_space<vmem>>, vector<2x8x32xf32>,
    return
  }
  func.func @transform_0(%arg0: i32) -> (i32, i32, i32) {
    %c0_i32 = arith.constant 0 : i32
    %c0_i32_0 = arith.constant 0 : i32
    %c0_i32_1 = arith.constant 0 : i32
    return %arg0, %c0_i32, %c0_i32_0 : i32, i32, i32
  }
  func.func @transform_1(%arg0: i32) -> (i32, i32) {
    %c0_i32 = arith.constant 0 : i32
    %c0_i32_0 = arith.constant 0 : i32
    %c0_i32_1 = arith.constant 0 : i32
    return %c0_i32, %c0_i32_0 : i32, i32
  }
  func.func @transform_2(%arg0: i32) -> (i32, i32, i32) {
    %c0_i32 = arith.constant 0 : i32
    %c0_i32_0 = arith.constant 0 : i32
    %c0_i32_1 = arith.constant 0 : i32
    %c0_i32_2 = arith.constant 0 : i32
    return %c0_i32, %c0_i32_0, %c0_i32_1 : i32, i32, i32
  }
  func.func @transform_3(%arg0: i32) -> (i32, i32, i32) {
    %c0_i32 = arith.constant 0 : i32
    %c0_i32_0 = arith.constant 0 : i32
    %c0_i32_1 = arith.constant 0 : i32
    %c0_i32_2 = arith.constant 0 : i32
    return %c0_i32, %c0_i32_0, %c0_i32_1 : i32, i32, i32
  }
  func.func @transform_4(%arg0: i32) -> (i32, i32, i32) {
    %c0_i32 = arith.constant 0 : i32
    %c0_i32_0 = arith.constant 0 : i32
    %c0_i32_1 = arith.constant 0 : i32
    %c0_i32_2 = arith.constant 0 : i32
    return %c0_i32, %c0_i32_0, %c0_i32_1 : i32, i32, i32
  }
  func.func @transform_5(%arg0: i32) -> (i32, i32, i32) {
    %c0_i32 = arith.constant 0 : i32
    %c0_i32_0 = arith.constant 0 : i32
    %c0_i32_1 = arith.constant 0 : i32
    %c0_i32_2 = arith.constant 0 : i32
    return %c0_i32, %c0_i32_0, %c0_i32_1 : i32, i32, i32
  }
  func.func @transform_6(%arg0: i32) -> (i32, i32, i32) {
    %c0_i32 = arith.constant 0 : i32
    %c0_i32_0 = arith.constant 0 : i32
    %c0_i32_1 = arith.constant 0 : i32
    %c0_i32_2 = arith.constant 0 : i32
    return %c0_i32, %c0_i32_0, %c0_i32_1 : i32, i32, i32
  }
  func.func @transform_7(%arg0: i32) -> (i32, i32, i32) {
    %c0_i32 = arith.constant 0 : i32
    %c0_i32_0 = arith.constant 0 : i32
    %c0_i32_1 = arith.constant 0 : i32
    %c0_i32_2 = arith.constant 0 : i32
    return %c0_i32, %c0_i32_0, %c0_i32_1 : i32, i32, i32
  }
  func.func @transform_8(%arg0: i32) -> (i32, i32, i32) {
    %c0_i32 = arith.constant 0 : i32
    %c0_i32_0 = arith.constant 0 : i32
    %c0_i32_1 = arith.constant 0 : i32
    return %arg0, %c0_i32, %c0_i32_0 : i32, i32, i32
  }
}

</mosaic_0001>

<llo_original>
// kernel: tpu_custom_call.1
$region0: #{tpu_custom_call.1}
  #allocation0 [shape = 'u32[]', space=smem, size = 0x4, offset = 0x4, fixed_abs, tag = 'smem constant byte address 0x4 - core index']
  #allocation1 [shape = 'u32[144,128]{1,0:T(1,128)}', space=vmem, size = 0x12000, scoped, tag = 'internal scratch']
  %s0 = inlined_call_operand.hbm [shape: f32[2,8,32], index: 0, kind: input, shape index: {}]
  %s1 = inlined_call_operand.hbm [shape: f32[8,32], index: 1, kind: input, shape index: {}]
  %s2 = inlined_call_operand.vmem [shape: bf16[2,32,96], index: 2, kind: input, shape index: {}]
  %s3 = inlined_call_operand.vmem [shape: bf16[2,32,32], index: 3, kind: input, shape index: {}]
  %s4 = inlined_call_operand.vmem [shape: bf16[2,32,64], index: 4, kind: input, shape index: {}]
  %s5 = inlined_call_operand.vmem [shape: bf16[2,64,32], index: 5, kind: input, shape index: {}]
  %s6 = inlined_call_operand.vmem [shape: f32[2,6,32], index: 6, kind: input, shape index: {}]
  %s7 = inlined_call_operand.vmem [shape: f32[2,1,64], index: 7, kind: input, shape index: {}]
  %s8 = inlined_call_operand.hbm [shape: f32[2,8,32], index: 8, kind: output, shape index: {}]
  %s9 = sld [smem:[#allocation0]]
  $region50: #{tpu_custom_call.1} parent=0
    _
  %s11 = ssub.s32 1, %s9
  %s12 = scalar_select 0, %s11, %s9
  $region1: #{tpu_custom_call.1} parent=0
    #allocation2 [shape = 'u8[8192]{0}', space=vmem, size = 0x2000, scoped, tag = 'input window, operand 0, single buffered']
    #allocation3 [shape = 's32[1]{0}', space=sflag, size = 0x4, scoped, tag = 'scoped memory for tpu_custom_call.1']
    #allocation4 [shape = 's32[1]{0}', space=sflag, size = 0x4, scoped, tag = 'scoped memory for tpu_custom_call.1']
    #allocation5 [shape = 'u8[4096]{0}', space=vmem, size = 0x1000, scoped, tag = 'input window, operand 1, single buffered']
    #allocation6 [shape = 's32[1]{0}', space=sflag, size = 0x4, scoped, tag = 'scoped memory for tpu_custom_call.1']
    #allocation7 [shape = 'u8[8192]{0}', space=vmem, size = 0x2000, scoped, tag = 'output window, operand 0, single buffered']
    %13 = vsyncpa [#allocation3], 0
    %14 = vsyncpa [#allocation6], 0
    %15 = vsyncpa [#allocation4], 0
    // Predicated region
    $region2: #{tpu_custom_call.1} parent=1 // pred_check
      _
    $region3: #{tpu_custom_call.1} parent=1 // pred_check_branch
      %17 = sbr.rel (0) target = $region5
    $region4: #{tpu_custom_call.1} parent=1 // pred_region
      %s19 = ssub.s32 256, 256
      %20 = vsyncadd [#allocation3], %s19
      %s21 = sshll.u32 [#allocation2], 4
      %s22 = int_to_ptr.vmem [resolvable:$true] %s21
      %27 = dma.hbm_to_vmem [thread:$0]  %s0, 256, %s22, [#allocation3], 128, 128, 8
    $region5: #{tpu_custom_call.1} parent=1 // pred_fallthru
      _
    // Predicated region
    $region6: #{tpu_custom_call.1} parent=1 // pred_check
      _
    $region7: #{tpu_custom_call.1} parent=1 // pred_check_branch
      %29 = sbr.rel (0) target = $region9
    $region8: #{tpu_custom_call.1} parent=1 // pred_region
      %s31 = ssub.s32 128, 128
      %32 = vsyncadd [#allocation6], %s31
      %s34 = sshll.u32 [#allocation5], 4
      %s35 = int_to_ptr.vmem [resolvable:$true] %s34
      %37 = dma.hbm_to_vmem [thread:$0]  %s1, 128, %s35, [#allocation6]
    $region9: #{tpu_custom_call.1} parent=1 // pred_fallthru
      _
    // Predicated region
    $region10: #{tpu_custom_call.1} parent=1 // pred_check
      _
    $region11: #{tpu_custom_call.1} parent=1 // pred_check_branch
      %39 = sbr.rel (0) target = $region13
    $region12: #{tpu_custom_call.1} parent=1 // pred_region
      _
    $region13: #{tpu_custom_call.1} parent=1 // pred_fallthru
      _
    // Predicated region
    $region14: #{tpu_custom_call.1} parent=1 // pred_check
      _
    $region15: #{tpu_custom_call.1} parent=1 // pred_check_branch
      %41 = sbr.rel (0) target = $region17
    $region16: #{tpu_custom_call.1} parent=1 // pred_region
      _
    $region17: #{tpu_custom_call.1} parent=1 // pred_fallthru
      _
    // Predicated region
    $region18: #{tpu_custom_call.1} parent=1 // pred_check
      _
    $region19: #{tpu_custom_call.1} parent=1 // pred_check_branch
      %43 = sbr.rel (0) target = $region21
    $region20: #{tpu_custom_call.1} parent=1 // pred_region
      _
    $region21: #{tpu_custom_call.1} parent=1 // pred_fallthru
      _
    // Predicated region
    $region22: #{tpu_custom_call.1} parent=1 // pred_check
      _
    $region23: #{tpu_custom_call.1} parent=1 // pred_check_branch
      %45 = sbr.rel (0) target = $region25
    $region24: #{tpu_custom_call.1} parent=1 // pred_region
      _
    $region25: #{tpu_custom_call.1} parent=1 // pred_fallthru
      _
    // Predicated region
    $region26: #{tpu_custom_call.1} parent=1 // pred_check
      _
    $region27: #{tpu_custom_call.1} parent=1 // pred_check_branch
      %47 = sbr.rel (0) target = $region29
    $region28: #{tpu_custom_call.1} parent=1 // pred_region
      _
    $region29: #{tpu_custom_call.1} parent=1 // pred_fallthru
      _
    // Predicated region
    $region30: #{tpu_custom_call.1} parent=1 // pred_check
      _
    $region31: #{tpu_custom_call.1} parent=1 // pred_check_branch
      %49 = sbr.rel (0) target = $region33
    $region32: #{tpu_custom_call.1} parent=1 // pred_region
      _
    $region33: #{tpu_custom_call.1} parent=1 // pred_fallthru
      _
    // Predicated region
    $region34: #{tpu_custom_call.1} parent=1 // pred_check
      _
    $region35: #{tpu_custom_call.1} parent=1 // pred_check_branch
      %51 = sbr.rel (0) target = $region37
    $region36: #{tpu_custom_call.1} parent=1 // pred_region
      %52 = dma.done [#allocation3], 256
    $region37: #{tpu_custom_call.1} parent=1 // pred_fallthru
      _
    // Predicated region
    $region38: #{tpu_custom_call.1} parent=1 // pred_check
      _
    $region39: #{tpu_custom_call.1} parent=1 // pred_check_branch
      %54 = sbr.rel (0) target = $region41
    $region40: #{tpu_custom_call.1} parent=1 // pred_region
      %55 = dma.done [#allocation6], 128
    $region41: #{tpu_custom_call.1} parent=1 // pred_fallthru
      _
    %v57 = vld [vmem:[#allocation2] sm:$0xff]
    %v58 = vld [vmem:[#allocation2 + $0x8] sm:$0xff]
    %v59 = vld [vmem:[#allocation5] sm:$0xff]
    %v60 = vadd.f32 %v57, %v59
    %v61 = vadd.f32 %v58, %v59
    %v62 = vld [vmem:[%s6] sm:$0x3f]
    %vm63 = vcmask 261120
    %v64 = vsel %vm63, %v60, 0.0
    %65 = vadd.xlane.f32.xlu0 %v64
    %v66 = vpop.xlane.xlu0 %65
    %v67 = vsel %vm63, %v61, 0.0
    %68 = vadd.xlane.f32.xlu0 %v67
    %v69 = vpop.xlane.xlu0 %68
    %v70 = vrcp.pop 32.0
    %v71 = vmul.f32 %v66, %v70
    %v72 = vmul.f32 %v69, %v70
    %v73 = vsub.f32 %v60, %v71
    %v74 = vsub.f32 %v61, %v72
    %v75 = vmul.f32 %v73, %v73
    %v76 = vmul.f32 %v74, %v74
    %v77 = vsel %vm63, %v75, 0.0
    %78 = vadd.xlane.f32.xlu0 %v77
    %v79 = vpop.xlane.xlu0 %78
    %v80 = vsel %vm63, %v76, 0.0
    %81 = vadd.xlane.f32.xlu0 %v80
    %v82 = vpop.xlane.xlu0 %81
    %v83 = vmul.f32 %v79, %v70
    %v84 = vmul.f32 %v82, %v70
    %v85 = vadd.f32 %v83, 1e-05
    %v86 = vadd.f32 %v84, 1e-05
    %v87 = vrsqrt.pop %v85
    %v88 = vrsqrt.pop %v86
    %v89 = vmul.f32 %v73, %v87
    %v90 = vmul.f32 %v74, %v88
    %v91 = vlaneseq
    %v92 = vshrl.u32 %v91, 7
    %v93 = vsub.s32 0, %v92
    %v94 = vrot.slane %v62, %v93
    %v95 = vmul.f32 %v89, %v94
    %v96 = vmul.f32 %v90, %v94
    %v97 = vlaneseq
    %v98 = vshrl.u32 %v97, 7
    %v99 = vsub.s32 1, %v98
    %v100 = vrot.slane %v62, %v99
    %v101 = vadd.f32 %v95, %v100
    %v102 = vadd.f32 %v96, %v100
    %v103 = vpack.c.bf16 %v102, %v101
    %v104 = vld [vmem:[%s2] sm:$0xf]
    %v105 = vld [vmem:[%s2 + $0x4] sm:$0xf]
    %v106 = vld [vmem:[%s2 + $0x8] sm:$0xf]
    %v107 = vld [vmem:[%s2 + $0xc] sm:$0xf]
    %v112 = vunpack.c.l.b16 %v104
    %v113 = vunpack.c.l.b16 %v105
    %v114 = vunpack.c.l.b16 %v106
    %v115 = vunpack.c.l.b16 %v107
    %v116 = vpack.c.b16 %v113, %v112
    %v117 = vpack.c.b16 %v115, %v114
    %v121 = vsel %vm63, %v103, 0
    %123 = vmatprep.subr.bf16.mxu0 0
    %124 = vmatpush1.bf16.msra.mxu0 %v116
    %125 = vmatprep.subr.bf16.mxu0 0
    %126 = vmatpush1.bf16.msra.mxu0 %v117
    %127 = vmatprep.subr.bf16.mxu0 0
    %128 = vmatpush1.bf16.msra.mxu0 0
    %129 = vmatprep.subr.bf16.mxu0 0
    %130 = vmatpush1.bf16.msra.mxu0 0
    %131 = vmatprep.subr.bf16.mxu0 0
    %132 = vmatpush1.bf16.msra.mxu0 0
    %133 = vmatprep.subr.bf16.mxu0 0
    %134 = vmatpush1.bf16.msra.mxu0 0
    %135 = vmatprep.subr.bf16.mxu0 0
    %136 = vmatpush1.bf16.msra.mxu0 0
    %137 = vmatprep.subr.bf16.mxu0 0
    %138 = vmatpush1.bf16.msra.mxu0 0
    %139 = vmatprep.subr.bf16.mxu0 0
    %140 = vmatpush1.bf16.msra.mxu0 0
    %141 = vmatprep.subr.bf16.mxu0 0
    %142 = vmatpush1.bf16.msra.mxu0 0
    %143 = vmatprep.subr.bf16.mxu0 0
    %144 = vmatpush1.bf16.msra.mxu0 0
    %145 = vmatprep.subr.bf16.mxu0 0
    %146 = vmatpush1.bf16.msra.mxu0 0
    %147 = vmatprep.subr.bf16.mxu0 0
    %148 = vmatpush1.bf16.msra.mxu0 0
    %149 = vmatprep.subr.bf16.mxu0 0
    %150 = vmatpush1.bf16.msra.mxu0 0
    %151 = vmatprep.subr.bf16.mxu0 0
    %152 = vmatpush1.bf16.msra.mxu0 0
    %153 = vmatprep.subr.bf16.mxu0 0
    %154 = vmatpush1.bf16.msra.mxu0 0
    %155 = vmatprep.mubr.bf16.mxu0 0
    %156 = vmatmul.mubr.bf16.gmra.mrb[0].mxu0 %v121
    %v157 = vpop.f32.mrb[0].mxu0
    %v158 = vadd.f32 0.0, %v157
    %v159 = vpop.f32.mrb[0].mxu0
    %v160 = vpop.f32.mrb[0].mxu0
    %v161 = vadd.f32 0.0, %v160
    %v162 = vpop.f32.mrb[0].mxu0
    %163 = vdwg.mxu0
    %v164 = vpack.c.bf16 %v161, %v158
    %v166 = vunpack.c.l.b16 %v164
    %v167 = vunpack.c.h.b16 %v164
    %v168 = vpack.c.b16 %v166, %v166
    %v169 = vpack.c.b16 %v167, %v167
    %170 = vrot.lane.b32.xlu0 %v168, 96
    %v171 = vpop.permute.xlu0 %170
    %vm172 = vcmask 64512
    %v174 = vsel %vm172, %v168, 0
    %v177 = vsel %vm172, %v171, 0
    %179 = vmatprep.subr.bf16.mxu0 0
    %180 = vmatpush1.bf16.xpose.msra.mxu0 %v177
    %181 = vmatprep.subr.bf16.mxu0 0
    %182 = vmatpush1.bf16.xpose.msra.mxu0 0
    %183 = vmatprep.subr.bf16.mxu0 0
    %184 = vmatpush1.bf16.xpose.msra.mxu0 0
    %185 = vmatprep.subr.bf16.mxu0 0
    %186 = vmatpush1.bf16.xpose.msra.mxu0 0
    %187 = vmatprep.subr.bf16.mxu0 0
    %188 = vmatpush1.bf16.xpose.msra.mxu0 0
    %189 = vmatprep.subr.bf16.mxu0 0
    %190 = vmatpush1.bf16.xpose.msra.mxu0 0
    %191 = vmatprep.subr.bf16.mxu0 0
    %192 = vmatpush1.bf16.xpose.msra.mxu0 0
    %193 = vmatprep.subr.bf16.mxu0 0
    %194 = vmatpush1.bf16.xpose.msra.mxu0 0
    %195 = vmatprep.subr.bf16.mxu0 0
    %196 = vmatpush1.bf16.xpose.msra.mxu0 0
    %197 = vmatprep.subr.bf16.mxu0 0
    %198 = vmatpush1.bf16.xpose.msra.mxu0 0
    %199 = vmatprep.subr.bf16.mxu0 0
    %200 = vmatpush1.bf16.xpose.msra.mxu0 0
    %201 = vmatprep.subr.bf16.mxu0 0
    %202 = vmatpush1.bf16.xpose.msra.mxu0 0
    %203 = vmatprep.subr.bf16.mxu0 0
    %204 = vmatpush1.bf16.xpose.msra.mxu0 0
    %205 = vmatprep.subr.bf16.mxu0 0
    %206 = vmatpush1.bf16.xpose.msra.mxu0 0
    %207 = vmatprep.subr.bf16.mxu0 0
    %208 = vmatpush1.bf16.xpose.msra.mxu0 0
    %209 = vmatprep.subr.bf16.mxu0 0
    %210 = vmatpush1.bf16.xpose.msra.mxu0 0
    %211 = vmatprep.mubr.bf16.mxu0 0
    %212 = vmatmul.mubr.bf16.gmra.mrb[0].mxu0 %v174
    %v213 = vpop.f32.mrb[0].mxu0
    %v214 = vadd.f32 0.0, %v213
    %v215 = vpop.f32.mrb[0].mxu0
    %v216 = vpop.f32.mrb[0].mxu0
    %v217 = vpop.f32.mrb[0].mxu0
    %218 = vdwg.mxu0
    %219 = vrot.lane.b32.xlu0 %v169, 96
    %v220 = vpop.permute.xlu0 %219
    %v222 = vsel %vm172, %v169, 0
    %v225 = vsel %vm172, %v220, 0
    %227 = vmatprep.subr.bf16.mxu0 0
    %228 = vmatpush1.bf16.xpose.msra.mxu0 %v225
    %229 = vmatprep.subr.bf16.mxu0 0
    %230 = vmatpush1.bf16.xpose.msra.mxu0 0
    %231 = vmatprep.subr.bf16.mxu0 0
    %232 = vmatpush1.bf16.xpose.msra.mxu0 0
    %233 = vmatprep.subr.bf16.mxu0 0
    %234 = vmatpush1.bf16.xpose.msra.mxu0 0
    %235 = vmatprep.subr.bf16.mxu0 0
    %236 = vmatpush1.bf16.xpose.msra.mxu0 0
    %237 = vmatprep.subr.bf16.mxu0 0
    %238 = vmatpush1.bf16.xpose.msra.mxu0 0
    %239 = vmatprep.subr.bf16.mxu0 0
    %240 = vmatpush1.bf16.xpose.msra.mxu0 0
    %241 = vmatprep.subr.bf16.mxu0 0
    %242 = vmatpush1.bf16.xpose.msra.mxu0 0
    %243 = vmatprep.subr.bf16.mxu0 0
    %244 = vmatpush1.bf16.xpose.msra.mxu0 0
    %245 = vmatprep.subr.bf16.mxu0 0
    %246 = vmatpush1.bf16.xpose.msra.mxu0 0
    %247 = vmatprep.subr.bf16.mxu0 0
    %248 = vmatpush1.bf16.xpose.msra.mxu0 0
    %249 = vmatprep.subr.bf16.mxu0 0
    %250 = vmatpush1.bf16.xpose.msra.mxu0 0
    %251 = vmatprep.subr.bf16.mxu0 0
    %252 = vmatpush1.bf16.xpose.msra.mxu0 0
    %253 = vmatprep.subr.bf16.mxu0 0
    %254 = vmatpush1.bf16.xpose.msra.mxu0 0
    %255 = vmatprep.subr.bf16.mxu0 0
    %256 = vmatpush1.bf16.xpose.msra.mxu0 0
    %257 = vmatprep.subr.bf16.mxu0 0
    %258 = vmatpush1.bf16.xpose.msra.mxu0 0
    %259 = vmatprep.mubr.bf16.mxu0 0
    %260 = vmatmul.mubr.bf16.gmra.mrb[0].mxu0 %v222
    %v261 = vpop.f32.mrb[0].mxu0
    %v262 = vadd.f32 0.0, %v261
    %v263 = vpop.f32.mrb[0].mxu0
    %v264 = vpop.f32.mrb[0].mxu0
    %v265 = vpop.f32.mrb[0].mxu0
    %266 = vdwg.mxu0
    %v267 = vsel %vm172, %v214, -inf
    %268 = vmax.xlane.f32.xlu0 %v267
    %v269 = vpop.xlane.xlu0 %268
    %v270 = vsel %vm172, %v262, -inf
    %271 = vmax.xlane.f32.xlu0 %v270
    %v272 = vpop.xlane.xlu0 %271
    %v273 = vsub.f32 %v214, %v269
    %v274 = vsub.f32 %v262, %v272
    %v275 = vmul.f32 %v273, 1.442695
    %v276 = vpow.pop %v275
    %v277 = vmul.f32 %v274, 1.442695
    %v278 = vpow.pop %v277
    %v279 = vsel %vm172, %v276, 0.0
    %280 = vadd.xlane.f32.xlu0 %v279
    %v281 = vpop.xlane.xlu0 %280
    %v282 = vsel %vm172, %v278, 0.0
    %283 = vadd.xlane.f32.xlu0 %v282
    %v284 = vpop.xlane.xlu0 %283
    %v285 = vrcp.pop %v281
    %v286 = vrcp.pop %v284
    %v287 = vmul.f32 %v276, %v285
    %v288 = vmul.f32 %v278, %v286
    %v289 = vpack.c.bf16 %v287, %v287
    %v290 = vpack.c.bf16 %v288, %v288
    %291 = vrot.lane.b32.xlu0 %v168, 64
    %v292 = vpop.permute.xlu0 %291
    %v294 = vsel %vm172, %v289, 0
    %vm296 = vcmask 1043456
    %v298 = vsel %vm296, %v292, 0
    %300 = vmatprep.subr.bf16.mxu0 0
    %301 = vmatpush1.bf16.msra.mxu0 %v298
    %302 = vmatprep.subr.bf16.mxu0 0
    %303 = vmatpush1.bf16.msra.mxu0 0
    %304 = vmatprep.subr.bf16.mxu0 0
    %305 = vmatpush1.bf16.msra.mxu0 0
    %306 = vmatprep.subr.bf16.mxu0 0
    %307 = vmatpush1.bf16.msra.mxu0 0
    %308 = vmatprep.subr.bf16.mxu0 0
    %309 = vmatpush1.bf16.msra.mxu0 0
    %310 = vmatprep.subr.bf16.mxu0 0
    %311 = vmatpush1.bf16.msra.mxu0 0
    %312 = vmatprep.subr.bf16.mxu0 0
    %313 = vmatpush1.bf16.msra.mxu0 0
    %314 = vmatprep.subr.bf16.mxu0 0
    %315 = vmatpush1.bf16.msra.mxu0 0
    %316 = vmatprep.subr.bf16.mxu0 0
    %317 = vmatpush1.bf16.msra.mxu0 0
    %318 = vmatprep.subr.bf16.mxu0 0
    %319 = vmatpush1.bf16.msra.mxu0 0
    %320 = vmatprep.subr.bf16.mxu0 0
    %321 = vmatpush1.bf16.msra.mxu0 0
    %322 = vmatprep.subr.bf16.mxu0 0
    %323 = vmatpush1.bf16.msra.mxu0 0
    %324 = vmatprep.subr.bf16.mxu0 0
    %325 = vmatpush1.bf16.msra.mxu0 0
    %326 = vmatprep.subr.bf16.mxu0 0
    %327 = vmatpush1.bf16.msra.mxu0 0
    %328 = vmatprep.subr.bf16.mxu0 0
    %329 = vmatpush1.bf16.msra.mxu0 0
    %330 = vmatprep.subr.bf16.mxu0 0
    %331 = vmatpush1.bf16.msra.mxu0 0
    %332 = vmatprep.mubr.bf16.mxu0 0
    %333 = vmatmul.mubr.bf16.gmra.mrb[0].mxu0 %v294
    %v334 = vpop.f32.mrb[0].mxu0
    %v335 = vadd.f32 0.0, %v334
    %v336 = vpop.f32.mrb[0].mxu0
    %v337 = vpop.f32.mrb[0].mxu0
    %v338 = vpop.f32.mrb[0].mxu0
    %339 = vdwg.mxu0
    %340 = vrot.lane.b32.xlu0 %v169, 64
    %v341 = vpop.permute.xlu0 %340
    %v343 = vsel %vm172, %v290, 0
    %v346 = vsel %vm296, %v341, 0
    %348 = vmatprep.subr.bf16.mxu0 0
    %349 = vmatpush1.bf16.msra.mxu0 %v346
    %350 = vmatprep.subr.bf16.mxu0 0
    %351 = vmatpush1.bf16.msra.mxu0 0
    %352 = vmatprep.subr.bf16.mxu0 0
    %353 = vmatpush1.bf16.msra.mxu0 0
    %354 = vmatprep.subr.bf16.mxu0 0
    %355 = vmatpush1.bf16.msra.mxu0 0
    %356 = vmatprep.subr.bf16.mxu0 0
    %357 = vmatpush1.bf16.msra.mxu0 0
    %358 = vmatprep.subr.bf16.mxu0 0
    %359 = vmatpush1.bf16.msra.mxu0 0
    %360 = vmatprep.subr.bf16.mxu0 0
    %361 = vmatpush1.bf16.msra.mxu0 0
    %362 = vmatprep.subr.bf16.mxu0 0
    %363 = vmatpush1.bf16.msra.mxu0 0
    %364 = vmatprep.subr.bf16.mxu0 0
    %365 = vmatpush1.bf16.msra.mxu0 0
    %366 = vmatprep.subr.bf16.mxu0 0
    %367 = vmatpush1.bf16.msra.mxu0 0
    %368 = vmatprep.subr.bf16.mxu0 0
    %369 = vmatpush1.bf16.msra.mxu0 0
    %370 = vmatprep.subr.bf16.mxu0 0
    %371 = vmatpush1.bf16.msra.mxu0 0
    %372 = vmatprep.subr.bf16.mxu0 0
    %373 = vmatpush1.bf16.msra.mxu0 0
    %374 = vmatprep.subr.bf16.mxu0 0
    %375 = vmatpush1.bf16.msra.mxu0 0
    %376 = vmatprep.subr.bf16.mxu0 0
    %377 = vmatpush1.bf16.msra.mxu0 0
    %378 = vmatprep.subr.bf16.mxu0 0
    %379 = vmatpush1.bf16.msra.mxu0 0
    %380 = vmatprep.mubr.bf16.mxu0 0
    %381 = vmatmul.mubr.bf16.gmra.mrb[0].mxu0 %v343
    %v382 = vpop.f32.mrb[0].mxu0
    %v383 = vadd.f32 0.0, %v382
    %v384 = vpop.f32.mrb[0].mxu0
    %v385 = vpop.f32.mrb[0].mxu0
    %v386 = vpop.f32.mrb[0].mxu0
    %387 = vdwg.mxu0
    %v388 = vpack.c.bf16 %v335, %v335
    %v389 = vpack.c.bf16 %v383, %v383
    %390 = vrot.lane.b32.xlu0 %v168, 120
    %v391 = vpop.permute.xlu0 %390
    %392 = vrot.lane.b32.xlu0 %v168, 88
    %v393 = vpop.permute.xlu0 %392
    %v395 = vsel %vm172, %v391, 0
    %v398 = vsel %vm172, %v393, 0
    %400 = vmatprep.subr.bf16.mxu0 0
    %401 = vmatpush1.bf16.xpose.msra.mxu0 %v398
    %402 = vmatprep.subr.bf16.mxu0 0
    %403 = vmatpush1.bf16.xpose.msra.mxu0 0
    %404 = vmatprep.subr.bf16.mxu0 0
    %405 = vmatpush1.bf16.xpose.msra.mxu0 0
    %406 = vmatprep.subr.bf16.mxu0 0
    %407 = vmatpush1.bf16.xpose.msra.mxu0 0
    %408 = vmatprep.subr.bf16.mxu0 0
    %409 = vmatpush1.bf16.xpose.msra.mxu0 0
    %410 = vmatprep.subr.bf16.mxu0 0
    %411 = vmatpush1.bf16.xpose.msra.mxu0 0
    %412 = vmatprep.subr.bf16.mxu0 0
    %413 = vmatpush1.bf16.xpose.msra.mxu0 0
    %414 = vmatprep.subr.bf16.mxu0 0
    %415 = vmatpush1.bf16.xpose.msra.mxu0 0
    %416 = vmatprep.subr.bf16.mxu0 0
    %417 = vmatpush1.bf16.xpose.msra.mxu0 0
    %418 = vmatprep.subr.bf16.mxu0 0
    %419 = vmatpush1.bf16.xpose.msra.mxu0 0
    %420 = vmatprep.subr.bf16.mxu0 0
    %421 = vmatpush1.bf16.xpose.msra.mxu0 0
    %422 = vmatprep.subr.bf16.mxu0 0
    %423 = vmatpush1.bf16.xpose.msra.mxu0 0
    %424 = vmatprep.subr.bf16.mxu0 0
    %425 = vmatpush1.bf16.xpose.msra.mxu0 0
    %426 = vmatprep.subr.bf16.mxu0 0
    %427 = vmatpush1.bf16.xpose.msra.mxu0 0
    %428 = vmatprep.subr.bf16.mxu0 0
    %429 = vmatpush1.bf16.xpose.msra.mxu0 0
    %430 = vmatprep.subr.bf16.mxu0 0
    %431 = vmatpush1.bf16.xpose.msra.mxu0 0
    %432 = vmatprep.mubr.bf16.mxu0 0
    %433 = vmatmul.mubr.bf16.gmra.mrb[0].mxu0 %v395
    %v434 = vpop.f32.mrb[0].mxu0
    %v435 = vadd.f32 0.0, %v434
    %v436 = vpop.f32.mrb[0].mxu0
    %v437 = vpop.f32.mrb[0].mxu0
    %v438 = vpop.f32.mrb[0].mxu0
    %439 = vdwg.mxu0
    %440 = vrot.lane.b32.xlu0 %v169, 120
    %v441 = vpop.permute.xlu0 %440
    %442 = vrot.lane.b32.xlu0 %v169, 88
    %v443 = vpop.permute.xlu0 %442
    %v445 = vsel %vm172, %v441, 0
    %v448 = vsel %vm172, %v443, 0
    %450 = vmatprep.subr.bf16.mxu0 0
    %451 = vmatpush1.bf16.xpose.msra.mxu0 %v448
    %452 = vmatprep.subr.bf16.mxu0 0
    %453 = vmatpush1.bf16.xpose.msra.mxu0 0
    %454 = vmatprep.subr.bf16.mxu0 0
    %455 = vmatpush1.bf16.xpose.msra.mxu0 0
    %456 = vmatprep.subr.bf16.mxu0 0
    %457 = vmatpush1.bf16.xpose.msra.mxu0 0
    %458 = vmatprep.subr.bf16.mxu0 0
    %459 = vmatpush1.bf16.xpose.msra.mxu0 0
    %460 = vmatprep.subr.bf16.mxu0 0
    %461 = vmatpush1.bf16.xpose.msra.mxu0 0
    %462 = vmatprep.subr.bf16.mxu0 0
    %463 = vmatpush1.bf16.xpose.msra.mxu0 0
    %464 = vmatprep.subr.bf16.mxu0 0
    %465 = vmatpush1.bf16.xpose.msra.mxu0 0
    %466 = vmatprep.subr.bf16.mxu0 0
    %467 = vmatpush1.bf16.xpose.msra.mxu0 0
    %468 = vmatprep.subr.bf16.mxu0 0
    %469 = vmatpush1.bf16.xpose.msra.mxu0 0
    %470 = vmatprep.subr.bf16.mxu0 0
    %471 = vmatpush1.bf16.xpose.msra.mxu0 0
    %472 = vmatprep.subr.bf16.mxu0 0
    %473 = vmatpush1.bf16.xpose.msra.mxu0 0
    %474 = vmatprep.subr.bf16.mxu0 0
    %475 = vmatpush1.bf16.xpose.msra.mxu0 0
    %476 = vmatprep.subr.bf16.mxu0 0
    %477 = vmatpush1.bf16.xpose.msra.mxu0 0
    %478 = vmatprep.subr.bf16.mxu0 0
    %479 = vmatpush1.bf16.xpose.msra.mxu0 0
    %480 = vmatprep.subr.bf16.mxu0 0
    %481 = vmatpush1.bf16.xpose.msra.mxu0 0
    %482 = vmatprep.mubr.bf16.mxu0 0
    %483 = vmatmul.mubr.bf16.gmra.mrb[0].mxu0 %v445
    %v484 = vpop.f32.mrb[0].mxu0
    %v485 = vadd.f32 0.0, %v484
    %v486 = vpop.f32.mrb[0].mxu0
    %v487 = vpop.f32.mrb[0].mxu0
    %v488 = vpop.f32.mrb[0].mxu0
    %489 = vdwg.mxu0
    %v490 = vsel %vm172, %v435, -inf
    %491 = vmax.xlane.f32.xlu0 %v490
    %v492 = vpop.xlane.xlu0 %491
    %v493 = vsel %vm172, %v485, -inf
    %494 = vmax.xlane.f32.xlu0 %v493
    %v495 = vpop.xlane.xlu0 %494
    %v496 = vsub.f32 %v435, %v492
    %v497 = vsub.f32 %v485, %v495
    %v498 = vmul.f32 %v496, 1.442695
    %v499 = vpow.pop %v498
    %v500 = vmul.f32 %v497, 1.442695
    %v501 = vpow.pop %v500
    %v502 = vsel %vm172, %v499, 0.0
    %503 = vadd.xlane.f32.xlu0 %v502
    %v504 = vpop.xlane.xlu0 %503
    %v505 = vsel %vm172, %v501, 0.0
    %506 = vadd.xlane.f32.xlu0 %v505
    %v507 = vpop.xlane.xlu0 %506
    %v508 = vrcp.pop %v504
    %v509 = vrcp.pop %v507
    %v510 = vmul.f32 %v499, %v508
    %v511 = vmul.f32 %v501, %v509
    %v512 = vpack.c.bf16 %v510, %v510
    %v513 = vpack.c.bf16 %v511, %v511
    %514 = vrot.lane.b32.xlu0 %v168, 56
    %v515 = vpop.permute.xlu0 %514
    %v517 = vsel %vm172, %v512, 0
    %v520 = vsel %vm296, %v515, 0
    %522 = vmatprep.subr.bf16.mxu0 0
    %523 = vmatpush1.bf16.msra.mxu0 %v520
    %524 = vmatprep.subr.bf16.mxu0 0
    %525 = vmatpush1.bf16.msra.mxu0 0
    %526 = vmatprep.subr.bf16.mxu0 0
    %527 = vmatpush1.bf16.msra.mxu0 0
    %528 = vmatprep.subr.bf16.mxu0 0
    %529 = vmatpush1.bf16.msra.mxu0 0
    %530 = vmatprep.subr.bf16.mxu0 0
    %531 = vmatpush1.bf16.msra.mxu0 0
    %532 = vmatprep.subr.bf16.mxu0 0
    %533 = vmatpush1.bf16.msra.mxu0 0
    %534 = vmatprep.subr.bf16.mxu0 0
    %535 = vmatpush1.bf16.msra.mxu0 0
    %536 = vmatprep.subr.bf16.mxu0 0
    %537 = vmatpush1.bf16.msra.mxu0 0
    %538 = vmatprep.subr.bf16.mxu0 0
    %539 = vmatpush1.bf16.msra.mxu0 0
    %540 = vmatprep.subr.bf16.mxu0 0
    %541 = vmatpush1.bf16.msra.mxu0 0
    %542 = vmatprep.subr.bf16.mxu0 0
    %543 = vmatpush1.bf16.msra.mxu0 0
    %544 = vmatprep.subr.bf16.mxu0 0
    %545 = vmatpush1.bf16.msra.mxu0 0
    %546 = vmatprep.subr.bf16.mxu0 0
    %547 = vmatpush1.bf16.msra.mxu0 0
    %548 = vmatprep.subr.bf16.mxu0 0
    %549 = vmatpush1.bf16.msra.mxu0 0
    %550 = vmatprep.subr.bf16.mxu0 0
    %551 = vmatpush1.bf16.msra.mxu0 0
    %552 = vmatprep.subr.bf16.mxu0 0
    %553 = vmatpush1.bf16.msra.mxu0 0
    %554 = vmatprep.mubr.bf16.mxu0 0
    %555 = vmatmul.mubr.bf16.gmra.mrb[0].mxu0 %v517
    %v556 = vpop.f32.mrb[0].mxu0
    %v557 = vadd.f32 0.0, %v556
    %v558 = vpop.f32.mrb[0].mxu0
    %v559 = vpop.f32.mrb[0].mxu0
    %v560 = vpop.f32.mrb[0].mxu0
    %561 = vdwg.mxu0
    %562 = vrot.lane.b32.xlu0 %v169, 56
    %v563 = vpop.permute.xlu0 %562
    %v565 = vsel %vm172, %v513, 0
    %v568 = vsel %vm296, %v563, 0
    %570 = vmatprep.subr.bf16.mxu0 0
    %571 = vmatpush1.bf16.msra.mxu0 %v568
    %572 = vmatprep.subr.bf16.mxu0 0
    %573 = vmatpush1.bf16.msra.mxu0 0
    %574 = vmatprep.subr.bf16.mxu0 0
    %575 = vmatpush1.bf16.msra.mxu0 0
    %576 = vmatprep.subr.bf16.mxu0 0
    %577 = vmatpush1.bf16.msra.mxu0 0
    %578 = vmatprep.subr.bf16.mxu0 0
    %579 = vmatpush1.bf16.msra.mxu0 0
    %580 = vmatprep.subr.bf16.mxu0 0
    %581 = vmatpush1.bf16.msra.mxu0 0
    %582 = vmatprep.subr.bf16.mxu0 0
    %583 = vmatpush1.bf16.msra.mxu0 0
    %584 = vmatprep.subr.bf16.mxu0 0
    %585 = vmatpush1.bf16.msra.mxu0 0
    %586 = vmatprep.subr.bf16.mxu0 0
    %587 = vmatpush1.bf16.msra.mxu0 0
    %588 = vmatprep.subr.bf16.mxu0 0
    %589 = vmatpush1.bf16.msra.mxu0 0
    %590 = vmatprep.subr.bf16.mxu0 0
    %591 = vmatpush1.bf16.msra.mxu0 0
    %592 = vmatprep.subr.bf16.mxu0 0
    %593 = vmatpush1.bf16.msra.mxu0 0
    %594 = vmatprep.subr.bf16.mxu0 0
    %595 = vmatpush1.bf16.msra.mxu0 0
    %596 = vmatprep.subr.bf16.mxu0 0
    %597 = vmatpush1.bf16.msra.mxu0 0
    %598 = vmatprep.subr.bf16.mxu0 0
    %599 = vmatpush1.bf16.msra.mxu0 0
    %600 = vmatprep.subr.bf16.mxu0 0
    %601 = vmatpush1.bf16.msra.mxu0 0
    %602 = vmatprep.mubr.bf16.mxu0 0
    %603 = vmatmul.mubr.bf16.gmra.mrb[0].mxu0 %v565
    %v604 = vpop.f32.mrb[0].mxu0
    %v605 = vadd.f32 0.0, %v604
    %v606 = vpop.f32.mrb[0].mxu0
    %v607 = vpop.f32.mrb[0].mxu0
    %v608 = vpop.f32.mrb[0].mxu0
    %609 = vdwg.mxu0
    %v610 = vpack.c.bf16 %v557, %v557
    %v611 = vpack.c.bf16 %v605, %v605
    %612 = vrot.lane.b32.xlu0 %v168, 112
    %v613 = vpop.permute.xlu0 %612
    %614 = vrot.lane.b32.xlu0 %v168, 80
    %v615 = vpop.permute.xlu0 %614
    %v617 = vsel %vm172, %v613, 0
    %v620 = vsel %vm172, %v615, 0
    %622 = vmatprep.subr.bf16.mxu0 0
    %623 = vmatpush1.bf16.xpose.msra.mxu0 %v620
    %624 = vmatprep.subr.bf16.mxu0 0
    %625 = vmatpush1.bf16.xpose.msra.mxu0 0
    %626 = vmatprep.subr.bf16.mxu0 0
    %627 = vmatpush1.bf16.xpose.msra.mxu0 0
    %628 = vmatprep.subr.bf16.mxu0 0
    %629 = vmatpush1.bf16.xpose.msra.mxu0 0
    %630 = vmatprep.subr.bf16.mxu0 0
    %631 = vmatpush1.bf16.xpose.msra.mxu0 0
    %632 = vmatprep.subr.bf16.mxu0 0
    %633 = vmatpush1.bf16.xpose.msra.mxu0 0
    %634 = vmatprep.subr.bf16.mxu0 0
    %635 = vmatpush1.bf16.xpose.msra.mxu0 0
    %636 = vmatprep.subr.bf16.mxu0 0
    %637 = vmatpush1.bf16.xpose.msra.mxu0 0
    %638 = vmatprep.subr.bf16.mxu0 0
    %639 = vmatpush1.bf16.xpose.msra.mxu0 0
    %640 = vmatprep.subr.bf16.mxu0 0
    %641 = vmatpush1.bf16.xpose.msra.mxu0 0
    %642 = vmatprep.subr.bf16.mxu0 0
    %643 = vmatpush1.bf16.xpose.msra.mxu0 0
    %644 = vmatprep.subr.bf16.mxu0 0
    %645 = vmatpush1.bf16.xpose.msra.mxu0 0
    %646 = vmatprep.subr.bf16.mxu0 0
    %647 = vmatpush1.bf16.xpose.msra.mxu0 0
    %648 = vmatprep.subr.bf16.mxu0 0
    %649 = vmatpush1.bf16.xpose.msra.mxu0 0
    %650 = vmatprep.subr.bf16.mxu0 0
    %651 = vmatpush1.bf16.xpose.msra.mxu0 0
    %652 = vmatprep.subr.bf16.mxu0 0
    %653 = vmatpush1.bf16.xpose.msra.mxu0 0
    %654 = vmatprep.mubr.bf16.mxu0 0
    %655 = vmatmul.mubr.bf16.gmra.mrb[0].mxu0 %v617
    %v656 = vpop.f32.mrb[0].mxu0
    %v657 = vadd.f32 0.0, %v656
    %v658 = vpop.f32.mrb[0].mxu0
    %v659 = vpop.f32.mrb[0].mxu0
    %v660 = vpop.f32.mrb[0].mxu0
    %661 = vdwg.mxu0
    %662 = vrot.lane.b32.xlu0 %v169, 112
    %v663 = vpop.permute.xlu0 %662
    %664 = vrot.lane.b32.xlu0 %v169, 80
    %v665 = vpop.permute.xlu0 %664
    %v667 = vsel %vm172, %v663, 0
    %v670 = vsel %vm172, %v665, 0
    %672 = vmatprep.subr.bf16.mxu0 0
    %673 = vmatpush1.bf16.xpose.msra.mxu0 %v670
    %674 = vmatprep.subr.bf16.mxu0 0
    %675 = vmatpush1.bf16.xpose.msra.mxu0 0
    %676 = vmatprep.subr.bf16.mxu0 0
    %677 = vmatpush1.bf16.xpose.msra.mxu0 0
    %678 = vmatprep.subr.bf16.mxu0 0
    %679 = vmatpush1.bf16.xpose.msra.mxu0 0
    %680 = vmatprep.subr.bf16.mxu0 0
    %681 = vmatpush1.bf16.xpose.msra.mxu0 0
    %682 = vmatprep.subr.bf16.mxu0 0
    %683 = vmatpush1.bf16.xpose.msra.mxu0 0
    %684 = vmatprep.subr.bf16.mxu0 0
    %685 = vmatpush1.bf16.xpose.msra.mxu0 0
    %686 = vmatprep.subr.bf16.mxu0 0
    %687 = vmatpush1.bf16.xpose.msra.mxu0 0
    %688 = vmatprep.subr.bf16.mxu0 0
    %689 = vmatpush1.bf16.xpose.msra.mxu0 0
    %690 = vmatprep.subr.bf16.mxu0 0
    %691 = vmatpush1.bf16.xpose.msra.mxu0 0
    %692 = vmatprep.subr.bf16.mxu0 0
    %693 = vmatpush1.bf16.xpose.msra.mxu0 0
    %694 = vmatprep.subr.bf16.mxu0 0
    %695 = vmatpush1.bf16.xpose.msra.mxu0 0
    %696 = vmatprep.subr.bf16.mxu0 0
    %697 = vmatpush1.bf16.xpose.msra.mxu0 0
    %698 = vmatprep.subr.bf16.mxu0 0
    %699 = vmatpush1.bf16.xpose.msra.mxu0 0
    %700 = vmatprep.subr.bf16.mxu0 0
    %701 = vmatpush1.bf16.xpose.msra.mxu0 0
    %702 = vmatprep.subr.bf16.mxu0 0
    %703 = vmatpush1.bf16.xpose.msra.mxu0 0
    %704 = vmatprep.mubr.bf16.mxu0 0
    %705 = vmatmul.mubr.bf16.gmra.mrb[0].mxu0 %v667
    %v706 = vpop.f32.mrb[0].mxu0
    %v707 = vadd.f32 0.0, %v706
    %v708 = vpop.f32.mrb[0].mxu0
    %v709 = vpop.f32.mrb[0].mxu0
    %v710 = vpop.f32.mrb[0].mxu0
    %711 = vdwg.mxu0
    %v712 = vsel %vm172, %v657, -inf
    %713 = vmax.xlane.f32.xlu0 %v712
    %v714 = vpop.xlane.xlu0 %713
    %v715 = vsel %vm172, %v707, -inf
    %716 = vmax.xlane.f32.xlu0 %v715
    %v717 = vpop.xlane.xlu0 %716
    %v718 = vsub.f32 %v657, %v714
    %v719 = vsub.f32 %v707, %v717
    %v720 = vmul.f32 %v718, 1.442695
    %v721 = vpow.pop %v720
    %v722 = vmul.f32 %v719, 1.442695
    %v723 = vpow.pop %v722
    %v724 = vsel %vm172, %v721, 0.0
    %725 = vadd.xlane.f32.xlu0 %v724
    %v726 = vpop.xlane.xlu0 %725
    %v727 = vsel %vm172, %v723, 0.0
    %728 = vadd.xlane.f32.xlu0 %v727
    %v729 = vpop.xlane.xlu0 %728
    %v730 = vrcp.pop %v726
    %v731 = vrcp.pop %v729
    %v732 = vmul.f32 %v721, %v730
    %v733 = vmul.f32 %v723, %v731
    %v734 = vpack.c.bf16 %v732, %v732
    %v735 = vpack.c.bf16 %v733, %v733
    %736 = vrot.lane.b32.xlu0 %v168, 48
    %v737 = vpop.permute.xlu0 %736
    %v739 = vsel %vm172, %v734, 0
    %v742 = vsel %vm296, %v737, 0
    %744 = vmatprep.subr.bf16.mxu0 0
    %745 = vmatpush1.bf16.msra.mxu0 %v742
    %746 = vmatprep.subr.bf16.mxu0 0
    %747 = vmatpush1.bf16.msra.mxu0 0
    %748 = vmatprep.subr.bf16.mxu0 0
    %749 = vmatpush1.bf16.msra.mxu0 0
    %750 = vmatprep.subr.bf16.mxu0 0
    %751 = vmatpush1.bf16.msra.mxu0 0
    %752 = vmatprep.subr.bf16.mxu0 0
    %753 = vmatpush1.bf16.msra.mxu0 0
    %754 = vmatprep.subr.bf16.mxu0 0
    %755 = vmatpush1.bf16.msra.mxu0 0
    %756 = vmatprep.subr.bf16.mxu0 0
    %757 = vmatpush1.bf16.msra.mxu0 0
    %758 = vmatprep.subr.bf16.mxu0 0
    %759 = vmatpush1.bf16.msra.mxu0 0
    %760 = vmatprep.subr.bf16.mxu0 0
    %761 = vmatpush1.bf16.msra.mxu0 0
    %762 = vmatprep.subr.bf16.mxu0 0
    %763 = vmatpush1.bf16.msra.mxu0 0
    %764 = vmatprep.subr.bf16.mxu0 0
    %765 = vmatpush1.bf16.msra.mxu0 0
    %766 = vmatprep.subr.bf16.mxu0 0
    %767 = vmatpush1.bf16.msra.mxu0 0
    %768 = vmatprep.subr.bf16.mxu0 0
    %769 = vmatpush1.bf16.msra.mxu0 0
    %770 = vmatprep.subr.bf16.mxu0 0
    %771 = vmatpush1.bf16.msra.mxu0 0
    %772 = vmatprep.subr.bf16.mxu0 0
    %773 = vmatpush1.bf16.msra.mxu0 0
    %774 = vmatprep.subr.bf16.mxu0 0
    %775 = vmatpush1.bf16.msra.mxu0 0
    %776 = vmatprep.mubr.bf16.mxu0 0
    %777 = vmatmul.mubr.bf16.gmra.mrb[0].mxu0 %v739
    %v778 = vpop.f32.mrb[0].mxu0
    %v779 = vadd.f32 0.0, %v778
    %v780 = vpop.f32.mrb[0].mxu0
    %v781 = vpop.f32.mrb[0].mxu0
    %v782 = vpop.f32.mrb[0].mxu0
    %783 = vdwg.mxu0
    %784 = vrot.lane.b32.xlu0 %v169, 48
    %v785 = vpop.permute.xlu0 %784
    %v787 = vsel %vm172, %v735, 0
    %v790 = vsel %vm296, %v785, 0
    %792 = vmatprep.subr.bf16.mxu0 0
    %793 = vmatpush1.bf16.msra.mxu0 %v790
    %794 = vmatprep.subr.bf16.mxu0 0
    %795 = vmatpush1.bf16.msra.mxu0 0
    %796 = vmatprep.subr.bf16.mxu0 0
    %797 = vmatpush1.bf16.msra.mxu0 0
    %798 = vmatprep.subr.bf16.mxu0 0
    %799 = vmatpush1.bf16.msra.mxu0 0
    %800 = vmatprep.subr.bf16.mxu0 0
    %801 = vmatpush1.bf16.msra.mxu0 0
    %802 = vmatprep.subr.bf16.mxu0 0
    %803 = vmatpush1.bf16.msra.mxu0 0
    %804 = vmatprep.subr.bf16.mxu0 0
    %805 = vmatpush1.bf16.msra.mxu0 0
    %806 = vmatprep.subr.bf16.mxu0 0
    %807 = vmatpush1.bf16.msra.mxu0 0
    %808 = vmatprep.subr.bf16.mxu0 0
    %809 = vmatpush1.bf16.msra.mxu0 0
    %810 = vmatprep.subr.bf16.mxu0 0
    %811 = vmatpush1.bf16.msra.mxu0 0
    %812 = vmatprep.subr.bf16.mxu0 0
    %813 = vmatpush1.bf16.msra.mxu0 0
    %814 = vmatprep.subr.bf16.mxu0 0
    %815 = vmatpush1.bf16.msra.mxu0 0
    %816 = vmatprep.subr.bf16.mxu0 0
    %817 = vmatpush1.bf16.msra.mxu0 0
    %818 = vmatprep.subr.bf16.mxu0 0
    %819 = vmatpush1.bf16.msra.mxu0 0
    %820 = vmatprep.subr.bf16.mxu0 0
    %821 = vmatpush1.bf16.msra.mxu0 0
    %822 = vmatprep.subr.bf16.mxu0 0
    %823 = vmatpush1.bf16.msra.mxu0 0
    %824 = vmatprep.mubr.bf16.mxu0 0
    %825 = vmatmul.mubr.bf16.gmra.mrb[0].mxu0 %v787
    %v826 = vpop.f32.mrb[0].mxu0
    %v827 = vadd.f32 0.0, %v826
    %v828 = vpop.f32.mrb[0].mxu0
    %v829 = vpop.f32.mrb[0].mxu0
    %v830 = vpop.f32.mrb[0].mxu0
    %831 = vdwg.mxu0
    %v832 = vpack.c.bf16 %v779, %v779
    %v833 = vpack.c.bf16 %v827, %v827
    %834 = vrot.lane.b32.xlu0 %v168, 104
    %v835 = vpop.permute.xlu0 %834
    %836 = vrot.lane.b32.xlu0 %v168, 72
    %v837 = vpop.permute.xlu0 %836
    %v839 = vsel %vm172, %v835, 0
    %v842 = vsel %vm172, %v837, 0
    %844 = vmatprep.subr.bf16.mxu0 0
    %845 = vmatpush1.bf16.xpose.msra.mxu0 %v842
    %846 = vmatprep.subr.bf16.mxu0 0
    %847 = vmatpush1.bf16.xpose.msra.mxu0 0
    %848 = vmatprep.subr.bf16.mxu0 0
    %849 = vmatpush1.bf16.xpose.msra.mxu0 0
    %850 = vmatprep.subr.bf16.mxu0 0
    %851 = vmatpush1.bf16.xpose.msra.mxu0 0
    %852 = vmatprep.subr.bf16.mxu0 0
    %853 = vmatpush1.bf16.xpose.msra.mxu0 0
    %854 = vmatprep.subr.bf16.mxu0 0
    %855 = vmatpush1.bf16.xpose.msra.mxu0 0
    %856 = vmatprep.subr.bf16.mxu0 0
    %857 = vmatpush1.bf16.xpose.msra.mxu0 0
    %858 = vmatprep.subr.bf16.mxu0 0
    %859 = vmatpush1.bf16.xpose.msra.mxu0 0
    %860 = vmatprep.subr.bf16.mxu0 0
    %861 = vmatpush1.bf16.xpose.msra.mxu0 0
    %862 = vmatprep.subr.bf16.mxu0 0
    %863 = vmatpush1.bf16.xpose.msra.mxu0 0
    %864 = vmatprep.subr.bf16.mxu0 0
    %865 = vmatpush1.bf16.xpose.msra.mxu0 0
    %866 = vmatprep.subr.bf16.mxu0 0
    %867 = vmatpush1.bf16.xpose.msra.mxu0 0
    %868 = vmatprep.subr.bf16.mxu0 0
    %869 = vmatpush1.bf16.xpose.msra.mxu0 0
    %870 = vmatprep.subr.bf16.mxu0 0
    %871 = vmatpush1.bf16.xpose.msra.mxu0 0
    %872 = vmatprep.subr.bf16.mxu0 0
    %873 = vmatpush1.bf16.xpose.msra.mxu0 0
    %874 = vmatprep.subr.bf16.mxu0 0
    %875 = vmatpush1.bf16.xpose.msra.mxu0 0
    %876 = vmatprep.mubr.bf16.mxu0 0
    %877 = vmatmul.mubr.bf16.gmra.mrb[0].mxu0 %v839
    %v878 = vpop.f32.mrb[0].mxu0
    %v879 = vadd.f32 0.0, %v878
    %v880 = vpop.f32.mrb[0].mxu0
    %v881 = vpop.f32.mrb[0].mxu0
    %v882 = vpop.f32.mrb[0].mxu0
    %883 = vdwg.mxu0
    %884 = vrot.lane.b32.xlu0 %v169, 104
    %v885 = vpop.permute.xlu0 %884
    %886 = vrot.lane.b32.xlu0 %v169, 72
    %v887 = vpop.permute.xlu0 %886
    %v889 = vsel %vm172, %v885, 0
    %v892 = vsel %vm172, %v887, 0
    %894 = vmatprep.subr.bf16.mxu0 0
    %895 = vmatpush1.bf16.xpose.msra.mxu0 %v892
    %896 = vmatprep.subr.bf16.mxu0 0
    %897 = vmatpush1.bf16.xpose.msra.mxu0 0
    %898 = vmatprep.subr.bf16.mxu0 0
    %899 = vmatpush1.bf16.xpose.msra.mxu0 0
    %900 = vmatprep.subr.bf16.mxu0 0
    %901 = vmatpush1.bf16.xpose.msra.mxu0 0
    %902 = vmatprep.subr.bf16.mxu0 0
    %903 = vmatpush1.bf16.xpose.msra.mxu0 0
    %904 = vmatprep.subr.bf16.mxu0 0
    %905 = vmatpush1.bf16.xpose.msra.mxu0 0
    %906 = vmatprep.subr.bf16.mxu0 0
    %907 = vmatpush1.bf16.xpose.msra.mxu0 0
    %908 = vmatprep.subr.bf16.mxu0 0
    %909 = vmatpush1.bf16.xpose.msra.mxu0 0
    %910 = vmatprep.subr.bf16.mxu0 0
    %911 = vmatpush1.bf16.xpose.msra.mxu0 0
    %912 = vmatprep.subr.bf16.mxu0 0
    %913 = vmatpush1.bf16.xpose.msra.mxu0 0
    %914 = vmatprep.subr.bf16.mxu0 0
    %915 = vmatpush1.bf16.xpose.msra.mxu0 0
    %916 = vmatprep.subr.bf16.mxu0 0
    %917 = vmatpush1.bf16.xpose.msra.mxu0 0
    %918 = vmatprep.subr.bf16.mxu0 0
    %919 = vmatpush1.bf16.xpose.msra.mxu0 0
    %920 = vmatprep.subr.bf16.mxu0 0
    %921 = vmatpush1.bf16.xpose.msra.mxu0 0
    %922 = vmatprep.subr.bf16.mxu0 0
    %923 = vmatpush1.bf16.xpose.msra.mxu0 0
    %924 = vmatprep.subr.bf16.mxu0 0
    %925 = vmatpush1.bf16.xpose.msra.mxu0 0
    %926 = vmatprep.mubr.bf16.mxu0 0
    %927 = vmatmul.mubr.bf16.gmra.mrb[0].mxu0 %v889
    %v928 = vpop.f32.mrb[0].mxu0
    %v929 = vadd.f32 0.0, %v928
    %v930 = vpop.f32.mrb[0].mxu0
    %v931 = vpop.f32.mrb[0].mxu0
    %v932 = vpop.f32.mrb[0].mxu0
    %933 = vdwg.mxu0
    %v934 = vsel %vm172, %v879, -inf
    %935 = vmax.xlane.f32.xlu0 %v934
    %v936 = vpop.xlane.xlu0 %935
    %v937 = vsel %vm172, %v929, -inf
    %938 = vmax.xlane.f32.xlu0 %v937
    %v939 = vpop.xlane.xlu0 %938
    %v940 = vsub.f32 %v879, %v936
    %v941 = vsub.f32 %v929, %v939
    %v942 = vmul.f32 %v940, 1.442695
    %v943 = vpow.pop %v942
    %v944 = vmul.f32 %v941, 1.442695
    %v945 = vpow.pop %v944
    %v946 = vsel %vm172, %v943, 0.0
    %947 = vadd.xlane.f32.xlu0 %v946
    %v948 = vpop.xlane.xlu0 %947
    %v949 = vsel %vm172, %v945, 0.0
    %950 = vadd.xlane.f32.xlu0 %v949
    %v951 = vpop.xlane.xlu0 %950
    %v952 = vrcp.pop %v948
    %v953 = vrcp.pop %v951
    %v954 = vmul.f32 %v943, %v952
    %v955 = vmul.f32 %v945, %v953
    %v956 = vpack.c.bf16 %v954, %v954
    %v957 = vpack.c.bf16 %v955, %v955
    %958 = vrot.lane.b32.xlu0 %v168, 40
    %v959 = vpop.permute.xlu0 %958
    %v961 = vsel %vm172, %v956, 0
    %v964 = vsel %vm296, %v959, 0
    %966 = vmatprep.subr.bf16.mxu0 0
    %967 = vmatpush1.bf16.msra.mxu0 %v964
    %968 = vmatprep.subr.bf16.mxu0 0
    %969 = vmatpush1.bf16.msra.mxu0 0
    %970 = vmatprep.subr.bf16.mxu0 0
    %971 = vmatpush1.bf16.msra.mxu0 0
    %972 = vmatprep.subr.bf16.mxu0 0
    %973 = vmatpush1.bf16.msra.mxu0 0
    %974 = vmatprep.subr.bf16.mxu0 0
    %975 = vmatpush1.bf16.msra.mxu0 0
    %976 = vmatprep.subr.bf16.mxu0 0
    %977 = vmatpush1.bf16.msra.mxu0 0
    %978 = vmatprep.subr.bf16.mxu0 0
    %979 = vmatpush1.bf16.msra.mxu0 0
    %980 = vmatprep.subr.bf16.mxu0 0
    %981 = vmatpush1.bf16.msra.mxu0 0
    %982 = vmatprep.subr.bf16.mxu0 0
    %983 = vmatpush1.bf16.msra.mxu0 0
    %984 = vmatprep.subr.bf16.mxu0 0
    %985 = vmatpush1.bf16.msra.mxu0 0
    %986 = vmatprep.subr.bf16.mxu0 0
    %987 = vmatpush1.bf16.msra.mxu0 0
    %988 = vmatprep.subr.bf16.mxu0 0
    %989 = vmatpush1.bf16.msra.mxu0 0
    %990 = vmatprep.subr.bf16.mxu0 0
    %991 = vmatpush1.bf16.msra.mxu0 0
    %992 = vmatprep.subr.bf16.mxu0 0
    %993 = vmatpush1.bf16.msra.mxu0 0
    %994 = vmatprep.subr.bf16.mxu0 0
    %995 = vmatpush1.bf16.msra.mxu0 0
    %996 = vmatprep.subr.bf16.mxu0 0
    %997 = vmatpush1.bf16.msra.mxu0 0
    %998 = vmatprep.mubr.bf16.mxu0 0
    %999 = vmatmul.mubr.bf16.gmra.mrb[0].mxu0 %v961
    %v1000 = vpop.f32.mrb[0].mxu0
    %v1001 = vadd.f32 0.0, %v1000
    %v1002 = vpop.f32.mrb[0].mxu0
    %v1003 = vpop.f32.mrb[0].mxu0
    %v1004 = vpop.f32.mrb[0].mxu0
    %1005 = vdwg.mxu0
    %1006 = vrot.lane.b32.xlu0 %v169, 40
    %v1007 = vpop.permute.xlu0 %1006
    %v1009 = vsel %vm172, %v957, 0
    %v1012 = vsel %vm296, %v1007, 0
    %1014 = vmatprep.subr.bf16.mxu0 0
    %1015 = vmatpush1.bf16.msra.mxu0 %v1012
    %1016 = vmatprep.subr.bf16.mxu0 0
    %1017 = vmatpush1.bf16.msra.mxu0 0
    %1018 = vmatprep.subr.bf16.mxu0 0
    %1019 = vmatpush1.bf16.msra.mxu0 0
    %1020 = vmatprep.subr.bf16.mxu0 0
    %1021 = vmatpush1.bf16.msra.mxu0 0
    %1022 = vmatprep.subr.bf16.mxu0 0
    %1023 = vmatpush1.bf16.msra.mxu0 0
    %1024 = vmatprep.subr.bf16.mxu0 0
    %1025 = vmatpush1.bf16.msra.mxu0 0
    %1026 = vmatprep.subr.bf16.mxu0 0
    %1027 = vmatpush1.bf16.msra.mxu0 0
    %1028 = vmatprep.subr.bf16.mxu0 0
    %1029 = vmatpush1.bf16.msra.mxu0 0
    %1030 = vmatprep.subr.bf16.mxu0 0
    %1031 = vmatpush1.bf16.msra.mxu0 0
    %1032 = vmatprep.subr.bf16.mxu0 0
    %1033 = vmatpush1.bf16.msra.mxu0 0
    %1034 = vmatprep.subr.bf16.mxu0 0
    %1035 = vmatpush1.bf16.msra.mxu0 0
    %1036 = vmatprep.subr.bf16.mxu0 0
    %1037 = vmatpush1.bf16.msra.mxu0 0
    %1038 = vmatprep.subr.bf16.mxu0 0
    %1039 = vmatpush1.bf16.msra.mxu0 0
    %1040 = vmatprep.subr.bf16.mxu0 0
    %1041 = vmatpush1.bf16.msra.mxu0 0
    %1042 = vmatprep.subr.bf16.mxu0 0
    %1043 = vmatpush1.bf16.msra.mxu0 0
    %1044 = vmatprep.subr.bf16.mxu0 0
    %1045 = vmatpush1.bf16.msra.mxu0 0
    %1046 = vmatprep.mubr.bf16.mxu0 0
    %1047 = vmatmul.mubr.bf16.gmra.mrb[0].mxu0 %v1009
    %v1048 = vpop.f32.mrb[0].mxu0
    %v1049 = vadd.f32 0.0, %v1048
    %v1050 = vpop.f32.mrb[0].mxu0
    %v1051 = vpop.f32.mrb[0].mxu0
    %v1052 = vpop.f32.mrb[0].mxu0
    %1053 = vdwg.mxu0
    %v1054 = vpack.c.bf16 %v1001, %v1001
    %v1055 = vpack.c.bf16 %v1049, %v1049
    %1058 = vrot.lane.b32.xlu0 %v610, 8
    %v1059 = vpop.permute.xlu0 %1058
    %1060 = vrot.lane.b32.xlu0 %v611, 8
    %v1061 = vpop.permute.xlu0 %1060
    %1064 = vrot.lane.b32.xlu0 %v832, 16
    %v1065 = vpop.permute.xlu0 %1064
    %1066 = vrot.lane.b32.xlu0 %v833, 16
    %v1067 = vpop.permute.xlu0 %1066
    %1070 = vrot.lane.b32.xlu0 %v1054, 24
    %v1071 = vpop.permute.xlu0 %1070
    %1072 = vrot.lane.b32.xlu0 %v1055, 24
    %v1073 = vpop.permute.xlu0 %1072
    %v1076 = vsel %vm172, %v388, %v1059
    %v1079 = vsel %vm172, %v389, %v1061
    %vm1080 = vcmask 130048
    %v1082 = vsel %vm1080, %v1076, %v1065
    %v1084 = vsel %vm1080, %v1079, %v1067
    %vm1085 = vcmask 195584
    %v1087 = vsel %vm1085, %v1082, %v1071
    %v1089 = vsel %vm1085, %v1084, %v1073
    %v1090 = vld [vmem:[%s3] sm:$0xf]
    %v1091 = vld [vmem:[%s3 + $0x4] sm:$0xf]
    %v1092 = vld [vmem:[%s3 + $0x8] sm:$0xf]
    %v1093 = vld [vmem:[%s3 + $0xc] sm:$0xf]
    %v1094 = vlaneseq
    %v1095 = vshrl.u32 %v1094, 7
    %v1096 = vsub.s32 2, %v1095
    %v1097 = vrot.slane %v62, %v1096
    %v1100 = vunpack.c.l.b16 %v1087
    %v1101 = vunpack.c.l.b16 %v1089
    %v1102 = vpack.c.b16 %v1101, %v1100
    %v1107 = vunpack.c.l.b16 %v1090
    %v1108 = vunpack.c.l.b16 %v1091
    %v1109 = vunpack.c.l.b16 %v1092
    %v1110 = vunpack.c.l.b16 %v1093
    %v1111 = vpack.c.b16 %v1108, %v1107
    %v1112 = vpack.c.b16 %v1110, %v1109
    %v1116 = vsel %vm63, %v1102, 0
    %1118 = vmatprep.subr.bf16.mxu0 0
    %1119 = vmatpush1.bf16.msra.mxu0 %v1111
    %1120 = vmatprep.subr.bf16.mxu0 0
    %1121 = vmatpush1.bf16.msra.mxu0 %v1112
    %1122 = vmatprep.subr.bf16.mxu0 0
    %1123 = vmatpush1.bf16.msra.mxu0 0
    %1124 = vmatprep.subr.bf16.mxu0 0
    %1125 = vmatpush1.bf16.msra.mxu0 0
    %1126 = vmatprep.subr.bf16.mxu0 0
    %1127 = vmatpush1.bf16.msra.mxu0 0
    %1128 = vmatprep.subr.bf16.mxu0 0
    %1129 = vmatpush1.bf16.msra.mxu0 0
    %1130 = vmatprep.subr.bf16.mxu0 0
    %1131 = vmatpush1.bf16.msra.mxu0 0
    %1132 = vmatprep.subr.bf16.mxu0 0
    %1133 = vmatpush1.bf16.msra.mxu0 0
    %1134 = vmatprep.subr.bf16.mxu0 0
    %1135 = vmatpush1.bf16.msra.mxu0 0
    %1136 = vmatprep.subr.bf16.mxu0 0
    %1137 = vmatpush1.bf16.msra.mxu0 0
    %1138 = vmatprep.subr.bf16.mxu0 0
    %1139 = vmatpush1.bf16.msra.mxu0 0
    %1140 = vmatprep.subr.bf16.mxu0 0
    %1141 = vmatpush1.bf16.msra.mxu0 0
    %1142 = vmatprep.subr.bf16.mxu0 0
    %1143 = vmatpush1.bf16.msra.mxu0 0
    %1144 = vmatprep.subr.bf16.mxu0 0
    %1145 = vmatpush1.bf16.msra.mxu0 0
    %1146 = vmatprep.subr.bf16.mxu0 0
    %1147 = vmatpush1.bf16.msra.mxu0 0
    %1148 = vmatprep.subr.bf16.mxu0 0
    %1149 = vmatpush1.bf16.msra.mxu0 0
    %1150 = vmatprep.mubr.bf16.mxu0 0
    %1151 = vmatmul.mubr.bf16.gmra.mrb[0].mxu0 %v1116
    %v1152 = vpop.f32.mrb[0].mxu0
    %v1153 = vadd.f32 %v1097, %v1152
    %v1154 = vpop.f32.mrb[0].mxu0
    %v1155 = vpop.f32.mrb[0].mxu0
    %v1156 = vadd.f32 %v1097, %v1155
    %v1157 = vpop.f32.mrb[0].mxu0
    %1158 = vdwg.mxu0
    %v1159 = vadd.f32 %v60, %v1153
    %v1160 = vadd.f32 %v61, %v1156
    %v1161 = vsel %vm63, %v1159, 0.0
    %1162 = vadd.xlane.f32.xlu0 %v1161
    %v1163 = vpop.xlane.xlu0 %1162
    %v1164 = vsel %vm63, %v1160, 0.0
    %1165 = vadd.xlane.f32.xlu0 %v1164
    %v1166 = vpop.xlane.xlu0 %1165
    %v1167 = vmul.f32 %v1163, %v70
    %v1168 = vmul.f32 %v1166, %v70
    %v1169 = vsub.f32 %v1159, %v1167
    %v1170 = vsub.f32 %v1160, %v1168
    %v1171 = vmul.f32 %v1169, %v1169
    %v1172 = vmul.f32 %v1170, %v1170
    %v1173 = vsel %vm63, %v1171, 0.0
    %1174 = vadd.xlane.f32.xlu0 %v1173
    %v1175 = vpop.xlane.xlu0 %1174
    %v1176 = vsel %vm63, %v1172, 0.0
    %1177 = vadd.xlane.f32.xlu0 %v1176
    %v1178 = vpop.xlane.xlu0 %1177
    %v1179 = vmul.f32 %v1175, %v70
    %v1180 = vmul.f32 %v1178, %v70
    %v1181 = vadd.f32 %v1179, 1e-05
    %v1182 = vadd.f32 %v1180, 1e-05
    %v1183 = vrsqrt.pop %v1181
    %v1184 = vrsqrt.pop %v1182
    %v1185 = vmul.f32 %v1169, %v1183
    %v1186 = vmul.f32 %v1170, %v1184
    %v1187 = vlaneseq
    %v1188 = vshrl.u32 %v1187, 7
    %v1189 = vsub.s32 3, %v1188
    %v1190 = vrot.slane %v62, %v1189
    %v1191 = vmul.f32 %v1185, %v1190
    %v1192 = vmul.f32 %v1186, %v1190
    %v1193 = vlaneseq
    %v1194 = vshrl.u32 %v1193, 7
    %v1195 = vsub.s32 4, %v1194
    %v1196 = vrot.slane %v62, %v1195
    %v1197 = vadd.f32 %v1191, %v1196
    %v1198 = vadd.f32 %v1192, %v1196
    %v1199 = vpack.c.bf16 %v1198, %v1197
    %v1200 = vld [vmem:[%s4] sm:$0xf]
    %v1201 = vld [vmem:[%s4 + $0x4] sm:$0xf]
    %v1202 = vld [vmem:[%s4 + $0x8] sm:$0xf]
    %v1203 = vld [vmem:[%s4 + $0xc] sm:$0xf]
    %v1204 = vld [vmem:[%s7] sm:$0x1]
    %v1206 = vlaneseq
    %v1207 = vshrl.u32 %v1206, 7
    %v1208 = vsub.s32 0, %v1207
    %v1209 = vrot.slane %v1204, %v1208
    %v1215 = vunpack.c.l.b16 %v1200
    %v1216 = vunpack.c.l.b16 %v1201
    %v1217 = vunpack.c.l.b16 %v1202
    %v1218 = vunpack.c.l.b16 %v1203
    %v1219 = vpack.c.b16 %v1216, %v1215
    %v1220 = vpack.c.b16 %v1218, %v1217
    %v1224 = vsel %vm63, %v1199, 0
    %1226 = vmatprep.subr.bf16.mxu0 0
    %1227 = vmatpush1.bf16.msra.mxu0 %v1219
    %1228 = vmatprep.subr.bf16.mxu0 0
    %1229 = vmatpush1.bf16.msra.mxu0 %v1220
    %1230 = vmatprep.subr.bf16.mxu0 0
    %1231 = vmatpush1.bf16.msra.mxu0 0
    %1232 = vmatprep.subr.bf16.mxu0 0
    %1233 = vmatpush1.bf16.msra.mxu0 0
    %1234 = vmatprep.subr.bf16.mxu0 0
    %1235 = vmatpush1.bf16.msra.mxu0 0
    %1236 = vmatprep.subr.bf16.mxu0 0
    %1237 = vmatpush1.bf16.msra.mxu0 0
    %1238 = vmatprep.subr.bf16.mxu0 0
    %1239 = vmatpush1.bf16.msra.mxu0 0
    %1240 = vmatprep.subr.bf16.mxu0 0
    %1241 = vmatpush1.bf16.msra.mxu0 0
    %1242 = vmatprep.subr.bf16.mxu0 0
    %1243 = vmatpush1.bf16.msra.mxu0 0
    %1244 = vmatprep.subr.bf16.mxu0 0
    %1245 = vmatpush1.bf16.msra.mxu0 0
    %1246 = vmatprep.subr.bf16.mxu0 0
    %1247 = vmatpush1.bf16.msra.mxu0 0
    %1248 = vmatprep.subr.bf16.mxu0 0
    %1249 = vmatpush1.bf16.msra.mxu0 0
    %1250 = vmatprep.subr.bf16.mxu0 0
    %1251 = vmatpush1.bf16.msra.mxu0 0
    %1252 = vmatprep.subr.bf16.mxu0 0
    %1253 = vmatpush1.bf16.msra.mxu0 0
    %1254 = vmatprep.subr.bf16.mxu0 0
    %1255 = vmatpush1.bf16.msra.mxu0 0
    %1256 = vmatprep.subr.bf16.mxu0 0
    %1257 = vmatpush1.bf16.msra.mxu0 0
    %1258 = vmatprep.mubr.bf16.mxu0 0
    %1259 = vmatmul.mubr.bf16.gmra.mrb[0].mxu0 %v1224
    %v1260 = vpop.f32.mrb[0].mxu0
    %v1261 = vadd.f32 %v1209, %v1260
    %v1262 = vpop.f32.mrb[0].mxu0
    %v1263 = vpop.f32.mrb[0].mxu0
    %v1264 = vadd.f32 %v1209, %v1263
    %v1265 = vpop.f32.mrb[0].mxu0
    %1266 = vdwg.mxu0
    %v1267 = vmul.f32 %v1261, %v1261
    %v1268 = vmul.f32 %v1264, %v1264
    %v1269 = vmul.f32 %v1261, %v1267
    %v1270 = vmul.f32 %v1264, %v1268
    %v1271 = vmul.f32 %v1269, 0.044715
    %v1272 = vmul.f32 %v1270, 0.044715
    %v1273 = vadd.f32 %v1261, %v1271
    %v1274 = vadd.f32 %v1264, %v1272
    %v1275 = vmul.f32 %v1273, 0.7978846
    %v1276 = vmul.f32 %v1274, 0.7978846
    %v1277 = vtanh.pop %v1275
    %v1278 = vtanh.pop %v1276
    %v1279 = vadd.f32 %v1277, 1.0
    %v1280 = vadd.f32 %v1278, 1.0
    %v1281 = vmul.f32 %v1279, 0.5
    %v1282 = vmul.f32 %v1280, 0.5
    %v1283 = vmul.f32 %v1261, %v1281
    %v1284 = vmul.f32 %v1264, %v1282
    %v1285 = vpack.c.bf16 %v1284, %v1283
    %v1286 = vld [vmem:[%s5] sm:$0xf]
    %v1287 = vld [vmem:[%s5 + $0x4] sm:$0xf]
    %v1288 = vld [vmem:[%s5 + $0x8] sm:$0xf]
    %v1289 = vld [vmem:[%s5 + $0xc] sm:$0xf]
    %v1290 = vld [vmem:[%s5 + $0x10] sm:$0xf]
    %v1291 = vld [vmem:[%s5 + $0x14] sm:$0xf]
    %v1292 = vld [vmem:[%s5 + $0x18] sm:$0xf]
    %v1293 = vld [vmem:[%s5 + $0x1c] sm:$0xf]
    %v1294 = vlaneseq
    %v1295 = vshrl.u32 %v1294, 7
    %v1296 = vsub.s32 5, %v1295
    %v1297 = vrot.slane %v62, %v1296
    %v1306 = vunpack.c.l.b16 %v1286
    %v1307 = vunpack.c.l.b16 %v1287
    %v1308 = vunpack.c.l.b16 %v1288
    %v1309 = vunpack.c.l.b16 %v1289
    %v1310 = vunpack.c.l.b16 %v1290
    %v1311 = vunpack.c.l.b16 %v1291
    %v1312 = vunpack.c.l.b16 %v1292
    %v1313 = vunpack.c.l.b16 %v1293
    %v1314 = vpack.c.b16 %v1307, %v1306
    %v1315 = vpack.c.b16 %v1309, %v1308
    %v1316 = vpack.c.b16 %v1311, %v1310
    %v1317 = vpack.c.b16 %v1313, %v1312
    %vm1322 = vcmask 523264
    %v1324 = vsel %vm1322, %v1285, 0
    %1326 = vmatprep.subr.bf16.mxu0 0
    %1327 = vmatpush1.bf16.msra.mxu0 %v1314
    %1328 = vmatprep.subr.bf16.mxu0 0
    %1329 = vmatpush1.bf16.msra.mxu0 %v1315
    %1330 = vmatprep.subr.bf16.mxu0 0
    %1331 = vmatpush1.bf16.msra.mxu0 %v1316
    %1332 = vmatprep.subr.bf16.mxu0 0
    %1333 = vmatpush1.bf16.msra.mxu0 %v1317
    %1334 = vmatprep.subr.bf16.mxu0 0
    %1335 = vmatpush1.bf16.msra.mxu0 0
    %1336 = vmatprep.subr.bf16.mxu0 0
    %1337 = vmatpush1.bf16.msra.mxu0 0
    %1338 = vmatprep.subr.bf16.mxu0 0
    %1339 = vmatpush1.bf16.msra.mxu0 0
    %1340 = vmatprep.subr.bf16.mxu0 0
    %1341 = vmatpush1.bf16.msra.mxu0 0
    %1342 = vmatprep.subr.bf16.mxu0 0
    %1343 = vmatpush1.bf16.msra.mxu0 0
    %1344 = vmatprep.subr.bf16.mxu0 0
    %1345 = vmatpush1.bf16.msra.mxu0 0
    %1346 = vmatprep.subr.bf16.mxu0 0
    %1347 = vmatpush1.bf16.msra.mxu0 0
    %1348 = vmatprep.subr.bf16.mxu0 0
    %1349 = vmatpush1.bf16.msra.mxu0 0
    %1350 = vmatprep.subr.bf16.mxu0 0
    %1351 = vmatpush1.bf16.msra.mxu0 0
    %1352 = vmatprep.subr.bf16.mxu0 0
    %1353 = vmatpush1.bf16.msra.mxu0 0
    %1354 = vmatprep.subr.bf16.mxu0 0
    %1355 = vmatpush1.bf16.msra.mxu0 0
    %1356 = vmatprep.subr.bf16.mxu0 0
    %1357 = vmatpush1.bf16.msra.mxu0 0
    %1358 = vmatprep.mubr.bf16.mxu0 0
    %1359 = vmatmul.mubr.bf16.gmra.mrb[0].mxu0 %v1324
    %v1360 = vpop.f32.mrb[0].mxu0
    %v1361 = vadd.f32 %v1297, %v1360
    %v1362 = vpop.f32.mrb[0].mxu0
    %v1363 = vpop.f32.mrb[0].mxu0
    %v1364 = vadd.f32 %v1297, %v1363
    %v1365 = vpop.f32.mrb[0].mxu0
    %1366 = vdwg.mxu0
    %v1367 = vadd.f32 %v1159, %v1361
    %v1368 = vadd.f32 %v1160, %v1364
    %s1369 = scalar_lea.vmem %s6, 8
    %v1370 = vld [vmem:[%s1369] sm:$0x3f]
    %v1371 = vsel %vm63, %v1367, 0.0
    %1372 = vadd.xlane.f32.xlu0 %v1371
    %v1373 = vpop.xlane.xlu0 %1372
    %v1374 = vsel %vm63, %v1368, 0.0
    %1375 = vadd.xlane.f32.xlu0 %v1374
    %v1376 = vpop.xlane.xlu0 %1375
    %v1377 = vmul.f32 %v1373, %v70
    %v1378 = vmul.f32 %v1376, %v70
    %v1379 = vsub.f32 %v1367, %v1377
    %v1380 = vsub.f32 %v1368, %v1378
    %v1381 = vmul.f32 %v1379, %v1379
    %v1382 = vmul.f32 %v1380, %v1380
    %v1383 = vsel %vm63, %v1381, 0.0
    %1384 = vadd.xlane.f32.xlu0 %v1383
    %v1385 = vpop.xlane.xlu0 %1384
    %v1386 = vsel %vm63, %v1382, 0.0
    %1387 = vadd.xlane.f32.xlu0 %v1386
    %v1388 = vpop.xlane.xlu0 %1387
    %v1389 = vmul.f32 %v1385, %v70
    %v1390 = vmul.f32 %v1388, %v70
    %v1391 = vadd.f32 %v1389, 1e-05
    %v1392 = vadd.f32 %v1390, 1e-05
    %v1393 = vrsqrt.pop %v1391
    %v1394 = vrsqrt.pop %v1392
    %v1395 = vmul.f32 %v1379, %v1393
    %v1396 = vmul.f32 %v1380, %v1394
    %v1397 = vlaneseq
    %v1398 = vshrl.u32 %v1397, 7
    %v1399 = vsub.s32 0, %v1398
    %v1400 = vrot.slane %v1370, %v1399
    %v1401 = vmul.f32 %v1395, %v1400
    %v1402 = vmul.f32 %v1396, %v1400
    %v1403 = vlaneseq
    %v1404 = vshrl.u32 %v1403, 7
    %v1405 = vsub.s32 1, %v1404
    %v1406 = vrot.slane %v1370, %v1405
    %v1407 = vadd.f32 %v1401, %v1406
    %v1408 = vadd.f32 %v1402, %v1406
    %v1409 = vpack.c.bf16 %v1408, %v1407
    %s1410 = scalar_lea.vmem %s2, 16
    %v1411 = vld [vmem:[%s1410] sm:$0xf]
    %v1412 = vld [vmem:[%s1410 + $0x4] sm:$0xf]
    %v1413 = vld [vmem:[%s1410 + $0x8] sm:$0xf]
    %v1414 = vld [vmem:[%s1410 + $0xc] sm:$0xf]
    %v1419 = vunpack.c.l.b16 %v1411
    %v1420 = vunpack.c.l.b16 %v1412
    %v1421 = vunpack.c.l.b16 %v1413
    %v1422 = vunpack.c.l.b16 %v1414
    %v1423 = vpack.c.b16 %v1420, %v1419
    %v1424 = vpack.c.b16 %v1422, %v1421
    %v1428 = vsel %vm63, %v1409, 0
    %1430 = vmatprep.subr.bf16.mxu0 0
    %1431 = vmatpush1.bf16.msra.mxu0 %v1423
    %1432 = vmatprep.subr.bf16.mxu0 0
    %1433 = vmatpush1.bf16.msra.mxu0 %v1424
    %1434 = vmatprep.subr.bf16.mxu0 0
    %1435 = vmatpush1.bf16.msra.mxu0 0
    %1436 = vmatprep.subr.bf16.mxu0 0
    %1437 = vmatpush1.bf16.msra.mxu0 0
    %1438 = vmatprep.subr.bf16.mxu0 0
    %1439 = vmatpush1.bf16.msra.mxu0 0
    %1440 = vmatprep.subr.bf16.mxu0 0
    %1441 = vmatpush1.bf16.msra.mxu0 0
    %1442 = vmatprep.subr.bf16.mxu0 0
    %1443 = vmatpush1.bf16.msra.mxu0 0
    %1444 = vmatprep.subr.bf16.mxu0 0
    %1445 = vmatpush1.bf16.msra.mxu0 0
    %1446 = vmatprep.subr.bf16.mxu0 0
    %1447 = vmatpush1.bf16.msra.mxu0 0
    %1448 = vmatprep.subr.bf16.mxu0 0
    %1449 = vmatpush1.bf16.msra.mxu0 0
    %1450 = vmatprep.subr.bf16.mxu0 0
    %1451 = vmatpush1.bf16.msra.mxu0 0
    %1452 = vmatprep.subr.bf16.mxu0 0
    %1453 = vmatpush1.bf16.msra.mxu0 0
    %1454 = vmatprep.subr.bf16.mxu0 0
    %1455 = vmatpush1.bf16.msra.mxu0 0
    %1456 = vmatprep.subr.bf16.mxu0 0
    %1457 = vmatpush1.bf16.msra.mxu0 0
    %1458 = vmatprep.subr.bf16.mxu0 0
    %1459 = vmatpush1.bf16.msra.mxu0 0
    %1460 = vmatprep.subr.bf16.mxu0 0
    %1461 = vmatpush1.bf16.msra.mxu0 0
    %1462 = vmatprep.mubr.bf16.mxu0 0
    %1463 = vmatmul.mubr.bf16.gmra.mrb[0].mxu0 %v1428
    %v1464 = vpop.f32.mrb[0].mxu0
    %v1465 = vadd.f32 0.0, %v1464
    %v1466 = vpop.f32.mrb[0].mxu0
    %v1467 = vpop.f32.mrb[0].mxu0
    %v1468 = vadd.f32 0.0, %v1467
    %v1469 = vpop.f32.mrb[0].mxu0
    %1470 = vdwg.mxu0
    %v1471 = vpack.c.bf16 %v1468, %v1465
    %v1473 = vunpack.c.l.b16 %v1471
    %v1474 = vunpack.c.h.b16 %v1471
    %v1475 = vpack.c.b16 %v1473, %v1473
    %v1476 = vpack.c.b16 %v1474, %v1474
    %1477 = vrot.lane.b32.xlu0 %v1475, 96
    %v1478 = vpop.permute.xlu0 %1477
    %v1480 = vsel %vm172, %v1475, 0
    %v1483 = vsel %vm172, %v1478, 0
    %1485 = vmatprep.subr.bf16.mxu0 0
    %1486 = vmatpush1.bf16.xpose.msra.mxu0 %v1483
    %1487 = vmatprep.subr.bf16.mxu0 0
    %1488 = vmatpush1.bf16.xpose.msra.mxu0 0
    %1489 = vmatprep.subr.bf16.mxu0 0
    %1490 = vmatpush1.bf16.xpose.msra.mxu0 0
    %1491 = vmatprep.subr.bf16.mxu0 0
    %1492 = vmatpush1.bf16.xpose.msra.mxu0 0
    %1493 = vmatprep.subr.bf16.mxu0 0
    %1494 = vmatpush1.bf16.xpose.msra.mxu0 0
    %1495 = vmatprep.subr.bf16.mxu0 0
    %1496 = vmatpush1.bf16.xpose.msra.mxu0 0
    %1497 = vmatprep.subr.bf16.mxu0 0
    %1498 = vmatpush1.bf16.xpose.msra.mxu0 0
    %1499 = vmatprep.subr.bf16.mxu0 0
    %1500 = vmatpush1.bf16.xpose.msra.mxu0 0
    %1501 = vmatprep.subr.bf16.mxu0 0
    %1502 = vmatpush1.bf16.xpose.msra.mxu0 0
    %1503 = vmatprep.subr.bf16.mxu0 0
    %1504 = vmatpush1.bf16.xpose.msra.mxu0 0
    %1505 = vmatprep.subr.bf16.mxu0 0
    %1506 = vmatpush1.bf16.xpose.msra.mxu0 0
    %1507 = vmatprep.subr.bf16.mxu0 0
    %1508 = vmatpush1.bf16.xpose.msra.mxu0 0
    %1509 = vmatprep.subr.bf16.mxu0 0
    %1510 = vmatpush1.bf16.xpose.msra.mxu0 0
    %1511 = vmatprep.subr.bf16.mxu0 0
    %1512 = vmatpush1.bf16.xpose.msra.mxu0 0
    %1513 = vmatprep.subr.bf16.mxu0 0
    %1514 = vmatpush1.bf16.xpose.msra.mxu0 0
    %1515 = vmatprep.subr.bf16.mxu0 0
    %1516 = vmatpush1.bf16.xpose.msra.mxu0 0
    %1517 = vmatprep.mubr.bf16.mxu0 0
    %1518 = vmatmul.mubr.bf16.gmra.mrb[0].mxu0 %v1480
    %v1519 = vpop.f32.mrb[0].mxu0
    %v1520 = vadd.f32 0.0, %v1519
    %v1521 = vpop.f32.mrb[0].mxu0
    %v1522 = vpop.f32.mrb[0].mxu0
    %v1523 = vpop.f32.mrb[0].mxu0
    %1524 = vdwg.mxu0
    %1525 = vrot.lane.b32.xlu0 %v1476, 96
    %v1526 = vpop.permute.xlu0 %1525
    %v1528 = vsel %vm172, %v1476, 0
    %v1531 = vsel %vm172, %v1526, 0
    %1533 = vmatprep.subr.bf16.mxu0 0
    %1534 = vmatpush1.bf16.xpose.msra.mxu0 %v1531
    %1535 = vmatprep.subr.bf16.mxu0 0
    %1536 = vmatpush1.bf16.xpose.msra.mxu0 0
    %1537 = vmatprep.subr.bf16.mxu0 0
    %1538 = vmatpush1.bf16.xpose.msra.mxu0 0
    %1539 = vmatprep.subr.bf16.mxu0 0
    %1540 = vmatpush1.bf16.xpose.msra.mxu0 0
    %1541 = vmatprep.subr.bf16.mxu0 0
    %1542 = vmatpush1.bf16.xpose.msra.mxu0 0
    %1543 = vmatprep.subr.bf16.mxu0 0
    %1544 = vmatpush1.bf16.xpose.msra.mxu0 0
    %1545 = vmatprep.subr.bf16.mxu0 0
    %1546 = vmatpush1.bf16.xpose.msra.mxu0 0
    %1547 = vmatprep.subr.bf16.mxu0 0
    %1548 = vmatpush1.bf16.xpose.msra.mxu0 0
    %1549 = vmatprep.subr.bf16.mxu0 0
    %1550 = vmatpush1.bf16.xpose.msra.mxu0 0
    %1551 = vmatprep.subr.bf16.mxu0 0
    %1552 = vmatpush1.bf16.xpose.msra.mxu0 0
    %1553 = vmatprep.subr.bf16.mxu0 0
    %1554 = vmatpush1.bf16.xpose.msra.mxu0 0
    %1555 = vmatprep.subr.bf16.mxu0 0
    %1556 = vmatpush1.bf16.xpose.msra.mxu0 0
    %1557 = vmatprep.subr.bf16.mxu0 0
    %1558 = vmatpush1.bf16.xpose.msra.mxu0 0
    %1559 = vmatprep.subr.bf16.mxu0 0
    %1560 = vmatpush1.bf16.xpose.msra.mxu0 0
    %1561 = vmatprep.subr.bf16.mxu0 0
    %1562 = vmatpush1.bf16.xpose.msra.mxu0 0
    %1563 = vmatprep.subr.bf16.mxu0 0
    %1564 = vmatpush1.bf16.xpose.msra.mxu0 0
    %1565 = vmatprep.mubr.bf16.mxu0 0
    %1566 = vmatmul.mubr.bf16.gmra.mrb[0].mxu0 %v1528
    %v1567 = vpop.f32.mrb[0].mxu0
    %v1568 = vadd.f32 0.0, %v1567
    %v1569 = vpop.f32.mrb[0].mxu0
    %v1570 = vpop.f32.mrb[0].mxu0
    %v1571 = vpop.f32.mrb[0].mxu0
    %1572 = vdwg.mxu0
    %v1573 = vsel %vm172, %v1520, -inf
    %1574 = vmax.xlane.f32.xlu0 %v1573
    %v1575 = vpop.xlane.xlu0 %1574
    %v1576 = vsel %vm172, %v1568, -inf
    %1577 = vmax.xlane.f32.xlu0 %v1576
    %v1578 = vpop.xlane.xlu0 %1577
    %v1579 = vsub.f32 %v1520, %v1575
    %v1580 = vsub.f32 %v1568, %v1578
    %v1581 = vmul.f32 %v1579, 1.442695
    %v1582 = vpow.pop %v1581
    %v1583 = vmul.f32 %v1580, 1.442695
    %v1584 = vpow.pop %v1583
    %v1585 = vsel %vm172, %v1582, 0.0
    %1586 = vadd.xlane.f32.xlu0 %v1585
    %v1587 = vpop.xlane.xlu0 %1586
    %v1588 = vsel %vm172, %v1584, 0.0
    %1589 = vadd.xlane.f32.xlu0 %v1588
    %v1590 = vpop.xlane.xlu0 %1589
    %v1591 = vrcp.pop %v1587
    %v1592 = vrcp.pop %v1590
    %v1593 = vmul.f32 %v1582, %v1591
    %v1594 = vmul.f32 %v1584, %v1592
    %v1595 = vpack.c.bf16 %v1593, %v1593
    %v1596 = vpack.c.bf16 %v1594, %v1594
    %1597 = vrot.lane.b32.xlu0 %v1475, 64
    %v1598 = vpop.permute.xlu0 %1597
    %v1600 = vsel %vm172, %v1595, 0
    %v1603 = vsel %vm296, %v1598, 0
    %1605 = vmatprep.subr.bf16.mxu0 0
    %1606 = vmatpush1.bf16.msra.mxu0 %v1603
    %1607 = vmatprep.subr.bf16.mxu0 0
    %1608 = vmatpush1.bf16.msra.mxu0 0
    %1609 = vmatprep.subr.bf16.mxu0 0
    %1610 = vmatpush1.bf16.msra.mxu0 0
    %1611 = vmatprep.subr.bf16.mxu0 0
    %1612 = vmatpush1.bf16.msra.mxu0 0
    %1613 = vmatprep.subr.bf16.mxu0 0
    %1614 = vmatpush1.bf16.msra.mxu0 0
    %1615 = vmatprep.subr.bf16.mxu0 0
    %1616 = vmatpush1.bf16.msra.mxu0 0
    %1617 = vmatprep.subr.bf16.mxu0 0
    %1618 = vmatpush1.bf16.msra.mxu0 0
    %1619 = vmatprep.subr.bf16.mxu0 0
    %1620 = vmatpush1.bf16.msra.mxu0 0
    %1621 = vmatprep.subr.bf16.mxu0 0
    %1622 = vmatpush1.bf16.msra.mxu0 0
    %1623 = vmatprep.subr.bf16.mxu0 0
    %1624 = vmatpush1.bf16.msra.mxu0 0
    %1625 = vmatprep.subr.bf16.mxu0 0
    %1626 = vmatpush1.bf16.msra.mxu0 0
    %1627 = vmatprep.subr.bf16.mxu0 0
    %1628 = vmatpush1.bf16.msra.mxu0 0
    %1629 = vmatprep.subr.bf16.mxu0 0
    %1630 = vmatpush1.bf16.msra.mxu0 0
    %1631 = vmatprep.subr.bf16.mxu0 0
    %1632 = vmatpush1.bf16.msra.mxu0 0
    %1633 = vmatprep.subr.bf16.mxu0 0
    %1634 = vmatpush1.bf16.msra.mxu0 0
    %1635 = vmatprep.subr.bf16.mxu0 0
    %1636 = vmatpush1.bf16.msra.mxu0 0
    %1637 = vmatprep.mubr.bf16.mxu0 0
    %1638 = vmatmul.mubr.bf16.gmra.mrb[0].mxu0 %v1600
    %v1639 = vpop.f32.mrb[0].mxu0
    %v1640 = vadd.f32 0.0, %v1639
    %v1641 = vpop.f32.mrb[0].mxu0
    %v1642 = vpop.f32.mrb[0].mxu0
    %v1643 = vpop.f32.mrb[0].mxu0
    %1644 = vdwg.mxu0
    %1645 = vrot.lane.b32.xlu0 %v1476, 64
    %v1646 = vpop.permute.xlu0 %1645
    %v1648 = vsel %vm172, %v1596, 0
    %v1651 = vsel %vm296, %v1646, 0
    %1653 = vmatprep.subr.bf16.mxu0 0
    %1654 = vmatpush1.bf16.msra.mxu0 %v1651
    %1655 = vmatprep.subr.bf16.mxu0 0
    %1656 = vmatpush1.bf16.msra.mxu0 0
    %1657 = vmatprep.subr.bf16.mxu0 0
    %1658 = vmatpush1.bf16.msra.mxu0 0
    %1659 = vmatprep.subr.bf16.mxu0 0
    %1660 = vmatpush1.bf16.msra.mxu0 0
    %1661 = vmatprep.subr.bf16.mxu0 0
    %1662 = vmatpush1.bf16.msra.mxu0 0
    %1663 = vmatprep.subr.bf16.mxu0 0
    %1664 = vmatpush1.bf16.msra.mxu0 0
    %1665 = vmatprep.subr.bf16.mxu0 0
    %1666 = vmatpush1.bf16.msra.mxu0 0
    %1667 = vmatprep.subr.bf16.mxu0 0
    %1668 = vmatpush1.bf16.msra.mxu0 0
    %1669 = vmatprep.subr.bf16.mxu0 0
    %1670 = vmatpush1.bf16.msra.mxu0 0
    %1671 = vmatprep.subr.bf16.mxu0 0
    %1672 = vmatpush1.bf16.msra.mxu0 0
    %1673 = vmatprep.subr.bf16.mxu0 0
    %1674 = vmatpush1.bf16.msra.mxu0 0
    %1675 = vmatprep.subr.bf16.mxu0 0
    %1676 = vmatpush1.bf16.msra.mxu0 0
    %1677 = vmatprep.subr.bf16.mxu0 0
    %1678 = vmatpush1.bf16.msra.mxu0 0
    %1679 = vmatprep.subr.bf16.mxu0 0
    %1680 = vmatpush1.bf16.msra.mxu0 0
    %1681 = vmatprep.subr.bf16.mxu0 0
    %1682 = vmatpush1.bf16.msra.mxu0 0
    %1683 = vmatprep.subr.bf16.mxu0 0
    %1684 = vmatpush1.bf16.msra.mxu0 0
    %1685 = vmatprep.mubr.bf16.mxu0 0
    %1686 = vmatmul.mubr.bf16.gmra.mrb[0].mxu0 %v1648
    %v1687 = vpop.f32.mrb[0].mxu0
    %v1688 = vadd.f32 0.0, %v1687
    %v1689 = vpop.f32.mrb[0].mxu0
    %v1690 = vpop.f32.mrb[0].mxu0
    %v1691 = vpop.f32.mrb[0].mxu0
    %1692 = vdwg.mxu0
    %v1693 = vpack.c.bf16 %v1640, %v1640
    %v1694 = vpack.c.bf16 %v1688, %v1688
    %1695 = vrot.lane.b32.xlu0 %v1475, 120
    %v1696 = vpop.permute.xlu0 %1695
    %1697 = vrot.lane.b32.xlu0 %v1475, 88
    %v1698 = vpop.permute.xlu0 %1697
    %v1700 = vsel %vm172, %v1696, 0
    %v1703 = vsel %vm172, %v1698, 0
    %1705 = vmatprep.subr.bf16.mxu0 0
    %1706 = vmatpush1.bf16.xpose.msra.mxu0 %v1703
    %1707 = vmatprep.subr.bf16.mxu0 0
    %1708 = vmatpush1.bf16.xpose.msra.mxu0 0
    %1709 = vmatprep.subr.bf16.mxu0 0
    %1710 = vmatpush1.bf16.xpose.msra.mxu0 0
    %1711 = vmatprep.subr.bf16.mxu0 0
    %1712 = vmatpush1.bf16.xpose.msra.mxu0 0
    %1713 = vmatprep.subr.bf16.mxu0 0
    %1714 = vmatpush1.bf16.xpose.msra.mxu0 0
    %1715 = vmatprep.subr.bf16.mxu0 0
    %1716 = vmatpush1.bf16.xpose.msra.mxu0 0
    %1717 = vmatprep.subr.bf16.mxu0 0
    %1718 = vmatpush1.bf16.xpose.msra.mxu0 0
    %1719 = vmatprep.subr.bf16.mxu0 0
    %1720 = vmatpush1.bf16.xpose.msra.mxu0 0
    %1721 = vmatprep.subr.bf16.mxu0 0
    %1722 = vmatpush1.bf16.xpose.msra.mxu0 0
    %1723 = vmatprep.subr.bf16.mxu0 0
    %1724 = vmatpush1.bf16.xpose.msra.mxu0 0
    %1725 = vmatprep.subr.bf16.mxu0 0
    %1726 = vmatpush1.bf16.xpose.msra.mxu0 0
    %1727 = vmatprep.subr.bf16.mxu0 0
    %1728 = vmatpush1.bf16.xpose.msra.mxu0 0
    %1729 = vmatprep.subr.bf16.mxu0 0
    %1730 = vmatpush1.bf16.xpose.msra.mxu0 0
    %1731 = vmatprep.subr.bf16.mxu0 0
    %1732 = vmatpush1.bf16.xpose.msra.mxu0 0
    %1733 = vmatprep.subr.bf16.mxu0 0
    %1734 = vmatpush1.bf16.xpose.msra.mxu0 0
    %1735 = vmatprep.subr.bf16.mxu0 0
    %1736 = vmatpush1.bf16.xpose.msra.mxu0 0
    %1737 = vmatprep.mubr.bf16.mxu0 0
    %1738 = vmatmul.mubr.bf16.gmra.mrb[0].mxu0 %v1700
    %v1739 = vpop.f32.mrb[0].mxu0
    %v1740 = vadd.f32 0.0, %v1739
    %v1741 = vpop.f32.mrb[0].mxu0
    %v1742 = vpop.f32.mrb[0].mxu0
    %v1743 = vpop.f32.mrb[0].mxu0
    %1744 = vdwg.mxu0
    %1745 = vrot.lane.b32.xlu0 %v1476, 120
    %v1746 = vpop.permute.xlu0 %1745
    %1747 = vrot.lane.b32.xlu0 %v1476, 88
    %v1748 = vpop.permute.xlu0 %1747
    %v1750 = vsel %vm172, %v1746, 0
    %v1753 = vsel %vm172, %v1748, 0
    %1755 = vmatprep.subr.bf16.mxu0 0
    %1756 = vmatpush1.bf16.xpose.msra.mxu0 %v1753
    %1757 = vmatprep.subr.bf16.mxu0 0
    %1758 = vmatpush1.bf16.xpose.msra.mxu0 0
    %1759 = vmatprep.subr.bf16.mxu0 0
    %1760 = vmatpush1.bf16.xpose.msra.mxu0 0
    %1761 = vmatprep.subr.bf16.mxu0 0
    %1762 = vmatpush1.bf16.xpose.msra.mxu0 0
    %1763 = vmatprep.subr.bf16.mxu0 0
    %1764 = vmatpush1.bf16.xpose.msra.mxu0 0
    %1765 = vmatprep.subr.bf16.mxu0 0
    %1766 = vmatpush1.bf16.xpose.msra.mxu0 0
    %1767 = vmatprep.subr.bf16.mxu0 0
    %1768 = vmatpush1.bf16.xpose.msra.mxu0 0
    %1769 = vmatprep.subr.bf16.mxu0 0
    %1770 = vmatpush1.bf16.xpose.msra.mxu0 0
    %1771 = vmatprep.subr.bf16.mxu0 0
    %1772 = vmatpush1.bf16.xpose.msra.mxu0 0
    %1773 = vmatprep.subr.bf16.mxu0 0
    %1774 = vmatpush1.bf16.xpose.msra.mxu0 0
    %1775 = vmatprep.subr.bf16.mxu0 0
    %1776 = vmatpush1.bf16.xpose.msra.mxu0 0
    %1777 = vmatprep.subr.bf16.mxu0 0
    %1778 = vmatpush1.bf16.xpose.msra.mxu0 0
    %1779 = vmatprep.subr.bf16.mxu0 0
    %1780 = vmatpush1.bf16.xpose.msra.mxu0 0
    %1781 = vmatprep.subr.bf16.mxu0 0
    %1782 = vmatpush1.bf16.xpose.msra.mxu0 0
    %1783 = vmatprep.subr.bf16.mxu0 0
    %1784 = vmatpush1.bf16.xpose.msra.mxu0 0
    %1785 = vmatprep.subr.bf16.mxu0 0
    %1786 = vmatpush1.bf16.xpose.msra.mxu0 0
    %1787 = vmatprep.mubr.bf16.mxu0 0
    %1788 = vmatmul.mubr.bf16.gmra.mrb[0].mxu0 %v1750
    %v1789 = vpop.f32.mrb[0].mxu0
    %v1790 = vadd.f32 0.0, %v1789
    %v1791 = vpop.f32.mrb[0].mxu0
    %v1792 = vpop.f32.mrb[0].mxu0
    %v1793 = vpop.f32.mrb[0].mxu0
    %1794 = vdwg.mxu0
    %v1795 = vsel %vm172, %v1740, -inf
    %1796 = vmax.xlane.f32.xlu0 %v1795
    %v1797 = vpop.xlane.xlu0 %1796
    %v1798 = vsel %vm172, %v1790, -inf
    %1799 = vmax.xlane.f32.xlu0 %v1798
    %v1800 = vpop.xlane.xlu0 %1799
    %v1801 = vsub.f32 %v1740, %v1797
    %v1802 = vsub.f32 %v1790, %v1800
    %v1803 = vmul.f32 %v1801, 1.442695
    %v1804 = vpow.pop %v1803
    %v1805 = vmul.f32 %v1802, 1.442695
    %v1806 = vpow.pop %v1805
    %v1807 = vsel %vm172, %v1804, 0.0
    %1808 = vadd.xlane.f32.xlu0 %v1807
    %v1809 = vpop.xlane.xlu0 %1808
    %v1810 = vsel %vm172, %v1806, 0.0
    %1811 = vadd.xlane.f32.xlu0 %v1810
    %v1812 = vpop.xlane.xlu0 %1811
    %v1813 = vrcp.pop %v1809
    %v1814 = vrcp.pop %v1812
    %v1815 = vmul.f32 %v1804, %v1813
    %v1816 = vmul.f32 %v1806, %v1814
    %v1817 = vpack.c.bf16 %v1815, %v1815
    %v1818 = vpack.c.bf16 %v1816, %v1816
    %1819 = vrot.lane.b32.xlu0 %v1475, 56
    %v1820 = vpop.permute.xlu0 %1819
    %v1822 = vsel %vm172, %v1817, 0
    %v1825 = vsel %vm296, %v1820, 0
    %1827 = vmatprep.subr.bf16.mxu0 0
    %1828 = vmatpush1.bf16.msra.mxu0 %v1825
    %1829 = vmatprep.subr.bf16.mxu0 0
    %1830 = vmatpush1.bf16.msra.mxu0 0
    %1831 = vmatprep.subr.bf16.mxu0 0
    %1832 = vmatpush1.bf16.msra.mxu0 0
    %1833 = vmatprep.subr.bf16.mxu0 0
    %1834 = vmatpush1.bf16.msra.mxu0 0
    %1835 = vmatprep.subr.bf16.mxu0 0
    %1836 = vmatpush1.bf16.msra.mxu0 0
    %1837 = vmatprep.subr.bf16.mxu0 0
    %1838 = vmatpush1.bf16.msra.mxu0 0
    %1839 = vmatprep.subr.bf16.mxu0 0
    %1840 = vmatpush1.bf16.msra.mxu0 0
    %1841 = vmatprep.subr.bf16.mxu0 0
    %1842 = vmatpush1.bf16.msra.mxu0 0
    %1843 = vmatprep.subr.bf16.mxu0 0
    %1844 = vmatpush1.bf16.msra.mxu0 0
    %1845 = vmatprep.subr.bf16.mxu0 0
    %1846 = vmatpush1.bf16.msra.mxu0 0
    %1847 = vmatprep.subr.bf16.mxu0 0
    %1848 = vmatpush1.bf16.msra.mxu0 0
    %1849 = vmatprep.subr.bf16.mxu0 0
    %1850 = vmatpush1.bf16.msra.mxu0 0
    %1851 = vmatprep.subr.bf16.mxu0 0
    %1852 = vmatpush1.bf16.msra.mxu0 0
    %1853 = vmatprep.subr.bf16.mxu0 0
    %1854 = vmatpush1.bf16.msra.mxu0 0
    %1855 = vmatprep.subr.bf16.mxu0 0
    %1856 = vmatpush1.bf16.msra.mxu0 0
    %1857 = vmatprep.subr.bf16.mxu0 0
    %1858 = vmatpush1.bf16.msra.mxu0 0
    %1859 = vmatprep.mubr.bf16.mxu0 0
    %1860 = vmatmul.mubr.bf16.gmra.mrb[0].mxu0 %v1822
    %v1861 = vpop.f32.mrb[0].mxu0
    %v1862 = vadd.f32 0.0, %v1861
    %v1863 = vpop.f32.mrb[0].mxu0
    %v1864 = vpop.f32.mrb[0].mxu0
    %v1865 = vpop.f32.mrb[0].mxu0
    %1866 = vdwg.mxu0
    %1867 = vrot.lane.b32.xlu0 %v1476, 56
    %v1868 = vpop.permute.xlu0 %1867
    %v1870 = vsel %vm172, %v1818, 0
    %v1873 = vsel %vm296, %v1868, 0
    %1875 = vmatprep.subr.bf16.mxu0 0
    %1876 = vmatpush1.bf16.msra.mxu0 %v1873
    %1877 = vmatprep.subr.bf16.mxu0 0
    %1878 = vmatpush1.bf16.msra.mxu0 0
    %1879 = vmatprep.subr.bf16.mxu0 0
    %1880 = vmatpush1.bf16.msra.mxu0 0
    %1881 = vmatprep.subr.bf16.mxu0 0
    %1882 = vmatpush1.bf16.msra.mxu0 0
    %1883 = vmatprep.subr.bf16.mxu0 0
    %1884 = vmatpush1.bf16.msra.mxu0 0
    %1885 = vmatprep.subr.bf16.mxu0 0
    %1886 = vmatpush1.bf16.msra.mxu0 0
    %1887 = vmatprep.subr.bf16.mxu0 0
    %1888 = vmatpush1.bf16.msra.mxu0 0
    %1889 = vmatprep.subr.bf16.mxu0 0
    %1890 = vmatpush1.bf16.msra.mxu0 0
    %1891 = vmatprep.subr.bf16.mxu0 0
    %1892 = vmatpush1.bf16.msra.mxu0 0
    %1893 = vmatprep.subr.bf16.mxu0 0
    %1894 = vmatpush1.bf16.msra.mxu0 0
    %1895 = vmatprep.subr.bf16.mxu0 0
    %1896 = vmatpush1.bf16.msra.mxu0 0
    %1897 = vmatprep.subr.bf16.mxu0 0
    %1898 = vmatpush1.bf16.msra.mxu0 0
    %1899 = vmatprep.subr.bf16.mxu0 0
    %1900 = vmatpush1.bf16.msra.mxu0 0
    %1901 = vmatprep.subr.bf16.mxu0 0
    %1902 = vmatpush1.bf16.msra.mxu0 0
    %1903 = vmatprep.subr.bf16.mxu0 0
    %1904 = vmatpush1.bf16.msra.mxu0 0
    %1905 = vmatprep.subr.bf16.mxu0 0
    %1906 = vmatpush1.bf16.msra.mxu0 0
    %1907 = vmatprep.mubr.bf16.mxu0 0
    %1908 = vmatmul.mubr.bf16.gmra.mrb[0].mxu0 %v1870
    %v1909 = vpop.f32.mrb[0].mxu0
    %v1910 = vadd.f32 0.0, %v1909
    %v1911 = vpop.f32.mrb[0].mxu0
    %v1912 = vpop.f32.mrb[0].mxu0
    %v1913 = vpop.f32.mrb[0].mxu0
    %1914 = vdwg.mxu0
    %v1915 = vpack.c.bf16 %v1862, %v1862
    %v1916 = vpack.c.bf16 %v1910, %v1910
    %1917 = vrot.lane.b32.xlu0 %v1475, 112
    %v1918 = vpop.permute.xlu0 %1917
    %1919 = vrot.lane.b32.xlu0 %v1475, 80
    %v1920 = vpop.permute.xlu0 %1919
    %v1922 = vsel %vm172, %v1918, 0
    %v1925 = vsel %vm172, %v1920, 0
    %1927 = vmatprep.subr.bf16.mxu0 0
    %1928 = vmatpush1.bf16.xpose.msra.mxu0 %v1925
    %1929 = vmatprep.subr.bf16.mxu0 0
    %1930 = vmatpush1.bf16.xpose.msra.mxu0 0
    %1931 = vmatprep.subr.bf16.mxu0 0
    %1932 = vmatpush1.bf16.xpose.msra.mxu0 0
    %1933 = vmatprep.subr.bf16.mxu0 0
    %1934 = vmatpush1.bf16.xpose.msra.mxu0 0
    %1935 = vmatprep.subr.bf16.mxu0 0
    %1936 = vmatpush1.bf16.xpose.msra.mxu0 0
    %1937 = vmatprep.subr.bf16.mxu0 0
    %1938 = vmatpush1.bf16.xpose.msra.mxu0 0
    %1939 = vmatprep.subr.bf16.mxu0 0
    %1940 = vmatpush1.bf16.xpose.msra.mxu0 0
    %1941 = vmatprep.subr.bf16.mxu0 0
    %1942 = vmatpush1.bf16.xpose.msra.mxu0 0
    %1943 = vmatprep.subr.bf16.mxu0 0
    %1944 = vmatpush1.bf16.xpose.msra.mxu0 0
    %1945 = vmatprep.subr.bf16.mxu0 0
    %1946 = vmatpush1.bf16.xpose.msra.mxu0 0
    %1947 = vmatprep.subr.bf16.mxu0 0
    %1948 = vmatpush1.bf16.xpose.msra.mxu0 0
    %1949 = vmatprep.subr.bf16.mxu0 0
    %1950 = vmatpush1.bf16.xpose.msra.mxu0 0
    %1951 = vmatprep.subr.bf16.mxu0 0
    %1952 = vmatpush1.bf16.xpose.msra.mxu0 0
    %1953 = vmatprep.subr.bf16.mxu0 0
    %1954 = vmatpush1.bf16.xpose.msra.mxu0 0
    %1955 = vmatprep.subr.bf16.mxu0 0
    %1956 = vmatpush1.bf16.xpose.msra.mxu0 0
    %1957 = vmatprep.subr.bf16.mxu0 0
    %1958 = vmatpush1.bf16.xpose.msra.mxu0 0
    %1959 = vmatprep.mubr.bf16.mxu0 0
    %1960 = vmatmul.mubr.bf16.gmra.mrb[0].mxu0 %v1922
    %v1961 = vpop.f32.mrb[0].mxu0
    %v1962 = vadd.f32 0.0, %v1961
    %v1963 = vpop.f32.mrb[0].mxu0
    %v1964 = vpop.f32.mrb[0].mxu0
    %v1965 = vpop.f32.mrb[0].mxu0
    %1966 = vdwg.mxu0
    %1967 = vrot.lane.b32.xlu0 %v1476, 112
    %v1968 = vpop.permute.xlu0 %1967
    %1969 = vrot.lane.b32.xlu0 %v1476, 80
    %v1970 = vpop.permute.xlu0 %1969
    %v1972 = vsel %vm172, %v1968, 0
    %v1975 = vsel %vm172, %v1970, 0
    %1977 = vmatprep.subr.bf16.mxu0 0
    %1978 = vmatpush1.bf16.xpose.msra.mxu0 %v1975
    %1979 = vmatprep.subr.bf16.mxu0 0
    %1980 = vmatpush1.bf16.xpose.msra.mxu0 0
    %1981 = vmatprep.subr.bf16.mxu0 0
    %1982 = vmatpush1.bf16.xpose.msra.mxu0 0
    %1983 = vmatprep.subr.bf16.mxu0 0
    %1984 = vmatpush1.bf16.xpose.msra.mxu0 0
    %1985 = vmatprep.subr.bf16.mxu0 0
    %1986 = vmatpush1.bf16.xpose.msra.mxu0 0
    %1987 = vmatprep.subr.bf16.mxu0 0
    %1988 = vmatpush1.bf16.xpose.msra.mxu0 0
    %1989 = vmatprep.subr.bf16.mxu0 0
    %1990 = vmatpush1.bf16.xpose.msra.mxu0 0
    %1991 = vmatprep.subr.bf16.mxu0 0
    %1992 = vmatpush1.bf16.xpose.msra.mxu0 0
    %1993 = vmatprep.subr.bf16.mxu0 0
    %1994 = vmatpush1.bf16.xpose.msra.mxu0 0
    %1995 = vmatprep.subr.bf16.mxu0 0
    %1996 = vmatpush1.bf16.xpose.msra.mxu0 0
    %1997 = vmatprep.subr.bf16.mxu0 0
    %1998 = vmatpush1.bf16.xpose.msra.mxu0 0
    %1999 = vmatprep.subr.bf16.mxu0 0
    %2000 = vmatpush1.bf16.xpose.msra.mxu0 0
    %2001 = vmatprep.subr.bf16.mxu0 0
    %2002 = vmatpush1.bf16.xpose.msra.mxu0 0
    %2003 = vmatprep.subr.bf16.mxu0 0
    %2004 = vmatpush1.bf16.xpose.msra.mxu0 0
    %2005 = vmatprep.subr.bf16.mxu0 0
    %2006 = vmatpush1.bf16.xpose.msra.mxu0 0
    %2007 = vmatprep.subr.bf16.mxu0 0
    %2008 = vmatpush1.bf16.xpose.msra.mxu0 0
    %2009 = vmatprep.mubr.bf16.mxu0 0
    %2010 = vmatmul.mubr.bf16.gmra.mrb[0].mxu0 %v1972
    %v2011 = vpop.f32.mrb[0].mxu0
    %v2012 = vadd.f32 0.0, %v2011
    %v2013 = vpop.f32.mrb[0].mxu0
    %v2014 = vpop.f32.mrb[0].mxu0
    %v2015 = vpop.f32.mrb[0].mxu0
    %2016 = vdwg.mxu0
    %v2017 = vsel %vm172, %v1962, -inf
    %2018 = vmax.xlane.f32.xlu0 %v2017
    %v2019 = vpop.xlane.xlu0 %2018
    %v2020 = vsel %vm172, %v2012, -inf
    %2021 = vmax.xlane.f32.xlu0 %v2020
    %v2022 = vpop.xlane.xlu0 %2021
    %v2023 = vsub.f32 %v1962, %v2019
    %v2024 = vsub.f32 %v2012, %v2022
    %v2025 = vmul.f32 %v2023, 1.442695
    %v2026 = vpow.pop %v2025
    %v2027 = vmul.f32 %v2024, 1.442695
    %v2028 = vpow.pop %v2027
    %v2029 = vsel %vm172, %v2026, 0.0
    %2030 = vadd.xlane.f32.xlu0 %v2029
    %v2031 = vpop.xlane.xlu0 %2030
    %v2032 = vsel %vm172, %v2028, 0.0
    %2033 = vadd.xlane.f32.xlu0 %v2032
    %v2034 = vpop.xlane.xlu0 %2033
    %v2035 = vrcp.pop %v2031
    %v2036 = vrcp.pop %v2034
    %v2037 = vmul.f32 %v2026, %v2035
    %v2038 = vmul.f32 %v2028, %v2036
    %v2039 = vpack.c.bf16 %v2037, %v2037
    %v2040 = vpack.c.bf16 %v2038, %v2038
    %2041 = vrot.lane.b32.xlu0 %v1475, 48
    %v2042 = vpop.permute.xlu0 %2041
    %v2044 = vsel %vm172, %v2039, 0
    %v2047 = vsel %vm296, %v2042, 0
    %2049 = vmatprep.subr.bf16.mxu0 0
    %2050 = vmatpush1.bf16.msra.mxu0 %v2047
    %2051 = vmatprep.subr.bf16.mxu0 0
    %2052 = vmatpush1.bf16.msra.mxu0 0
    %2053 = vmatprep.subr.bf16.mxu0 0
    %2054 = vmatpush1.bf16.msra.mxu0 0
    %2055 = vmatprep.subr.bf16.mxu0 0
    %2056 = vmatpush1.bf16.msra.mxu0 0
    %2057 = vmatprep.subr.bf16.mxu0 0
    %2058 = vmatpush1.bf16.msra.mxu0 0
    %2059 = vmatprep.subr.bf16.mxu0 0
    %2060 = vmatpush1.bf16.msra.mxu0 0
    %2061 = vmatprep.subr.bf16.mxu0 0
    %2062 = vmatpush1.bf16.msra.mxu0 0
    %2063 = vmatprep.subr.bf16.mxu0 0
    %2064 = vmatpush1.bf16.msra.mxu0 0
    %2065 = vmatprep.subr.bf16.mxu0 0
    %2066 = vmatpush1.bf16.msra.mxu0 0
    %2067 = vmatprep.subr.bf16.mxu0 0
    %2068 = vmatpush1.bf16.msra.mxu0 0
    %2069 = vmatprep.subr.bf16.mxu0 0
    %2070 = vmatpush1.bf16.msra.mxu0 0
    %2071 = vmatprep.subr.bf16.mxu0 0
    %2072 = vmatpush1.bf16.msra.mxu0 0
    %2073 = vmatprep.subr.bf16.mxu0 0
    %2074 = vmatpush1.bf16.msra.mxu0 0
    %2075 = vmatprep.subr.bf16.mxu0 0
    %2076 = vmatpush1.bf16.msra.mxu0 0
    %2077 = vmatprep.subr.bf16.mxu0 0
    %2078 = vmatpush1.bf16.msra.mxu0 0
    %2079 = vmatprep.subr.bf16.mxu0 0
    %2080 = vmatpush1.bf16.msra.mxu0 0
    %2081 = vmatprep.mubr.bf16.mxu0 0
    %2082 = vmatmul.mubr.bf16.gmra.mrb[0].mxu0 %v2044
    %v2083 = vpop.f32.mrb[0].mxu0
    %v2084 = vadd.f32 0.0, %v2083
    %v2085 = vpop.f32.mrb[0].mxu0
    %v2086 = vpop.f32.mrb[0].mxu0
    %v2087 = vpop.f32.mrb[0].mxu0
    %2088 = vdwg.mxu0
    %2089 = vrot.lane.b32.xlu0 %v1476, 48
    %v2090 = vpop.permute.xlu0 %2089
    %v2092 = vsel %vm172, %v2040, 0
    %v2095 = vsel %vm296, %v2090, 0
    %2097 = vmatprep.subr.bf16.mxu0 0
    %2098 = vmatpush1.bf16.msra.mxu0 %v2095
    %2099 = vmatprep.subr.bf16.mxu0 0
    %2100 = vmatpush1.bf16.msra.mxu0 0
    %2101 = vmatprep.subr.bf16.mxu0 0
    %2102 = vmatpush1.bf16.msra.mxu0 0
    %2103 = vmatprep.subr.bf16.mxu0 0
    %2104 = vmatpush1.bf16.msra.mxu0 0
    %2105 = vmatprep.subr.bf16.mxu0 0
    %2106 = vmatpush1.bf16.msra.mxu0 0
    %2107 = vmatprep.subr.bf16.mxu0 0
    %2108 = vmatpush1.bf16.msra.mxu0 0
    %2109 = vmatprep.subr.bf16.mxu0 0
    %2110 = vmatpush1.bf16.msra.mxu0 0
    %2111 = vmatprep.subr.bf16.mxu0 0
    %2112 = vmatpush1.bf16.msra.mxu0 0
    %2113 = vmatprep.subr.bf16.mxu0 0
    %2114 = vmatpush1.bf16.msra.mxu0 0
    %2115 = vmatprep.subr.bf16.mxu0 0
    %2116 = vmatpush1.bf16.msra.mxu0 0
    %2117 = vmatprep.subr.bf16.mxu0 0
    %2118 = vmatpush1.bf16.msra.mxu0 0
    %2119 = vmatprep.subr.bf16.mxu0 0
    %2120 = vmatpush1.bf16.msra.mxu0 0
    %2121 = vmatprep.subr.bf16.mxu0 0
    %2122 = vmatpush1.bf16.msra.mxu0 0
    %2123 = vmatprep.subr.bf16.mxu0 0
    %2124 = vmatpush1.bf16.msra.mxu0 0
    %2125 = vmatprep.subr.bf16.mxu0 0
    %2126 = vmatpush1.bf16.msra.mxu0 0
    %2127 = vmatprep.subr.bf16.mxu0 0
    %2128 = vmatpush1.bf16.msra.mxu0 0
    %2129 = vmatprep.mubr.bf16.mxu0 0
    %2130 = vmatmul.mubr.bf16.gmra.mrb[0].mxu0 %v2092
    %v2131 = vpop.f32.mrb[0].mxu0
    %v2132 = vadd.f32 0.0, %v2131
    %v2133 = vpop.f32.mrb[0].mxu0
    %v2134 = vpop.f32.mrb[0].mxu0
    %v2135 = vpop.f32.mrb[0].mxu0
    %2136 = vdwg.mxu0
    %v2137 = vpack.c.bf16 %v2084, %v2084
    %v2138 = vpack.c.bf16 %v2132, %v2132
    %2139 = vrot.lane.b32.xlu0 %v1475, 104
    %v2140 = vpop.permute.xlu0 %2139
    %2141 = vrot.lane.b32.xlu0 %v1475, 72
    %v2142 = vpop.permute.xlu0 %2141
    %v2144 = vsel %vm172, %v2140, 0
    %v2147 = vsel %vm172, %v2142, 0
    %2149 = vmatprep.subr.bf16.mxu0 0
    %2150 = vmatpush1.bf16.xpose.msra.mxu0 %v2147
    %2151 = vmatprep.subr.bf16.mxu0 0
    %2152 = vmatpush1.bf16.xpose.msra.mxu0 0
    %2153 = vmatprep.subr.bf16.mxu0 0
    %2154 = vmatpush1.bf16.xpose.msra.mxu0 0
    %2155 = vmatprep.subr.bf16.mxu0 0
    %2156 = vmatpush1.bf16.xpose.msra.mxu0 0
    %2157 = vmatprep.subr.bf16.mxu0 0
    %2158 = vmatpush1.bf16.xpose.msra.mxu0 0
    %2159 = vmatprep.subr.bf16.mxu0 0
    %2160 = vmatpush1.bf16.xpose.msra.mxu0 0
    %2161 = vmatprep.subr.bf16.mxu0 0
    %2162 = vmatpush1.bf16.xpose.msra.mxu0 0
    %2163 = vmatprep.subr.bf16.mxu0 0
    %2164 = vmatpush1.bf16.xpose.msra.mxu0 0
    %2165 = vmatprep.subr.bf16.mxu0 0
    %2166 = vmatpush1.bf16.xpose.msra.mxu0 0
    %2167 = vmatprep.subr.bf16.mxu0 0
    %2168 = vmatpush1.bf16.xpose.msra.mxu0 0
    %2169 = vmatprep.subr.bf16.mxu0 0
    %2170 = vmatpush1.bf16.xpose.msra.mxu0 0
    %2171 = vmatprep.subr.bf16.mxu0 0
    %2172 = vmatpush1.bf16.xpose.msra.mxu0 0
    %2173 = vmatprep.subr.bf16.mxu0 0
    %2174 = vmatpush1.bf16.xpose.msra.mxu0 0
    %2175 = vmatprep.subr.bf16.mxu0 0
    %2176 = vmatpush1.bf16.xpose.msra.mxu0 0
    %2177 = vmatprep.subr.bf16.mxu0 0
    %2178 = vmatpush1.bf16.xpose.msra.mxu0 0
    %2179 = vmatprep.subr.bf16.mxu0 0
    %2180 = vmatpush1.bf16.xpose.msra.mxu0 0
    %2181 = vmatprep.mubr.bf16.mxu0 0
    %2182 = vmatmul.mubr.bf16.gmra.mrb[0].mxu0 %v2144
    %v2183 = vpop.f32.mrb[0].mxu0
    %v2184 = vadd.f32 0.0, %v2183
    %v2185 = vpop.f32.mrb[0].mxu0
    %v2186 = vpop.f32.mrb[0].mxu0
    %v2187 = vpop.f32.mrb[0].mxu0
    %2188 = vdwg.mxu0
    %2189 = vrot.lane.b32.xlu0 %v1476, 104
    %v2190 = vpop.permute.xlu0 %2189
    %2191 = vrot.lane.b32.xlu0 %v1476, 72
    %v2192 = vpop.permute.xlu0 %2191
    %v2194 = vsel %vm172, %v2190, 0
    %v2197 = vsel %vm172, %v2192, 0
    %2199 = vmatprep.subr.bf16.mxu0 0
    %2200 = vmatpush1.bf16.xpose.msra.mxu0 %v2197
    %2201 = vmatprep.subr.bf16.mxu0 0
    %2202 = vmatpush1.bf16.xpose.msra.mxu0 0
    %2203 = vmatprep.subr.bf16.mxu0 0
    %2204 = vmatpush1.bf16.xpose.msra.mxu0 0
    %2205 = vmatprep.subr.bf16.mxu0 0
    %2206 = vmatpush1.bf16.xpose.msra.mxu0 0
    %2207 = vmatprep.subr.bf16.mxu0 0
    %2208 = vmatpush1.bf16.xpose.msra.mxu0 0
    %2209 = vmatprep.subr.bf16.mxu0 0
    %2210 = vmatpush1.bf16.xpose.msra.mxu0 0
    %2211 = vmatprep.subr.bf16.mxu0 0
    %2212 = vmatpush1.bf16.xpose.msra.mxu0 0
    %2213 = vmatprep.subr.bf16.mxu0 0
    %2214 = vmatpush1.bf16.xpose.msra.mxu0 0
    %2215 = vmatprep.subr.bf16.mxu0 0
    %2216 = vmatpush1.bf16.xpose.msra.mxu0 0
    %2217 = vmatprep.subr.bf16.mxu0 0
    %2218 = vmatpush1.bf16.xpose.msra.mxu0 0
    %2219 = vmatprep.subr.bf16.mxu0 0
    %2220 = vmatpush1.bf16.xpose.msra.mxu0 0
    %2221 = vmatprep.subr.bf16.mxu0 0
    %2222 = vmatpush1.bf16.xpose.msra.mxu0 0
    %2223 = vmatprep.subr.bf16.mxu0 0
    %2224 = vmatpush1.bf16.xpose.msra.mxu0 0
    %2225 = vmatprep.subr.bf16.mxu0 0
    %2226 = vmatpush1.bf16.xpose.msra.mxu0 0
    %2227 = vmatprep.subr.bf16.mxu0 0
    %2228 = vmatpush1.bf16.xpose.msra.mxu0 0
    %2229 = vmatprep.subr.bf16.mxu0 0
    %2230 = vmatpush1.bf16.xpose.msra.mxu0 0
    %2231 = vmatprep.mubr.bf16.mxu0 0
    %2232 = vmatmul.mubr.bf16.gmra.mrb[0].mxu0 %v2194
    %v2233 = vpop.f32.mrb[0].mxu0
    %v2234 = vadd.f32 0.0, %v2233
    %v2235 = vpop.f32.mrb[0].mxu0
    %v2236 = vpop.f32.mrb[0].mxu0
    %v2237 = vpop.f32.mrb[0].mxu0
    %2238 = vdwg.mxu0
    %v2239 = vsel %vm172, %v2184, -inf
    %2240 = vmax.xlane.f32.xlu0 %v2239
    %v2241 = vpop.xlane.xlu0 %2240
    %v2242 = vsel %vm172, %v2234, -inf
    %2243 = vmax.xlane.f32.xlu0 %v2242
    %v2244 = vpop.xlane.xlu0 %2243
    %v2245 = vsub.f32 %v2184, %v2241
    %v2246 = vsub.f32 %v2234, %v2244
    %v2247 = vmul.f32 %v2245, 1.442695
    %v2248 = vpow.pop %v2247
    %v2249 = vmul.f32 %v2246, 1.442695
    %v2250 = vpow.pop %v2249
    %v2251 = vsel %vm172, %v2248, 0.0
    %2252 = vadd.xlane.f32.xlu0 %v2251
    %v2253 = vpop.xlane.xlu0 %2252
    %v2254 = vsel %vm172, %v2250, 0.0
    %2255 = vadd.xlane.f32.xlu0 %v2254
    %v2256 = vpop.xlane.xlu0 %2255
    %v2257 = vrcp.pop %v2253
    %v2258 = vrcp.pop %v2256
    %v2259 = vmul.f32 %v2248, %v2257
    %v2260 = vmul.f32 %v2250, %v2258
    %v2261 = vpack.c.bf16 %v2259, %v2259
    %v2262 = vpack.c.bf16 %v2260, %v2260
    %2263 = vrot.lane.b32.xlu0 %v1475, 40
    %v2264 = vpop.permute.xlu0 %2263
    %v2266 = vsel %vm172, %v2261, 0
    %v2269 = vsel %vm296, %v2264, 0
    %2271 = vmatprep.subr.bf16.mxu0 0
    %2272 = vmatpush1.bf16.msra.mxu0 %v2269
    %2273 = vmatprep.subr.bf16.mxu0 0
    %2274 = vmatpush1.bf16.msra.mxu0 0
    %2275 = vmatprep.subr.bf16.mxu0 0
    %2276 = vmatpush1.bf16.msra.mxu0 0
    %2277 = vmatprep.subr.bf16.mxu0 0
    %2278 = vmatpush1.bf16.msra.mxu0 0
    %2279 = vmatprep.subr.bf16.mxu0 0
    %2280 = vmatpush1.bf16.msra.mxu0 0
    %2281 = vmatprep.subr.bf16.mxu0 0
    %2282 = vmatpush1.bf16.msra.mxu0 0
    %2283 = vmatprep.subr.bf16.mxu0 0
    %2284 = vmatpush1.bf16.msra.mxu0 0
    %2285 = vmatprep.subr.bf16.mxu0 0
    %2286 = vmatpush1.bf16.msra.mxu0 0
    %2287 = vmatprep.subr.bf16.mxu0 0
    %2288 = vmatpush1.bf16.msra.mxu0 0
    %2289 = vmatprep.subr.bf16.mxu0 0
    %2290 = vmatpush1.bf16.msra.mxu0 0
    %2291 = vmatprep.subr.bf16.mxu0 0
    %2292 = vmatpush1.bf16.msra.mxu0 0
    %2293 = vmatprep.subr.bf16.mxu0 0
    %2294 = vmatpush1.bf16.msra.mxu0 0
    %2295 = vmatprep.subr.bf16.mxu0 0
    %2296 = vmatpush1.bf16.msra.mxu0 0
    %2297 = vmatprep.subr.bf16.mxu0 0
    %2298 = vmatpush1.bf16.msra.mxu0 0
    %2299 = vmatprep.subr.bf16.mxu0 0
    %2300 = vmatpush1.bf16.msra.mxu0 0
    %2301 = vmatprep.subr.bf16.mxu0 0
    %2302 = vmatpush1.bf16.msra.mxu0 0
    %2303 = vmatprep.mubr.bf16.mxu0 0
    %2304 = vmatmul.mubr.bf16.gmra.mrb[0].mxu0 %v2266
    %v2305 = vpop.f32.mrb[0].mxu0
    %v2306 = vadd.f32 0.0, %v2305
    %v2307 = vpop.f32.mrb[0].mxu0
    %v2308 = vpop.f32.mrb[0].mxu0
    %v2309 = vpop.f32.mrb[0].mxu0
    %2310 = vdwg.mxu0
    %2311 = vrot.lane.b32.xlu0 %v1476, 40
    %v2312 = vpop.permute.xlu0 %2311
    %v2314 = vsel %vm172, %v2262, 0
    %v2317 = vsel %vm296, %v2312, 0
    %2319 = vmatprep.subr.bf16.mxu0 0
    %2320 = vmatpush1.bf16.msra.mxu0 %v2317
    %2321 = vmatprep.subr.bf16.mxu0 0
    %2322 = vmatpush1.bf16.msra.mxu0 0
    %2323 = vmatprep.subr.bf16.mxu0 0
    %2324 = vmatpush1.bf16.msra.mxu0 0
    %2325 = vmatprep.subr.bf16.mxu0 0
    %2326 = vmatpush1.bf16.msra.mxu0 0
    %2327 = vmatprep.subr.bf16.mxu0 0
    %2328 = vmatpush1.bf16.msra.mxu0 0
    %2329 = vmatprep.subr.bf16.mxu0 0
    %2330 = vmatpush1.bf16.msra.mxu0 0
    %2331 = vmatprep.subr.bf16.mxu0 0
    %2332 = vmatpush1.bf16.msra.mxu0 0
    %2333 = vmatprep.subr.bf16.mxu0 0
    %2334 = vmatpush1.bf16.msra.mxu0 0
    %2335 = vmatprep.subr.bf16.mxu0 0
    %2336 = vmatpush1.bf16.msra.mxu0 0
    %2337 = vmatprep.subr.bf16.mxu0 0
    %2338 = vmatpush1.bf16.msra.mxu0 0
    %2339 = vmatprep.subr.bf16.mxu0 0
    %2340 = vmatpush1.bf16.msra.mxu0 0
    %2341 = vmatprep.subr.bf16.mxu0 0
    %2342 = vmatpush1.bf16.msra.mxu0 0
    %2343 = vmatprep.subr.bf16.mxu0 0
    %2344 = vmatpush1.bf16.msra.mxu0 0
    %2345 = vmatprep.subr.bf16.mxu0 0
    %2346 = vmatpush1.bf16.msra.mxu0 0
    %2347 = vmatprep.subr.bf16.mxu0 0
    %2348 = vmatpush1.bf16.msra.mxu0 0
    %2349 = vmatprep.subr.bf16.mxu0 0
    %2350 = vmatpush1.bf16.msra.mxu0 0
    %2351 = vmatprep.mubr.bf16.mxu0 0
    %2352 = vmatmul.mubr.bf16.gmra.mrb[0].mxu0 %v2314
    %v2353 = vpop.f32.mrb[0].mxu0
    %v2354 = vadd.f32 0.0, %v2353
    %v2355 = vpop.f32.mrb[0].mxu0
    %v2356 = vpop.f32.mrb[0].mxu0
    %v2357 = vpop.f32.mrb[0].mxu0
    %2358 = vdwg.mxu0
    %v2359 = vpack.c.bf16 %v2306, %v2306
    %v2360 = vpack.c.bf16 %v2354, %v2354
    %2363 = vrot.lane.b32.xlu0 %v1915, 8
    %v2364 = vpop.permute.xlu0 %2363
    %2365 = vrot.lane.b32.xlu0 %v1916, 8
    %v2366 = vpop.permute.xlu0 %2365
    %2369 = vrot.lane.b32.xlu0 %v2137, 16
    %v2370 = vpop.permute.xlu0 %2369
    %2371 = vrot.lane.b32.xlu0 %v2138, 16
    %v2372 = vpop.permute.xlu0 %2371
    %2375 = vrot.lane.b32.xlu0 %v2359, 24
    %v2376 = vpop.permute.xlu0 %2375
    %2377 = vrot.lane.b32.xlu0 %v2360, 24
    %v2378 = vpop.permute.xlu0 %2377
    %v2381 = vsel %vm172, %v1693, %v2364
    %v2384 = vsel %vm172, %v1694, %v2366
    %v2386 = vsel %vm1080, %v2381, %v2370
    %v2388 = vsel %vm1080, %v2384, %v2372
    %v2390 = vsel %vm1085, %v2386, %v2376
    %v2392 = vsel %vm1085, %v2388, %v2378
    %s2393 = scalar_lea.vmem %s3, 16
    %v2394 = vld [vmem:[%s2393] sm:$0xf]
    %v2395 = vld [vmem:[%s2393 + $0x4] sm:$0xf]
    %v2396 = vld [vmem:[%s2393 + $0x8] sm:$0xf]
    %v2397 = vld [vmem:[%s2393 + $0xc] sm:$0xf]
    %v2398 = vlaneseq
    %v2399 = vshrl.u32 %v2398, 7
    %v2400 = vsub.s32 2, %v2399
    %v2401 = vrot.slane %v1370, %v2400
    %v2404 = vunpack.c.l.b16 %v2390
    %v2405 = vunpack.c.l.b16 %v2392
    %v2406 = vpack.c.b16 %v2405, %v2404
    %v2411 = vunpack.c.l.b16 %v2394
    %v2412 = vunpack.c.l.b16 %v2395
    %v2413 = vunpack.c.l.b16 %v2396
    %v2414 = vunpack.c.l.b16 %v2397
    %v2415 = vpack.c.b16 %v2412, %v2411
    %v2416 = vpack.c.b16 %v2414, %v2413
    %v2420 = vsel %vm63, %v2406, 0
    %2422 = vmatprep.subr.bf16.mxu0 0
    %2423 = vmatpush1.bf16.msra.mxu0 %v2415
    %2424 = vmatprep.subr.bf16.mxu0 0
    %2425 = vmatpush1.bf16.msra.mxu0 %v2416
    %2426 = vmatprep.subr.bf16.mxu0 0
    %2427 = vmatpush1.bf16.msra.mxu0 0
    %2428 = vmatprep.subr.bf16.mxu0 0
    %2429 = vmatpush1.bf16.msra.mxu0 0
    %2430 = vmatprep.subr.bf16.mxu0 0
    %2431 = vmatpush1.bf16.msra.mxu0 0
    %2432 = vmatprep.subr.bf16.mxu0 0
    %2433 = vmatpush1.bf16.msra.mxu0 0
    %2434 = vmatprep.subr.bf16.mxu0 0
    %2435 = vmatpush1.bf16.msra.mxu0 0
    %2436 = vmatprep.subr.bf16.mxu0 0
    %2437 = vmatpush1.bf16.msra.mxu0 0
    %2438 = vmatprep.subr.bf16.mxu0 0
    %2439 = vmatpush1.bf16.msra.mxu0 0
    %2440 = vmatprep.subr.bf16.mxu0 0
    %2441 = vmatpush1.bf16.msra.mxu0 0
    %2442 = vmatprep.subr.bf16.mxu0 0
    %2443 = vmatpush1.bf16.msra.mxu0 0
    %2444 = vmatprep.subr.bf16.mxu0 0
    %2445 = vmatpush1.bf16.msra.mxu0 0
    %2446 = vmatprep.subr.bf16.mxu0 0
    %2447 = vmatpush1.bf16.msra.mxu0 0
    %2448 = vmatprep.subr.bf16.mxu0 0
    %2449 = vmatpush1.bf16.msra.mxu0 0
    %2450 = vmatprep.subr.bf16.mxu0 0
    %2451 = vmatpush1.bf16.msra.mxu0 0
    %2452 = vmatprep.subr.bf16.mxu0 0
    %2453 = vmatpush1.bf16.msra.mxu0 0
    %2454 = vmatprep.mubr.bf16.mxu0 0
    %2455 = vmatmul.mubr.bf16.gmra.mrb[0].mxu0 %v2420
    %v2456 = vpop.f32.mrb[0].mxu0
    %v2457 = vadd.f32 %v2401, %v2456
    %v2458 = vpop.f32.mrb[0].mxu0
    %v2459 = vpop.f32.mrb[0].mxu0
    %v2460 = vadd.f32 %v2401, %v2459
    %v2461 = vpop.f32.mrb[0].mxu0
    %2462 = vdwg.mxu0
    %v2463 = vadd.f32 %v1367, %v2457
    %v2464 = vadd.f32 %v1368, %v2460
    %v2465 = vsel %vm63, %v2463, 0.0
    %2466 = vadd.xlane.f32.xlu0 %v2465
    %v2467 = vpop.xlane.xlu0 %2466
    %v2468 = vsel %vm63, %v2464, 0.0
    %2469 = vadd.xlane.f32.xlu0 %v2468
    %v2470 = vpop.xlane.xlu0 %2469
    %v2471 = vmul.f32 %v2467, %v70
    %v2472 = vmul.f32 %v2470, %v70
    %v2473 = vsub.f32 %v2463, %v2471
    %v2474 = vsub.f32 %v2464, %v2472
    %v2475 = vmul.f32 %v2473, %v2473
    %v2476 = vmul.f32 %v2474, %v2474
    %v2477 = vsel %vm63, %v2475, 0.0
    %2478 = vadd.xlane.f32.xlu0 %v2477
    %v2479 = vpop.xlane.xlu0 %2478
    %v2480 = vsel %vm63, %v2476, 0.0
    %2481 = vadd.xlane.f32.xlu0 %v2480
    %v2482 = vpop.xlane.xlu0 %2481
    %v2483 = vmul.f32 %v2479, %v70
    %v2484 = vmul.f32 %v2482, %v70
    %v2485 = vadd.f32 %v2483, 1e-05
    %v2486 = vadd.f32 %v2484, 1e-05
    %v2487 = vrsqrt.pop %v2485
    %v2488 = vrsqrt.pop %v2486
    %v2489 = vmul.f32 %v2473, %v2487
    %v2490 = vmul.f32 %v2474, %v2488
    %v2491 = vlaneseq
    %v2492 = vshrl.u32 %v2491, 7
    %v2493 = vsub.s32 3, %v2492
    %v2494 = vrot.slane %v1370, %v2493
    %v2495 = vmul.f32 %v2489, %v2494
    %v2496 = vmul.f32 %v2490, %v2494
    %v2497 = vlaneseq
    %v2498 = vshrl.u32 %v2497, 7
    %v2499 = vsub.s32 4, %v2498
    %v2500 = vrot.slane %v1370, %v2499
    %v2501 = vadd.f32 %v2495, %v2500
    %v2502 = vadd.f32 %v2496, %v2500
    %v2503 = vpack.c.bf16 %v2502, %v2501
    %s2504 = scalar_lea.vmem %s4, 16
    %v2505 = vld [vmem:[%s2504] sm:$0xf]
    %v2506 = vld [vmem:[%s2504 + $0x4] sm:$0xf]
    %v2507 = vld [vmem:[%s2504 + $0x8] sm:$0xf]
    %v2508 = vld [vmem:[%s2504 + $0xc] sm:$0xf]
    %s2509 = scalar_lea.vmem %s7, 1
    %v2510 = vld [vmem:[%s2509] sm:$0x1]
    %v2512 = vlaneseq
    %v2513 = vshrl.u32 %v2512, 7
    %v2514 = vsub.s32 0, %v2513
    %v2515 = vrot.slane %v2510, %v2514
    %v2521 = vunpack.c.l.b16 %v2505
    %v2522 = vunpack.c.l.b16 %v2506
    %v2523 = vunpack.c.l.b16 %v2507
    %v2524 = vunpack.c.l.b16 %v2508
    %v2525 = vpack.c.b16 %v2522, %v2521
    %v2526 = vpack.c.b16 %v2524, %v2523
    %v2530 = vsel %vm63, %v2503, 0
    %2532 = vmatprep.subr.bf16.mxu0 0
    %2533 = vmatpush1.bf16.msra.mxu0 %v2525
    %2534 = vmatprep.subr.bf16.mxu0 0
    %2535 = vmatpush1.bf16.msra.mxu0 %v2526
    %2536 = vmatprep.subr.bf16.mxu0 0
    %2537 = vmatpush1.bf16.msra.mxu0 0
    %2538 = vmatprep.subr.bf16.mxu0 0
    %2539 = vmatpush1.bf16.msra.mxu0 0
    %2540 = vmatprep.subr.bf16.mxu0 0
    %2541 = vmatpush1.bf16.msra.mxu0 0
    %2542 = vmatprep.subr.bf16.mxu0 0
    %2543 = vmatpush1.bf16.msra.mxu0 0
    %2544 = vmatprep.subr.bf16.mxu0 0
    %2545 = vmatpush1.bf16.msra.mxu0 0
    %2546 = vmatprep.subr.bf16.mxu0 0
    %2547 = vmatpush1.bf16.msra.mxu0 0
    %2548 = vmatprep.subr.bf16.mxu0 0
    %2549 = vmatpush1.bf16.msra.mxu0 0
    %2550 = vmatprep.subr.bf16.mxu0 0
    %2551 = vmatpush1.bf16.msra.mxu0 0
    %2552 = vmatprep.subr.bf16.mxu0 0
    %2553 = vmatpush1.bf16.msra.mxu0 0
    %2554 = vmatprep.subr.bf16.mxu0 0
    %2555 = vmatpush1.bf16.msra.mxu0 0
    %2556 = vmatprep.subr.bf16.mxu0 0
    %2557 = vmatpush1.bf16.msra.mxu0 0
    %2558 = vmatprep.subr.bf16.mxu0 0
    %2559 = vmatpush1.bf16.msra.mxu0 0
    %2560 = vmatprep.subr.bf16.mxu0 0
    %2561 = vmatpush1.bf16.msra.mxu0 0
    %2562 = vmatprep.subr.bf16.mxu0 0
    %2563 = vmatpush1.bf16.msra.mxu0 0
    %2564 = vmatprep.mubr.bf16.mxu0 0
    %2565 = vmatmul.mubr.bf16.gmra.mrb[0].mxu0 %v2530
    %v2566 = vpop.f32.mrb[0].mxu0
    %v2567 = vadd.f32 %v2515, %v2566
    %v2568 = vpop.f32.mrb[0].mxu0
    %v2569 = vpop.f32.mrb[0].mxu0
    %v2570 = vadd.f32 %v2515, %v2569
    %v2571 = vpop.f32.mrb[0].mxu0
    %2572 = vdwg.mxu0
    %v2573 = vmul.f32 %v2567, %v2567
    %v2574 = vmul.f32 %v2570, %v2570
    %v2575 = vmul.f32 %v2567, %v2573
    %v2576 = vmul.f32 %v2570, %v2574
    %v2577 = vmul.f32 %v2575, 0.044715
    %v2578 = vmul.f32 %v2576, 0.044715
    %v2579 = vadd.f32 %v2567, %v2577
    %v2580 = vadd.f32 %v2570, %v2578
    %v2581 = vmul.f32 %v2579, 0.7978846
    %v2582 = vmul.f32 %v2580, 0.7978846
    %v2583 = vtanh.pop %v2581
    %v2584 = vtanh.pop %v2582
    %v2585 = vadd.f32 %v2583, 1.0
    %v2586 = vadd.f32 %v2584, 1.0
    %v2587 = vmul.f32 %v2585, 0.5
    %v2588 = vmul.f32 %v2586, 0.5
    %v2589 = vmul.f32 %v2567, %v2587
    %v2590 = vmul.f32 %v2570, %v2588
    %v2591 = vpack.c.bf16 %v2590, %v2589
    %s2592 = scalar_lea.vmem %s5, 32
    %v2593 = vld [vmem:[%s2592] sm:$0xf]
    %v2594 = vld [vmem:[%s2592 + $0x4] sm:$0xf]
    %v2595 = vld [vmem:[%s2592 + $0x8] sm:$0xf]
    %v2596 = vld [vmem:[%s2592 + $0xc] sm:$0xf]
    %v2597 = vld [vmem:[%s2592 + $0x10] sm:$0xf]
    %v2598 = vld [vmem:[%s2592 + $0x14] sm:$0xf]
    %v2599 = vld [vmem:[%s2592 + $0x18] sm:$0xf]
    %v2600 = vld [vmem:[%s2592 + $0x1c] sm:$0xf]
    %v2601 = vlaneseq
    %v2602 = vshrl.u32 %v2601, 7
    %v2603 = vsub.s32 5, %v2602
    %v2604 = vrot.slane %v1370, %v2603
    %v2613 = vunpack.c.l.b16 %v2593
    %v2614 = vunpack.c.l.b16 %v2594
    %v2615 = vunpack.c.l.b16 %v2595
    %v2616 = vunpack.c.l.b16 %v2596
    %v2617 = vunpack.c.l.b16 %v2597
    %v2618 = vunpack.c.l.b16 %v2598
    %v2619 = vunpack.c.l.b16 %v2599
    %v2620 = vunpack.c.l.b16 %v2600
    %v2621 = vpack.c.b16 %v2614, %v2613
    %v2622 = vpack.c.b16 %v2616, %v2615
    %v2623 = vpack.c.b16 %v2618, %v2617
    %v2624 = vpack.c.b16 %v2620, %v2619
    %v2630 = vsel %vm1322, %v2591, 0
    %2632 = vmatprep.subr.bf16.mxu0 0
    %2633 = vmatpush1.bf16.msra.mxu0 %v2621
    %2634 = vmatprep.subr.bf16.mxu0 0
    %2635 = vmatpush1.bf16.msra.mxu0 %v2622
    %2636 = vmatprep.subr.bf16.mxu0 0
    %2637 = vmatpush1.bf16.msra.mxu0 %v2623
    %2638 = vmatprep.subr.bf16.mxu0 0
    %2639 = vmatpush1.bf16.msra.mxu0 %v2624
    %2640 = vmatprep.subr.bf16.mxu0 0
    %2641 = vmatpush1.bf16.msra.mxu0 0
    %2642 = vmatprep.subr.bf16.mxu0 0
    %2643 = vmatpush1.bf16.msra.mxu0 0
    %2644 = vmatprep.subr.bf16.mxu0 0
    %2645 = vmatpush1.bf16.msra.mxu0 0
    %2646 = vmatprep.subr.bf16.mxu0 0
    %2647 = vmatpush1.bf16.msra.mxu0 0
    %2648 = vmatprep.subr.bf16.mxu0 0
    %2649 = vmatpush1.bf16.msra.mxu0 0
    %2650 = vmatprep.subr.bf16.mxu0 0
    %2651 = vmatpush1.bf16.msra.mxu0 0
    %2652 = vmatprep.subr.bf16.mxu0 0
    %2653 = vmatpush1.bf16.msra.mxu0 0
    %2654 = vmatprep.subr.bf16.mxu0 0
    %2655 = vmatpush1.bf16.msra.mxu0 0
    %2656 = vmatprep.subr.bf16.mxu0 0
    %2657 = vmatpush1.bf16.msra.mxu0 0
    %2658 = vmatprep.subr.bf16.mxu0 0
    %2659 = vmatpush1.bf16.msra.mxu0 0
    %2660 = vmatprep.subr.bf16.mxu0 0
    %2661 = vmatpush1.bf16.msra.mxu0 0
    %2662 = vmatprep.subr.bf16.mxu0 0
    %2663 = vmatpush1.bf16.msra.mxu0 0
    %2664 = vmatprep.mubr.bf16.mxu0 0
    %2665 = vmatmul.mubr.bf16.gmra.mrb[0].mxu0 %v2630
    %v2666 = vpop.f32.mrb[0].mxu0
    %v2667 = vadd.f32 %v2604, %v2666
    %v2668 = vpop.f32.mrb[0].mxu0
    %v2669 = vpop.f32.mrb[0].mxu0
    %v2670 = vadd.f32 %v2604, %v2669
    %v2671 = vpop.f32.mrb[0].mxu0
    %2672 = vdwg.mxu0
    %v2673 = vadd.f32 %v2463, %v2667
    %v2674 = vadd.f32 %v2464, %v2670
    %2675 = vst.msk [vmem:[#allocation7] sm:$0xff] %vm63, %v2673
    %2676 = vst.msk [vmem:[#allocation7 + $0x8] sm:$0xff] %vm63, %v2674
    // Predicated region
    $region42: #{tpu_custom_call.1} parent=1 // pred_check
      _
    $region43: #{tpu_custom_call.1} parent=1 // pred_check_branch
      %2678 = sbr.rel (0) target = $region45
    $region44: #{tpu_custom_call.1} parent=1 // pred_region
      %s2680 = ssub.s32 256, 256
      %2681 = vsyncadd [#allocation4], %s2680
      %s2682 = sshll.u32 [#allocation7], 4
      %s2683 = int_to_ptr.vmem [resolvable:$true] %s2682
      %2688 = dma.vmem_to_hbm [thread:$0]  %s2683, 256, %s8, [#allocation4], 128, 128, 8
    $region45: #{tpu_custom_call.1} parent=1 // pred_fallthru
      _
    // Predicated region
    $region46: #{tpu_custom_call.1} parent=1 // pred_check
      _
    $region47: #{tpu_custom_call.1} parent=1 // pred_check_branch
      %2690 = sbr.rel (0) target = $region49
    $region48: #{tpu_custom_call.1} parent=1 // pred_region
      %2691 = dma.done [#allocation4], 256
    $region49: #{tpu_custom_call.1} parent=1 // pred_fallthru
      _
    %2692 = vsyncpa [#allocation3], 1
    %2693 = vsyncpa [#allocation6], 1
    %2694 = vsyncpa [#allocation4], 1

</llo_original>
